<compile_context>
chip_gen: v5e
topology: v5e:2x2
jax: 0.10.0
libtpu: 0.0.40
codegen_flags: <defaults>
</compile_context>

<pallas_src>
import jax
import jax.numpy as jnp
from jax.experimental import pallas as pl

# ----- model hyper-parameters (small, consistent with the module) -----
BATCH = 8
X_DIM = 64
HIDDEN = 1024          # hard-wired in the PyTorch module
DIM_Z = 128            # dimZ
Y_DIM = 10
NUM_SAMPLES = 4        # num_samples


def vib_kernel(x_ref, w1_ref, b1_ref, w2_ref, b2_ref, w3_ref, b3_ref,
               wd_ref, bd_ref, eps_ref, out_ref):
    # ----- encoder: 3 Linear layers, bf16 weights, f32 accumulation -----
    h1 = jnp.dot(x_ref[...].astype(jnp.bfloat16), w1_ref[...],
                 preferred_element_type=jnp.float32) + b1_ref[...]
    h1 = jnp.maximum(h1, 0.0).astype(jnp.bfloat16)

    h2 = jnp.dot(h1, w2_ref[...],
                 preferred_element_type=jnp.float32) + b2_ref[...]
    h2 = jnp.maximum(h2, 0.0).astype(jnp.bfloat16)

    enc = jnp.dot(h2, w3_ref[...],
                  preferred_element_type=jnp.float32) + b3_ref[...]

    # ----- split mu / sigma (lane-aligned at 128), reparameterize, decode -----
    mu = enc[:, :DIM_Z]                              # (B, dimZ)
    sigma = jnp.logaddexp(enc[:, DIM_Z:], 0.0)       # softplus, stable

    # mean over samples of (mu + sigma*eps_s) @ Wd == (mu + sigma*eps_mean) @ Wd
    eps_mean = jnp.mean(eps_ref[...], axis=0)        # (B, dimZ), in-kernel reduce
    z = mu + sigma * eps_mean                        # (B, dimZ)

    out_ref[...] = jnp.dot(z, wd_ref[...],
                           preferred_element_type=jnp.float32) + bd_ref[...]


def vib_forward(x, params, eps):
    (w1, b1, w2, b2, w3, b3, wd, bd) = params
    # Single invocation, no grid: every operand (weights ~2.7 MiB bf16 + <20 KiB
    # activations) is placed whole in VMEM by the default BlockSpecs.
    return pl.pallas_call(
        vib_kernel,
        out_shape=jax.ShapeDtypeStruct((x.shape[0], Y_DIM), jnp.float32),
    )(x, w1, b1, w2, b2, w3, b3, wd, bd, eps)


def vib_forward_ref(x, params, eps):
    """Pure-JAX reference mirroring the PyTorch forward (same bf16 weight precision,
    per-sample decoder + mean over samples, default matmul precision)."""
    (w1, b1, w2, b2, w3, b3, wd, bd) = params
    h1 = jnp.maximum(jnp.dot(x.astype(jnp.bfloat16), w1,
                             preferred_element_type=jnp.float32) + b1, 0.0)
    h2 = jnp.maximum(jnp.dot(h1.astype(jnp.bfloat16), w2,
                             preferred_element_type=jnp.float32) + b2, 0.0)
    enc = jnp.dot(h2.astype(jnp.bfloat16), w3,
                  preferred_element_type=jnp.float32) + b3
    mu = enc[:, :DIM_Z]
    sigma = jax.nn.softplus(enc[:, DIM_Z:])
    z = mu[None] + sigma[None] * eps                               # (S, B, dimZ)
    logits = jnp.einsum("sbd,dy->sby", z, wd) + bd                 # (S, B, y)
    return jnp.mean(logits, axis=0)                                # (B, y)


def init_params(key):
    """Deterministic init matching the PyTorch module's shapes (weights stored (in,out)).
    Encoder weights kept in bf16 (streamed), biases + decoder in f32."""
    ks = jax.random.split(key, 8)

    def lin(kw, kb, fan_in, fan_out, w_dtype=jnp.float32):
        bound = 1.0 / jnp.sqrt(fan_in)
        w = jax.random.uniform(kw, (fan_in, fan_out), jnp.float32, -bound, bound)
        b = jax.random.uniform(kb, (1, fan_out), jnp.float32, -bound, bound)
        return w.astype(w_dtype), b

    w1, b1 = lin(ks[0], ks[1], X_DIM, HIDDEN, jnp.bfloat16)
    w2, b2 = lin(ks[2], ks[3], HIDDEN, HIDDEN, jnp.bfloat16)
    w3, b3 = lin(ks[4], ks[5], HIDDEN, 2 * DIM_Z, jnp.bfloat16)
    wd, bd = lin(ks[6], ks[7], DIM_Z, Y_DIM, jnp.float32)
    return (w1, b1, w2, b2, w3, b3, wd, bd)


if __name__ == "__main__":
    key = jax.random.PRNGKey(0)
    k_params, k_x, k_eps = jax.random.split(key, 3)

    params = init_params(k_params)
    x = jax.random.normal(k_x, (BATCH, X_DIM), jnp.float32)
    # Gaussian noise the PyTorch module would draw inside forward()
    eps = jax.random.normal(k_eps, (NUM_SAMPLES, BATCH, DIM_Z), jnp.float32)

    out = vib_forward(x, params, eps)
    out = jax.block_until_ready(out)

    ref = vib_forward_ref(x, params, eps)
    assert out.shape == (BATCH, Y_DIM)
    assert jnp.allclose(out, ref, atol=1e-2, rtol=1e-2), "mismatch vs JAX reference"

    print("KERNEL_OK")
</pallas_src>

<mosaic_0001>
module attributes {stable_mosaic.version = 11 : i64} {
  func.func @vib_kernel(%arg0: memref<8x64xf32, #tpu.memory_space<vmem>>, %arg1: memref<64x1024xbf16, #tpu.memory_space<vmem>>, %arg2: memref<1x1024xf32, #tpu.memory_space<vmem>>, %arg3: memref<1024x1024xbf16, #tpu.memory_space<vmem>>, %arg4: memref<1x1024xf32, #tpu.memory_space<vmem>>, %arg5: memref<1024x256xbf16, #tpu.memory_space<vmem>>, %arg6: memref<1x256xf32, #tpu.memory_space<vmem>>, %arg7: memref<128x10xf32, #tpu.memory_space<vmem>>, %arg8: memref<1x10xf32, #tpu.memory_space<vmem>>, %arg9: memref<4x8x128xf32, #tpu.memory_space<vmem>>, %arg10: memref<8x10xf32, #tpu.memory_space<vmem>>) attributes {dimension_semantics = [], scalar_prefetch = 0 : i64, scratch_operands = 0 : i64, tpu.core_type = #tpu.core_type<tc>} {
    %c0 = arith.constant 0 : index
    %c0_0 = arith.constant 0 : index
    %0 = vector.load %arg0[%c0, %c0_0] : memref<8x64xf32, #tpu.memory_space<vmem>>, vector<8x64xf32>
    %1 = arith.truncf %0 : vector<8x64xf32> to vector<8x64xbf16>
    %c0_1 = arith.constant 0 : index
    %c0_2 = arith.constant 0 : index
    %2 = vector.load %arg1[%c0_1, %c0_2] : memref<64x1024xbf16, #tpu.memory_space<vmem>>, vector<64x1024xbf16>
    %cst = arith.constant dense<0.000000e+00> : vector<8x1024xf32>
    %3 = tpu.matmul %1, %2, %cst {dimension_numbers = #tpu.dot_dimension_numbers<[1], [0], [0], [1], [0, 0, 1, 1], [], []>} : vector<8x64xbf16>, vector<64x1024xbf16>, vector<8x1024xf32> -> vector<8x1024xf32>
    %c0_3 = arith.constant 0 : index
    %c0_4 = arith.constant 0 : index
    %4 = vector.load %arg2[%c0_3, %c0_4] : memref<1x1024xf32, #tpu.memory_space<vmem>>, vector<1x1024xf32>
    %5 = vector.broadcast %4 : vector<1x1024xf32> to vector<8x1024xf32>
    %6 = arith.addf %3, %5 : vector<8x1024xf32>
    %cst_5 = arith.constant 0.000000e+00 : f32
    %7 = vector.broadcast %cst_5 : f32 to vector<8x1024xf32>
    %8 = arith.maximumf %6, %7 : vector<8x1024xf32>
    %9 = arith.truncf %8 : vector<8x1024xf32> to vector<8x1024xbf16>
    %c0_6 = arith.constant 0 : index
    %c0_7 = arith.constant 0 : index
    %10 = vector.load %arg3[%c0_6, %c0_7] : memref<1024x1024xbf16, #tpu.memory_space<vmem>>, vector<1024x1024xbf16>
    %cst_8 = arith.constant dense<0.000000e+00> : vector<8x1024xf32>
    %11 = tpu.matmul %9, %10, %cst_8 {dimension_numbers = #tpu.dot_dimension_numbers<[1], [0], [0], [1], [0, 0, 1, 1], [], []>} : vector<8x1024xbf16>, vector<1024x1024xbf16>, vector<8x1024xf32> -> vector<8x1024xf32>
    %c0_9 = arith.constant 0 : index
    %c0_10 = arith.constant 0 : index
    %12 = vector.load %arg4[%c0_9, %c0_10] : memref<1x1024xf32, #tpu.memory_space<vmem>>, vector<1x1024xf32>
    %13 = vector.broadcast %12 : vector<1x1024xf32> to vector<8x1024xf32>
    %14 = arith.addf %11, %13 : vector<8x1024xf32>
    %cst_11 = arith.constant 0.000000e+00 : f32
    %15 = vector.broadcast %cst_11 : f32 to vector<8x1024xf32>
    %16 = arith.maximumf %14, %15 : vector<8x1024xf32>
    %17 = arith.truncf %16 : vector<8x1024xf32> to vector<8x1024xbf16>
    %c0_12 = arith.constant 0 : index
    %c0_13 = arith.constant 0 : index
    %18 = vector.load %arg5[%c0_12, %c0_13] : memref<1024x256xbf16, #tpu.memory_space<vmem>>, vector<1024x256xbf16>
    %cst_14 = arith.constant dense<0.000000e+00> : vector<8x256xf32>
    %19 = tpu.matmul %17, %18, %cst_14 {dimension_numbers = #tpu.dot_dimension_numbers<[1], [0], [0], [1], [0, 0, 1, 1], [], []>} : vector<8x1024xbf16>, vector<1024x256xbf16>, vector<8x256xf32> -> vector<8x256xf32>
    %c0_15 = arith.constant 0 : index
    %c0_16 = arith.constant 0 : index
    %20 = vector.load %arg6[%c0_15, %c0_16] : memref<1x256xf32, #tpu.memory_space<vmem>>, vector<1x256xf32>
    %21 = vector.broadcast %20 : vector<1x256xf32> to vector<8x256xf32>
    %22 = arith.addf %19, %21 : vector<8x256xf32>
    %23 = vector.extract_strided_slice %22 {offsets = [0, 0], sizes = [8, 128], strides = [1, 1]} : vector<8x256xf32> to vector<8x128xf32>
    %24 = vector.extract_strided_slice %22 {offsets = [0, 128], sizes = [8, 128], strides = [1, 1]} : vector<8x256xf32> to vector<8x128xf32>
    %cst_17 = arith.constant 0.000000e+00 : f32
    %25 = vector.broadcast %cst_17 : f32 to vector<8x128xf32>
    %26 = arith.maximumf %24, %25 : vector<8x128xf32>
    %27 = vector.broadcast %cst_17 : f32 to vector<8x128xf32>
    %28 = arith.subf %24, %27 : vector<8x128xf32>
    %29 = arith.cmpf one, %28, %28 : vector<8x128xf32>
    %30 = vector.broadcast %cst_17 : f32 to vector<8x128xf32>
    %31 = arith.addf %24, %30 : vector<8x128xf32>
    %32 = math.absf %28 : vector<8x128xf32>
    %cst_18 = arith.constant 0.000000e+00 : f32
    %33 = vector.broadcast %cst_18 : f32 to vector<8x128xf32>
    %34 = arith.subf %33, %32 : vector<8x128xf32>
    %35 = math.exp %34 : vector<8x128xf32>
    %36 = math.log1p %35 : vector<8x128xf32>
    %37 = arith.addf %26, %36 : vector<8x128xf32>
    %38 = arith.select %29, %31, %37 : vector<8x128xi1>, vector<8x128xf32>
    %c0_19 = arith.constant 0 : index
    %c0_20 = arith.constant 0 : index
    %c0_21 = arith.constant 0 : index
    %39 = vector.load %arg9[%c0_19, %c0_20, %c0_21] : memref<4x8x128xf32, #tpu.memory_space<vmem>>, vector<4x8x128xf32>
    %cst_22 = arith.constant dense<0.000000e+00> : vector<8x128xf32>
    %40 = vector.multi_reduction <add>, %39, %cst_22 [0] : vector<4x8x128xf32> to vector<8x128xf32>
    %cst_23 = arith.constant 4.000000e+00 : f32
    %41 = vector.broadcast %cst_23 : f32 to vector<8x128xf32>
    %42 = arith.divf %40, %41 : vector<8x128xf32>
    %43 = arith.mulf %38, %42 : vector<8x128xf32>
    %44 = arith.addf %23, %43 : vector<8x128xf32>
    %c0_24 = arith.constant 0 : index
    %c0_25 = arith.constant 0 : index
    %45 = vector.load %arg7[%c0_24, %c0_25] : memref<128x10xf32, #tpu.memory_space<vmem>>, vector<128x10xf32>
    %cst_26 = arith.constant dense<0.000000e+00> : vector<8x10xf32>
    %46 = tpu.matmul %44, %45, %cst_26 {dimension_numbers = #tpu.dot_dimension_numbers<[1], [0], [0], [1], [0, 0, 1, 1], [], []>} : vector<8x128xf32>, vector<128x10xf32>, vector<8x10xf32> -> vector<8x10xf32>
    %c0_27 = arith.constant 0 : index
    %c0_28 = arith.constant 0 : index
    %47 = vector.load %arg8[%c0_27, %c0_28] : memref<1x10xf32, #tpu.memory_space<vmem>>, vector<1x10xf32>
    %48 = vector.broadcast %47 : vector<1x10xf32> to vector<8x10xf32>
    %49 = arith.addf %46, %48 : vector<8x10xf32>
    %c0_29 = arith.constant 0 : index
    %c0_30 = arith.constant 0 : index
    %50 = vector.load %arg10[%c0_29, %c0_30] : memref<8x10xf32, #tpu.memory_space<vmem>>, vector<8x10xf32>
    tpu.vector_store %arg10[%c0_29, %c0_30], %49 {strides = array<i32>} : memref<8x10xf32, #tpu.memory_space<vmem>>, vector<8x10xf32>,
    return
  }
}

</mosaic_0001>

<llo_original>
// kernel: tpu_custom_call.1
$region0: #{tpu_custom_call.1}
  #allocation0 [shape = 'u32[]', space=smem, size = 0x4, offset = 0x4, fixed_abs, tag = 'smem constant byte address 0x4 - core index']
  #allocation1 [shape = 'u32[72,128]{1,0:T(1,128)}', space=vmem, size = 0x9000, scoped, tag = 'internal scratch']
  %s0 = inlined_call_operand.hbm [shape: f32[8,64], index: 0, kind: input, shape index: {}]
  %s1 = inlined_call_operand.hbm [shape: bf16[64,1024], index: 1, kind: input, shape index: {}]
  %s2 = inlined_call_operand.hbm [shape: f32[1,1024], index: 2, kind: input, shape index: {}]
  %s3 = inlined_call_operand.hbm [shape: bf16[1024,1024], index: 3, kind: input, shape index: {}]
  %s4 = inlined_call_operand.hbm [shape: f32[1,1024], index: 4, kind: input, shape index: {}]
  %s5 = inlined_call_operand.hbm [shape: bf16[1024,256], index: 5, kind: input, shape index: {}]
  %s6 = inlined_call_operand.hbm [shape: f32[1,256], index: 6, kind: input, shape index: {}]
  %s7 = inlined_call_operand.vmem [shape: f32[128,10], index: 7, kind: input, shape index: {}]
  %s8 = inlined_call_operand.hbm [shape: f32[1,10], index: 8, kind: input, shape index: {}]
  %s9 = inlined_call_operand.hbm [shape: f32[4,8,128], index: 9, kind: input, shape index: {}]
  %s10 = inlined_call_operand.hbm [shape: f32[8,10], index: 10, kind: output, shape index: {}]
  %s11 = sld [smem:[#allocation0]]
  $region86: #{tpu_custom_call.1} parent=0
    _
  %s13 = ssub.s32 1, %s11
  %s14 = scalar_select 0, %s13, %s11
  $region1: #{tpu_custom_call.1} parent=0
    #allocation2 [shape = 'u8[4096]{0}', space=vmem, size = 0x1000, scoped, tag = 'input window, operand 0, single buffered']
    #allocation3 [shape = 's32[1]{0}', space=sflag, size = 0x4, scoped, tag = 'scoped memory for tpu_custom_call.1']
    #allocation4 [shape = 's32[1]{0}', space=sflag, size = 0x4, scoped, tag = 'scoped memory for tpu_custom_call.1']
    #allocation5 [shape = 'u8[131072]{0}', space=vmem, size = 0x20000, scoped, tag = 'input window, operand 1, single buffered']
    #allocation6 [shape = 's32[1]{0}', space=sflag, size = 0x4, scoped, tag = 'scoped memory for tpu_custom_call.1']
    #allocation7 [shape = 'u8[4096]{0}', space=vmem, size = 0x1000, scoped, tag = 'input window, operand 2, single buffered']
    #allocation8 [shape = 'u8[2097152]{0}', space=vmem, size = 0x200000, scoped, tag = 'input window, operand 3, single buffered']
    #allocation9 [shape = 's32[1]{0}', space=sflag, size = 0x4, scoped, tag = 'scoped memory for tpu_custom_call.1']
    #allocation10 [shape = 'u8[4096]{0}', space=vmem, size = 0x1000, scoped, tag = 'input window, operand 4, single buffered']
    #allocation11 [shape = 'u8[524288]{0}', space=vmem, size = 0x80000, scoped, tag = 'input window, operand 5, single buffered']
    #allocation12 [shape = 's32[1]{0}', space=sflag, size = 0x4, scoped, tag = 'scoped memory for tpu_custom_call.1']
    #allocation13 [shape = 'u8[1024]{0}', space=vmem, size = 0x400, scoped, tag = 'input window, operand 6, single buffered']
    #allocation14 [shape = 'u8[512]{0}', space=vmem, size = 0x400, scoped, tag = 'input window, operand 8, single buffered']
    #allocation15 [shape = 's32[1]{0}', space=sflag, size = 0x4, scoped, tag = 'scoped memory for tpu_custom_call.1']
    #allocation16 [shape = 'u8[16384]{0}', space=vmem, size = 0x4000, scoped, tag = 'input window, operand 9, single buffered']
    #allocation17 [shape = 'u8[4096]{0}', space=vmem, size = 0x1000, scoped, tag = 'output window, operand 0, single buffered']
    %15 = vsyncpa [#allocation3], 0
    %16 = vsyncpa [#allocation6], 0
    %17 = vsyncpa [#allocation9], 0
    %18 = vsyncpa [#allocation12], 0
    %19 = vsyncpa [#allocation15], 0
    %20 = vsyncpa [#allocation4], 0
    // Predicated region
    $region2: #{tpu_custom_call.1} parent=1 // pred_check
      _
    $region3: #{tpu_custom_call.1} parent=1 // pred_check_branch
      %22 = sbr.rel (0) target = $region5
    $region4: #{tpu_custom_call.1} parent=1 // pred_region
      %24 = vsyncadd [#allocation3], 0
      %s26 = sshll.u32 %s0, 4
      %s27 = int_to_ptr.hbm [resolvable:$true] %s26
      %s28 = sshll.u32 [#allocation2], 4
      %s29 = int_to_ptr.vmem [resolvable:$true] %s28
      %31 = dma.hbm_to_vmem [thread:$0]  %s27, 128, %s29, [#allocation3]
    $region5: #{tpu_custom_call.1} parent=1 // pred_fallthru
      _
    // Predicated region
    $region6: #{tpu_custom_call.1} parent=1 // pred_check
      _
    $region7: #{tpu_custom_call.1} parent=1 // pred_check_branch
      %33 = sbr.rel (0) target = $region9
    $region8: #{tpu_custom_call.1} parent=1 // pred_region
      %35 = vsyncadd [#allocation6], 0
      %s36 = sshll.u32 %s1, 4
      %s37 = int_to_ptr.hbm [resolvable:$true] %s36
      %s38 = sshll.u32 [#allocation5], 4
      %s39 = int_to_ptr.vmem [resolvable:$true] %s38
      %44 = dma.hbm_to_vmem [thread:$0]  %s37, 4096, %s39, [#allocation6], 512, 512, 32
    $region9: #{tpu_custom_call.1} parent=1 // pred_fallthru
      _
    // Predicated region
    $region10: #{tpu_custom_call.1} parent=1 // pred_check
      _
    $region11: #{tpu_custom_call.1} parent=1 // pred_check_branch
      %46 = sbr.rel (0) target = $region13
    $region12: #{tpu_custom_call.1} parent=1 // pred_region
      %48 = vsyncadd [#allocation6], 0
      %s50 = sshll.u32 %s2, 4
      %s51 = int_to_ptr.hbm [resolvable:$true] %s50
      %s52 = sshll.u32 [#allocation7], 4
      %s53 = int_to_ptr.vmem [resolvable:$true] %s52
      %55 = dma.hbm_to_vmem [thread:$0]  %s51, 128, %s53, [#allocation6]
    $region13: #{tpu_custom_call.1} parent=1 // pred_fallthru
      _
    // Predicated region
    $region14: #{tpu_custom_call.1} parent=1 // pred_check
      _
    $region15: #{tpu_custom_call.1} parent=1 // pred_check_branch
      %57 = sbr.rel (0) target = $region17
    $region16: #{tpu_custom_call.1} parent=1 // pred_region
      %59 = vsyncadd [#allocation9], 0
      %s60 = sshll.u32 %s3, 4
      %s61 = int_to_ptr.hbm [resolvable:$true] %s60
      %s62 = sshll.u32 [#allocation8], 4
      %s63 = int_to_ptr.vmem [resolvable:$true] %s62
      %68 = dma.hbm_to_vmem [thread:$0]  %s61, 65536, %s63, [#allocation9], 512, 512, 32
    $region17: #{tpu_custom_call.1} parent=1 // pred_fallthru
      _
    // Predicated region
    $region18: #{tpu_custom_call.1} parent=1 // pred_check
      _
    $region19: #{tpu_custom_call.1} parent=1 // pred_check_branch
      %70 = sbr.rel (0) target = $region21
    $region20: #{tpu_custom_call.1} parent=1 // pred_region
      %72 = vsyncadd [#allocation9], 0
      %s74 = sshll.u32 %s4, 4
      %s75 = int_to_ptr.hbm [resolvable:$true] %s74
      %s76 = sshll.u32 [#allocation10], 4
      %s77 = int_to_ptr.vmem [resolvable:$true] %s76
      %79 = dma.hbm_to_vmem [thread:$0]  %s75, 128, %s77, [#allocation9]
    $region21: #{tpu_custom_call.1} parent=1 // pred_fallthru
      _
    // Predicated region
    $region22: #{tpu_custom_call.1} parent=1 // pred_check
      _
    $region23: #{tpu_custom_call.1} parent=1 // pred_check_branch
      %81 = sbr.rel (0) target = $region25
    $region24: #{tpu_custom_call.1} parent=1 // pred_region
      %83 = vsyncadd [#allocation12], 0
      %s84 = sshll.u32 %s5, 4
      %s85 = int_to_ptr.hbm [resolvable:$true] %s84
      %s86 = sshll.u32 [#allocation11], 4
      %s87 = int_to_ptr.vmem [resolvable:$true] %s86
      %92 = dma.hbm_to_vmem [thread:$0]  %s85, 16384, %s87, [#allocation12], 128, 128, 8
    $region25: #{tpu_custom_call.1} parent=1 // pred_fallthru
      _
    // Predicated region
    $region26: #{tpu_custom_call.1} parent=1 // pred_check
      _
    $region27: #{tpu_custom_call.1} parent=1 // pred_check_branch
      %94 = sbr.rel (0) target = $region29
    $region28: #{tpu_custom_call.1} parent=1 // pred_region
      %96 = vsyncadd [#allocation12], 0
      %s98 = sshll.u32 %s6, 4
      %s99 = int_to_ptr.hbm [resolvable:$true] %s98
      %s100 = sshll.u32 [#allocation13], 4
      %s101 = int_to_ptr.vmem [resolvable:$true] %s100
      %103 = dma.hbm_to_vmem [thread:$0]  %s99, 32, %s101, [#allocation12]
    $region29: #{tpu_custom_call.1} parent=1 // pred_fallthru
      _
    // Predicated region
    $region30: #{tpu_custom_call.1} parent=1 // pred_check
      _
    $region31: #{tpu_custom_call.1} parent=1 // pred_check_branch
      %105 = sbr.rel (0) target = $region33
    $region32: #{tpu_custom_call.1} parent=1 // pred_region
      _
    $region33: #{tpu_custom_call.1} parent=1 // pred_fallthru
      _
    // Predicated region
    $region34: #{tpu_custom_call.1} parent=1 // pred_check
      _
    $region35: #{tpu_custom_call.1} parent=1 // pred_check_branch
      %107 = sbr.rel (0) target = $region37
    $region36: #{tpu_custom_call.1} parent=1 // pred_region
      %109 = vsyncadd [#allocation15], 0
      %s111 = sshll.u32 %s8, 4
      %s112 = int_to_ptr.hbm [resolvable:$true] %s111
      %s113 = sshll.u32 [#allocation14], 4
      %s114 = int_to_ptr.vmem [resolvable:$true] %s113
      %116 = dma.hbm_to_vmem [thread:$0]  %s112, 16, %s114, [#allocation15]
    $region37: #{tpu_custom_call.1} parent=1 // pred_fallthru
      _
    // Predicated region
    $region38: #{tpu_custom_call.1} parent=1 // pred_check
      _
    $region39: #{tpu_custom_call.1} parent=1 // pred_check_branch
      %118 = sbr.rel (0) target = $region41
    $region40: #{tpu_custom_call.1} parent=1 // pred_region
      %120 = vsyncadd [#allocation15], 0
      %s121 = sshll.u32 %s9, 4
      %s122 = int_to_ptr.hbm [resolvable:$true] %s121
      %s123 = sshll.u32 [#allocation16], 4
      %s124 = int_to_ptr.vmem [resolvable:$true] %s123
      %129 = dma.hbm_to_vmem [thread:$0]  %s122, 512, %s124, [#allocation15], 128, 128, 8
    $region41: #{tpu_custom_call.1} parent=1 // pred_fallthru
      _
    // Predicated region
    $region42: #{tpu_custom_call.1} parent=1 // pred_check
      _
    $region43: #{tpu_custom_call.1} parent=1 // pred_check_branch
      %131 = sbr.rel (0) target = $region45
    $region44: #{tpu_custom_call.1} parent=1 // pred_region
      %133 = dma.done [#allocation3], 128
    $region45: #{tpu_custom_call.1} parent=1 // pred_fallthru
      _
    // Predicated region
    $region46: #{tpu_custom_call.1} parent=1 // pred_check
      _
    $region47: #{tpu_custom_call.1} parent=1 // pred_check_branch
      %135 = sbr.rel (0) target = $region49
    $region48: #{tpu_custom_call.1} parent=1 // pred_region
      %137 = dma.done [#allocation6], 4096
    $region49: #{tpu_custom_call.1} parent=1 // pred_fallthru
      _
    // Predicated region
    $region50: #{tpu_custom_call.1} parent=1 // pred_check
      _
    $region51: #{tpu_custom_call.1} parent=1 // pred_check_branch
      %139 = sbr.rel (0) target = $region53
    $region52: #{tpu_custom_call.1} parent=1 // pred_region
      %141 = dma.done [#allocation6], 128
    $region53: #{tpu_custom_call.1} parent=1 // pred_fallthru
      _
    // Predicated region
    $region54: #{tpu_custom_call.1} parent=1 // pred_check
      _
    $region55: #{tpu_custom_call.1} parent=1 // pred_check_branch
      %143 = sbr.rel (0) target = $region57
    $region56: #{tpu_custom_call.1} parent=1 // pred_region
      %145 = dma.done [#allocation9], 65536
    $region57: #{tpu_custom_call.1} parent=1 // pred_fallthru
      _
    // Predicated region
    $region58: #{tpu_custom_call.1} parent=1 // pred_check
      _
    $region59: #{tpu_custom_call.1} parent=1 // pred_check_branch
      %147 = sbr.rel (0) target = $region61
    $region60: #{tpu_custom_call.1} parent=1 // pred_region
      %149 = dma.done [#allocation9], 128
    $region61: #{tpu_custom_call.1} parent=1 // pred_fallthru
      _
    // Predicated region
    $region62: #{tpu_custom_call.1} parent=1 // pred_check
      _
    $region63: #{tpu_custom_call.1} parent=1 // pred_check_branch
      %151 = sbr.rel (0) target = $region65
    $region64: #{tpu_custom_call.1} parent=1 // pred_region
      %153 = dma.done [#allocation12], 16384
    $region65: #{tpu_custom_call.1} parent=1 // pred_fallthru
      _
    // Predicated region
    $region66: #{tpu_custom_call.1} parent=1 // pred_check
      _
    $region67: #{tpu_custom_call.1} parent=1 // pred_check_branch
      %155 = sbr.rel (0) target = $region69
    $region68: #{tpu_custom_call.1} parent=1 // pred_region
      %157 = dma.done [#allocation12], 32
    $region69: #{tpu_custom_call.1} parent=1 // pred_fallthru
      _
    // Predicated region
    $region70: #{tpu_custom_call.1} parent=1 // pred_check
      _
    $region71: #{tpu_custom_call.1} parent=1 // pred_check_branch
      %159 = sbr.rel (0) target = $region73
    $region72: #{tpu_custom_call.1} parent=1 // pred_region
      %161 = dma.done [#allocation15], 16
    $region73: #{tpu_custom_call.1} parent=1 // pred_fallthru
      _
    // Predicated region
    $region74: #{tpu_custom_call.1} parent=1 // pred_check
      _
    $region75: #{tpu_custom_call.1} parent=1 // pred_check_branch
      %163 = sbr.rel (0) target = $region77
    $region76: #{tpu_custom_call.1} parent=1 // pred_region
      %165 = dma.done [#allocation15], 512
    $region77: #{tpu_custom_call.1} parent=1 // pred_fallthru
      _
    %v167 = vld [vmem:[#allocation2] sm:$0xff]
    %v168 = vpack.c.bf16 %v167, %v167
    %v169 = vld [vmem:[#allocation5] sm:$0xff]
    %v170 = vld [vmem:[#allocation5 + $0x8] sm:$0xff]
    %v171 = vld [vmem:[#allocation5 + $0x10] sm:$0xff]
    %v172 = vld [vmem:[#allocation5 + $0x18] sm:$0xff]
    %v173 = vld [vmem:[#allocation5 + $0x20] sm:$0xff]
    %v174 = vld [vmem:[#allocation5 + $0x28] sm:$0xff]
    %v175 = vld [vmem:[#allocation5 + $0x30] sm:$0xff]
    %v176 = vld [vmem:[#allocation5 + $0x38] sm:$0xff]
    %v177 = vld [vmem:[#allocation5 + $0x40] sm:$0xff]
    %v178 = vld [vmem:[#allocation5 + $0x48] sm:$0xff]
    %v179 = vld [vmem:[#allocation5 + $0x50] sm:$0xff]
    %v180 = vld [vmem:[#allocation5 + $0x58] sm:$0xff]
    %v181 = vld [vmem:[#allocation5 + $0x60] sm:$0xff]
    %v182 = vld [vmem:[#allocation5 + $0x68] sm:$0xff]
    %v183 = vld [vmem:[#allocation5 + $0x70] sm:$0xff]
    %v184 = vld [vmem:[#allocation5 + $0x78] sm:$0xff]
    %v185 = vld [vmem:[#allocation5 + $0x80] sm:$0xff]
    %v186 = vld [vmem:[#allocation5 + $0x88] sm:$0xff]
    %v187 = vld [vmem:[#allocation5 + $0x90] sm:$0xff]
    %v188 = vld [vmem:[#allocation5 + $0x98] sm:$0xff]
    %v189 = vld [vmem:[#allocation5 + $0xa0] sm:$0xff]
    %v190 = vld [vmem:[#allocation5 + $0xa8] sm:$0xff]
    %v191 = vld [vmem:[#allocation5 + $0xb0] sm:$0xff]
    %v192 = vld [vmem:[#allocation5 + $0xb8] sm:$0xff]
    %v193 = vld [vmem:[#allocation5 + $0xc0] sm:$0xff]
    %v194 = vld [vmem:[#allocation5 + $0xc8] sm:$0xff]
    %v195 = vld [vmem:[#allocation5 + $0xd0] sm:$0xff]
    %v196 = vld [vmem:[#allocation5 + $0xd8] sm:$0xff]
    %v197 = vld [vmem:[#allocation5 + $0xe0] sm:$0xff]
    %v198 = vld [vmem:[#allocation5 + $0xe8] sm:$0xff]
    %v199 = vld [vmem:[#allocation5 + $0xf0] sm:$0xff]
    %v200 = vld [vmem:[#allocation5 + $0xf8] sm:$0xff]
    %v201 = vld [vmem:[#allocation7] sm:$0xff]
    %v203 = vperm.slane %v201, 0
    %v204 = vperm.slane %v201, 1
    %v205 = vperm.slane %v201, 2
    %v206 = vperm.slane %v201, 3
    %v207 = vperm.slane %v201, 4
    %v208 = vperm.slane %v201, 5
    %v209 = vperm.slane %v201, 6
    %v210 = vperm.slane %v201, 7
    %v251 = vunpack.c.l.b16 %v169
    %v252 = vunpack.c.h.b16 %v169
    %v253 = vunpack.c.l.b16 %v170
    %v254 = vunpack.c.h.b16 %v170
    %v255 = vunpack.c.l.b16 %v171
    %v256 = vunpack.c.h.b16 %v171
    %v257 = vunpack.c.l.b16 %v172
    %v258 = vunpack.c.h.b16 %v172
    %v259 = vunpack.c.l.b16 %v173
    %v260 = vunpack.c.h.b16 %v173
    %v261 = vunpack.c.l.b16 %v174
    %v262 = vunpack.c.h.b16 %v174
    %v263 = vunpack.c.l.b16 %v175
    %v264 = vunpack.c.h.b16 %v175
    %v265 = vunpack.c.l.b16 %v176
    %v266 = vunpack.c.h.b16 %v176
    %v267 = vunpack.c.l.b16 %v177
    %v268 = vunpack.c.h.b16 %v177
    %v269 = vunpack.c.l.b16 %v178
    %v270 = vunpack.c.h.b16 %v178
    %v271 = vunpack.c.l.b16 %v179
    %v272 = vunpack.c.h.b16 %v179
    %v273 = vunpack.c.l.b16 %v180
    %v274 = vunpack.c.h.b16 %v180
    %v275 = vunpack.c.l.b16 %v181
    %v276 = vunpack.c.h.b16 %v181
    %v277 = vunpack.c.l.b16 %v182
    %v278 = vunpack.c.h.b16 %v182
    %v279 = vunpack.c.l.b16 %v183
    %v280 = vunpack.c.h.b16 %v183
    %v281 = vunpack.c.l.b16 %v184
    %v282 = vunpack.c.h.b16 %v184
    %v283 = vunpack.c.l.b16 %v185
    %v284 = vunpack.c.h.b16 %v185
    %v285 = vunpack.c.l.b16 %v186
    %v286 = vunpack.c.h.b16 %v186
    %v287 = vunpack.c.l.b16 %v187
    %v288 = vunpack.c.h.b16 %v187
    %v289 = vunpack.c.l.b16 %v188
    %v290 = vunpack.c.h.b16 %v188
    %v291 = vunpack.c.l.b16 %v189
    %v292 = vunpack.c.h.b16 %v189
    %v293 = vunpack.c.l.b16 %v190
    %v294 = vunpack.c.h.b16 %v190
    %v295 = vunpack.c.l.b16 %v191
    %v296 = vunpack.c.h.b16 %v191
    %v297 = vunpack.c.l.b16 %v192
    %v298 = vunpack.c.h.b16 %v192
    %v299 = vunpack.c.l.b16 %v193
    %v300 = vunpack.c.h.b16 %v193
    %v301 = vunpack.c.l.b16 %v194
    %v302 = vunpack.c.h.b16 %v194
    %v303 = vunpack.c.l.b16 %v195
    %v304 = vunpack.c.h.b16 %v195
    %v305 = vunpack.c.l.b16 %v196
    %v306 = vunpack.c.h.b16 %v196
    %v307 = vunpack.c.l.b16 %v197
    %v308 = vunpack.c.h.b16 %v197
    %v309 = vunpack.c.l.b16 %v198
    %v310 = vunpack.c.h.b16 %v198
    %v311 = vunpack.c.l.b16 %v199
    %v312 = vunpack.c.h.b16 %v199
    %v313 = vunpack.c.l.b16 %v200
    %v314 = vunpack.c.h.b16 %v200
    %v315 = vpack.c.b16 %v259, %v251
    %v316 = vpack.c.b16 %v260, %v252
    %v317 = vpack.c.b16 %v261, %v253
    %v318 = vpack.c.b16 %v262, %v254
    %v319 = vpack.c.b16 %v263, %v255
    %v320 = vpack.c.b16 %v264, %v256
    %v321 = vpack.c.b16 %v265, %v257
    %v322 = vpack.c.b16 %v266, %v258
    %v323 = vpack.c.b16 %v275, %v267
    %v324 = vpack.c.b16 %v276, %v268
    %v325 = vpack.c.b16 %v277, %v269
    %v326 = vpack.c.b16 %v278, %v270
    %v327 = vpack.c.b16 %v279, %v271
    %v328 = vpack.c.b16 %v280, %v272
    %v329 = vpack.c.b16 %v281, %v273
    %v330 = vpack.c.b16 %v282, %v274
    %v331 = vpack.c.b16 %v291, %v283
    %v332 = vpack.c.b16 %v292, %v284
    %v333 = vpack.c.b16 %v293, %v285
    %v334 = vpack.c.b16 %v294, %v286
    %v335 = vpack.c.b16 %v295, %v287
    %v336 = vpack.c.b16 %v296, %v288
    %v337 = vpack.c.b16 %v297, %v289
    %v338 = vpack.c.b16 %v298, %v290
    %v339 = vpack.c.b16 %v307, %v299
    %v340 = vpack.c.b16 %v308, %v300
    %v341 = vpack.c.b16 %v309, %v301
    %v342 = vpack.c.b16 %v310, %v302
    %v343 = vpack.c.b16 %v311, %v303
    %v344 = vpack.c.b16 %v312, %v304
    %v345 = vpack.c.b16 %v313, %v305
    %v346 = vpack.c.b16 %v314, %v306
    %vm379 = vcmask 523264
    %v381 = vsel %vm379, %v168, 0
    %383 = vmatpush.bf16.msra.mxu0 0
    %384 = vmatpush.bf16.msra.mxu0 0
    %385 = vmatpush.bf16.msra.mxu0 0
    %386 = vmatpush.bf16.msra.mxu0 0
    %387 = vmatpush.bf16.msra.mxu0 %v339
    %388 = vmatpush.bf16.msra.mxu0 %v331
    %389 = vmatpush.bf16.msra.mxu0 %v323
    %390 = vmatpush.bf16.msra.mxu0 %v315
    %391 = vmatmul.bf16.gmra.mxu0 %v381
    %v392 = vpop.f32.mrf.mxu0
    %v393 = vadd.f32 %v203, %v392
    %v394 = vpop.f32.mrf.mxu0
    %395 = vdwg.mxu0
    %396 = vmatpush.bf16.msra.mxu0 0
    %397 = vmatpush.bf16.msra.mxu0 0
    %398 = vmatpush.bf16.msra.mxu0 0
    %399 = vmatpush.bf16.msra.mxu0 0
    %400 = vmatpush.bf16.msra.mxu0 %v340
    %401 = vmatpush.bf16.msra.mxu0 %v332
    %402 = vmatpush.bf16.msra.mxu0 %v324
    %403 = vmatpush.bf16.msra.mxu0 %v316
    %404 = vmatmul.bf16.gmra.mxu0 %v381
    %v405 = vpop.f32.mrf.mxu0
    %v406 = vadd.f32 %v204, %v405
    %v407 = vpop.f32.mrf.mxu0
    %408 = vdwg.mxu0
    %409 = vmatpush.bf16.msra.mxu0 0
    %410 = vmatpush.bf16.msra.mxu0 0
    %411 = vmatpush.bf16.msra.mxu0 0
    %412 = vmatpush.bf16.msra.mxu0 0
    %413 = vmatpush.bf16.msra.mxu0 %v341
    %414 = vmatpush.bf16.msra.mxu0 %v333
    %415 = vmatpush.bf16.msra.mxu0 %v325
    %416 = vmatpush.bf16.msra.mxu0 %v317
    %417 = vmatmul.bf16.gmra.mxu0 %v381
    %v418 = vpop.f32.mrf.mxu0
    %v419 = vadd.f32 %v205, %v418
    %v420 = vpop.f32.mrf.mxu0
    %421 = vdwg.mxu0
    %422 = vmatpush.bf16.msra.mxu0 0
    %423 = vmatpush.bf16.msra.mxu0 0
    %424 = vmatpush.bf16.msra.mxu0 0
    %425 = vmatpush.bf16.msra.mxu0 0
    %426 = vmatpush.bf16.msra.mxu0 %v342
    %427 = vmatpush.bf16.msra.mxu0 %v334
    %428 = vmatpush.bf16.msra.mxu0 %v326
    %429 = vmatpush.bf16.msra.mxu0 %v318
    %430 = vmatmul.bf16.gmra.mxu0 %v381
    %v431 = vpop.f32.mrf.mxu0
    %v432 = vadd.f32 %v206, %v431
    %v433 = vpop.f32.mrf.mxu0
    %434 = vdwg.mxu0
    %435 = vmatpush.bf16.msra.mxu0 0
    %436 = vmatpush.bf16.msra.mxu0 0
    %437 = vmatpush.bf16.msra.mxu0 0
    %438 = vmatpush.bf16.msra.mxu0 0
    %439 = vmatpush.bf16.msra.mxu0 %v343
    %440 = vmatpush.bf16.msra.mxu0 %v335
    %441 = vmatpush.bf16.msra.mxu0 %v327
    %442 = vmatpush.bf16.msra.mxu0 %v319
    %443 = vmatmul.bf16.gmra.mxu0 %v381
    %v444 = vpop.f32.mrf.mxu0
    %v445 = vadd.f32 %v207, %v444
    %v446 = vpop.f32.mrf.mxu0
    %447 = vdwg.mxu0
    %448 = vmatpush.bf16.msra.mxu0 0
    %449 = vmatpush.bf16.msra.mxu0 0
    %450 = vmatpush.bf16.msra.mxu0 0
    %451 = vmatpush.bf16.msra.mxu0 0
    %452 = vmatpush.bf16.msra.mxu0 %v344
    %453 = vmatpush.bf16.msra.mxu0 %v336
    %454 = vmatpush.bf16.msra.mxu0 %v328
    %455 = vmatpush.bf16.msra.mxu0 %v320
    %456 = vmatmul.bf16.gmra.mxu0 %v381
    %v457 = vpop.f32.mrf.mxu0
    %v458 = vadd.f32 %v208, %v457
    %v459 = vpop.f32.mrf.mxu0
    %460 = vdwg.mxu0
    %461 = vmatpush.bf16.msra.mxu0 0
    %462 = vmatpush.bf16.msra.mxu0 0
    %463 = vmatpush.bf16.msra.mxu0 0
    %464 = vmatpush.bf16.msra.mxu0 0
    %465 = vmatpush.bf16.msra.mxu0 %v345
    %466 = vmatpush.bf16.msra.mxu0 %v337
    %467 = vmatpush.bf16.msra.mxu0 %v329
    %468 = vmatpush.bf16.msra.mxu0 %v321
    %469 = vmatmul.bf16.gmra.mxu0 %v381
    %v470 = vpop.f32.mrf.mxu0
    %v471 = vadd.f32 %v209, %v470
    %v472 = vpop.f32.mrf.mxu0
    %473 = vdwg.mxu0
    %474 = vmatpush.bf16.msra.mxu0 0
    %475 = vmatpush.bf16.msra.mxu0 0
    %476 = vmatpush.bf16.msra.mxu0 0
    %477 = vmatpush.bf16.msra.mxu0 0
    %478 = vmatpush.bf16.msra.mxu0 %v346
    %479 = vmatpush.bf16.msra.mxu0 %v338
    %480 = vmatpush.bf16.msra.mxu0 %v330
    %481 = vmatpush.bf16.msra.mxu0 %v322
    %482 = vmatmul.bf16.gmra.mxu0 %v381
    %v483 = vpop.f32.mrf.mxu0
    %v484 = vadd.f32 %v210, %v483
    %v485 = vpop.f32.mrf.mxu0
    %486 = vdwg.mxu0
    %v487 = vmax.f32 %v393, 0.0
    %v488 = vmax.f32 %v406, 0.0
    %v489 = vmax.f32 %v419, 0.0
    %v490 = vmax.f32 %v432, 0.0
    %v491 = vmax.f32 %v445, 0.0
    %v492 = vmax.f32 %v458, 0.0
    %v493 = vmax.f32 %v471, 0.0
    %v494 = vmax.f32 %v484, 0.0
    %v495 = vpack.c.bf16 %v487, %v487
    %v496 = vpack.c.bf16 %v488, %v488
    %v497 = vpack.c.bf16 %v489, %v489
    %v498 = vpack.c.bf16 %v490, %v490
    %v499 = vpack.c.bf16 %v491, %v491
    %v500 = vpack.c.bf16 %v492, %v492
    %v501 = vpack.c.bf16 %v493, %v493
    %v502 = vpack.c.bf16 %v494, %v494
    %v503 = vld [vmem:[#allocation8] sm:$0xff]
    %v504 = vld [vmem:[#allocation8 + $0x8] sm:$0xff]
    %v505 = vld [vmem:[#allocation8 + $0x10] sm:$0xff]
    %v506 = vld [vmem:[#allocation8 + $0x18] sm:$0xff]
    %v507 = vld [vmem:[#allocation8 + $0x20] sm:$0xff]
    %v508 = vld [vmem:[#allocation8 + $0x28] sm:$0xff]
    %v509 = vld [vmem:[#allocation8 + $0x30] sm:$0xff]
    %v510 = vld [vmem:[#allocation8 + $0x38] sm:$0xff]
    %v511 = vld [vmem:[#allocation8 + $0x40] sm:$0xff]
    %v512 = vld [vmem:[#allocation8 + $0x48] sm:$0xff]
    %v513 = vld [vmem:[#allocation8 + $0x50] sm:$0xff]
    %v514 = vld [vmem:[#allocation8 + $0x58] sm:$0xff]
    %v515 = vld [vmem:[#allocation8 + $0x60] sm:$0xff]
    %v516 = vld [vmem:[#allocation8 + $0x68] sm:$0xff]
    %v517 = vld [vmem:[#allocation8 + $0x70] sm:$0xff]
    %v518 = vld [vmem:[#allocation8 + $0x78] sm:$0xff]
    %v519 = vld [vmem:[#allocation8 + $0x80] sm:$0xff]
    %v520 = vld [vmem:[#allocation8 + $0x88] sm:$0xff]
    %v521 = vld [vmem:[#allocation8 + $0x90] sm:$0xff]
    %v522 = vld [vmem:[#allocation8 + $0x98] sm:$0xff]
    %v523 = vld [vmem:[#allocation8 + $0xa0] sm:$0xff]
    %v524 = vld [vmem:[#allocation8 + $0xa8] sm:$0xff]
    %v525 = vld [vmem:[#allocation8 + $0xb0] sm:$0xff]
    %v526 = vld [vmem:[#allocation8 + $0xb8] sm:$0xff]
    %v527 = vld [vmem:[#allocation8 + $0xc0] sm:$0xff]
    %v528 = vld [vmem:[#allocation8 + $0xc8] sm:$0xff]
    %v529 = vld [vmem:[#allocation8 + $0xd0] sm:$0xff]
    %v530 = vld [vmem:[#allocation8 + $0xd8] sm:$0xff]
    %v531 = vld [vmem:[#allocation8 + $0xe0] sm:$0xff]
    %v532 = vld [vmem:[#allocation8 + $0xe8] sm:$0xff]
    %v533 = vld [vmem:[#allocation8 + $0xf0] sm:$0xff]
    %v534 = vld [vmem:[#allocation8 + $0xf8] sm:$0xff]
    %v535 = vld [vmem:[#allocation8 + $0x100] sm:$0xff]
    %v536 = vld [vmem:[#allocation8 + $0x108] sm:$0xff]
    %v537 = vld [vmem:[#allocation8 + $0x110] sm:$0xff]
    %v538 = vld [vmem:[#allocation8 + $0x118] sm:$0xff]
    %v539 = vld [vmem:[#allocation8 + $0x120] sm:$0xff]
    %v540 = vld [vmem:[#allocation8 + $0x128] sm:$0xff]
    %v541 = vld [vmem:[#allocation8 + $0x130] sm:$0xff]
    %v542 = vld [vmem:[#allocation8 + $0x138] sm:$0xff]
    %v543 = vld [vmem:[#allocation8 + $0x140] sm:$0xff]
    %v544 = vld [vmem:[#allocation8 + $0x148] sm:$0xff]
    %v545 = vld [vmem:[#allocation8 + $0x150] sm:$0xff]
    %v546 = vld [vmem:[#allocation8 + $0x158] sm:$0xff]
    %v547 = vld [vmem:[#allocation8 + $0x160] sm:$0xff]
    %v548 = vld [vmem:[#allocation8 + $0x168] sm:$0xff]
    %v549 = vld [vmem:[#allocation8 + $0x170] sm:$0xff]
    %v550 = vld [vmem:[#allocation8 + $0x178] sm:$0xff]
    %v551 = vld [vmem:[#allocation8 + $0x180] sm:$0xff]
    %v552 = vld [vmem:[#allocation8 + $0x188] sm:$0xff]
    %v553 = vld [vmem:[#allocation8 + $0x190] sm:$0xff]
    %v554 = vld [vmem:[#allocation8 + $0x198] sm:$0xff]
    %v555 = vld [vmem:[#allocation8 + $0x1a0] sm:$0xff]
    %v556 = vld [vmem:[#allocation8 + $0x1a8] sm:$0xff]
    %v557 = vld [vmem:[#allocation8 + $0x1b0] sm:$0xff]
    %v558 = vld [vmem:[#allocation8 + $0x1b8] sm:$0xff]
    %v559 = vld [vmem:[#allocation8 + $0x1c0] sm:$0xff]
    %v560 = vld [vmem:[#allocation8 + $0x1c8] sm:$0xff]
    %v561 = vld [vmem:[#allocation8 + $0x1d0] sm:$0xff]
    %v562 = vld [vmem:[#allocation8 + $0x1d8] sm:$0xff]
    %v563 = vld [vmem:[#allocation8 + $0x1e0] sm:$0xff]
    %v564 = vld [vmem:[#allocation8 + $0x1e8] sm:$0xff]
    %v565 = vld [vmem:[#allocation8 + $0x1f0] sm:$0xff]
    %v566 = vld [vmem:[#allocation8 + $0x1f8] sm:$0xff]
    %v567 = vld [vmem:[#allocation8 + $0x200] sm:$0xff]
    %v568 = vld [vmem:[#allocation8 + $0x208] sm:$0xff]
    %v569 = vld [vmem:[#allocation8 + $0x210] sm:$0xff]
    %v570 = vld [vmem:[#allocation8 + $0x218] sm:$0xff]
    %v571 = vld [vmem:[#allocation8 + $0x220] sm:$0xff]
    %v572 = vld [vmem:[#allocation8 + $0x228] sm:$0xff]
    %v573 = vld [vmem:[#allocation8 + $0x230] sm:$0xff]
    %v574 = vld [vmem:[#allocation8 + $0x238] sm:$0xff]
    %v575 = vld [vmem:[#allocation8 + $0x240] sm:$0xff]
    %v576 = vld [vmem:[#allocation8 + $0x248] sm:$0xff]
    %v577 = vld [vmem:[#allocation8 + $0x250] sm:$0xff]
    %v578 = vld [vmem:[#allocation8 + $0x258] sm:$0xff]
    %v579 = vld [vmem:[#allocation8 + $0x260] sm:$0xff]
    %v580 = vld [vmem:[#allocation8 + $0x268] sm:$0xff]
    %v581 = vld [vmem:[#allocation8 + $0x270] sm:$0xff]
    %v582 = vld [vmem:[#allocation8 + $0x278] sm:$0xff]
    %v583 = vld [vmem:[#allocation8 + $0x280] sm:$0xff]
    %v584 = vld [vmem:[#allocation8 + $0x288] sm:$0xff]
    %v585 = vld [vmem:[#allocation8 + $0x290] sm:$0xff]
    %v586 = vld [vmem:[#allocation8 + $0x298] sm:$0xff]
    %v587 = vld [vmem:[#allocation8 + $0x2a0] sm:$0xff]
    %v588 = vld [vmem:[#allocation8 + $0x2a8] sm:$0xff]
    %v589 = vld [vmem:[#allocation8 + $0x2b0] sm:$0xff]
    %v590 = vld [vmem:[#allocation8 + $0x2b8] sm:$0xff]
    %v591 = vld [vmem:[#allocation8 + $0x2c0] sm:$0xff]
    %v592 = vld [vmem:[#allocation8 + $0x2c8] sm:$0xff]
    %v593 = vld [vmem:[#allocation8 + $0x2d0] sm:$0xff]
    %v594 = vld [vmem:[#allocation8 + $0x2d8] sm:$0xff]
    %v595 = vld [vmem:[#allocation8 + $0x2e0] sm:$0xff]
    %v596 = vld [vmem:[#allocation8 + $0x2e8] sm:$0xff]
    %v597 = vld [vmem:[#allocation8 + $0x2f0] sm:$0xff]
    %v598 = vld [vmem:[#allocation8 + $0x2f8] sm:$0xff]
    %v599 = vld [vmem:[#allocation8 + $0x300] sm:$0xff]
    %v600 = vld [vmem:[#allocation8 + $0x308] sm:$0xff]
    %v601 = vld [vmem:[#allocation8 + $0x310] sm:$0xff]
    %v602 = vld [vmem:[#allocation8 + $0x318] sm:$0xff]
    %v603 = vld [vmem:[#allocation8 + $0x320] sm:$0xff]
    %v604 = vld [vmem:[#allocation8 + $0x328] sm:$0xff]
    %v605 = vld [vmem:[#allocation8 + $0x330] sm:$0xff]
    %v606 = vld [vmem:[#allocation8 + $0x338] sm:$0xff]
    %v607 = vld [vmem:[#allocation8 + $0x340] sm:$0xff]
    %v608 = vld [vmem:[#allocation8 + $0x348] sm:$0xff]
    %v609 = vld [vmem:[#allocation8 + $0x350] sm:$0xff]
    %v610 = vld [vmem:[#allocation8 + $0x358] sm:$0xff]
    %v611 = vld [vmem:[#allocation8 + $0x360] sm:$0xff]
    %v612 = vld [vmem:[#allocation8 + $0x368] sm:$0xff]
    %v613 = vld [vmem:[#allocation8 + $0x370] sm:$0xff]
    %v614 = vld [vmem:[#allocation8 + $0x378] sm:$0xff]
    %v615 = vld [vmem:[#allocation8 + $0x380] sm:$0xff]
    %v616 = vld [vmem:[#allocation8 + $0x388] sm:$0xff]
    %v617 = vld [vmem:[#allocation8 + $0x390] sm:$0xff]
    %v618 = vld [vmem:[#allocation8 + $0x398] sm:$0xff]
    %v619 = vld [vmem:[#allocation8 + $0x3a0] sm:$0xff]
    %v620 = vld [vmem:[#allocation8 + $0x3a8] sm:$0xff]
    %v621 = vld [vmem:[#allocation8 + $0x3b0] sm:$0xff]
    %v622 = vld [vmem:[#allocation8 + $0x3b8] sm:$0xff]
    %v623 = vld [vmem:[#allocation8 + $0x3c0] sm:$0xff]
    %v624 = vld [vmem:[#allocation8 + $0x3c8] sm:$0xff]
    %v625 = vld [vmem:[#allocation8 + $0x3d0] sm:$0xff]
    %v626 = vld [vmem:[#allocation8 + $0x3d8] sm:$0xff]
    %v627 = vld [vmem:[#allocation8 + $0x3e0] sm:$0xff]
    %v628 = vld [vmem:[#allocation8 + $0x3e8] sm:$0xff]
    %v629 = vld [vmem:[#allocation8 + $0x3f0] sm:$0xff]
    %v630 = vld [vmem:[#allocation8 + $0x3f8] sm:$0xff]
    %v631 = vld [vmem:[#allocation8 + $0x400] sm:$0xff]
    %v632 = vld [vmem:[#allocation8 + $0x408] sm:$0xff]
    %v633 = vld [vmem:[#allocation8 + $0x410] sm:$0xff]
    %v634 = vld [vmem:[#allocation8 + $0x418] sm:$0xff]
    %v635 = vld [vmem:[#allocation8 + $0x420] sm:$0xff]
    %v636 = vld [vmem:[#allocation8 + $0x428] sm:$0xff]
    %v637 = vld [vmem:[#allocation8 + $0x430] sm:$0xff]
    %v638 = vld [vmem:[#allocation8 + $0x438] sm:$0xff]
    %v639 = vld [vmem:[#allocation8 + $0x440] sm:$0xff]
    %v640 = vld [vmem:[#allocation8 + $0x448] sm:$0xff]
    %v641 = vld [vmem:[#allocation8 + $0x450] sm:$0xff]
    %v642 = vld [vmem:[#allocation8 + $0x458] sm:$0xff]
    %v643 = vld [vmem:[#allocation8 + $0x460] sm:$0xff]
    %v644 = vld [vmem:[#allocation8 + $0x468] sm:$0xff]
    %v645 = vld [vmem:[#allocation8 + $0x470] sm:$0xff]
    %v646 = vld [vmem:[#allocation8 + $0x478] sm:$0xff]
    %v647 = vld [vmem:[#allocation8 + $0x480] sm:$0xff]
    %v648 = vld [vmem:[#allocation8 + $0x488] sm:$0xff]
    %v649 = vld [vmem:[#allocation8 + $0x490] sm:$0xff]
    %v650 = vld [vmem:[#allocation8 + $0x498] sm:$0xff]
    %v651 = vld [vmem:[#allocation8 + $0x4a0] sm:$0xff]
    %v652 = vld [vmem:[#allocation8 + $0x4a8] sm:$0xff]
    %v653 = vld [vmem:[#allocation8 + $0x4b0] sm:$0xff]
    %v654 = vld [vmem:[#allocation8 + $0x4b8] sm:$0xff]
    %v655 = vld [vmem:[#allocation8 + $0x4c0] sm:$0xff]
    %v656 = vld [vmem:[#allocation8 + $0x4c8] sm:$0xff]
    %v657 = vld [vmem:[#allocation8 + $0x4d0] sm:$0xff]
    %v658 = vld [vmem:[#allocation8 + $0x4d8] sm:$0xff]
    %v659 = vld [vmem:[#allocation8 + $0x4e0] sm:$0xff]
    %v660 = vld [vmem:[#allocation8 + $0x4e8] sm:$0xff]
    %v661 = vld [vmem:[#allocation8 + $0x4f0] sm:$0xff]
    %v662 = vld [vmem:[#allocation8 + $0x4f8] sm:$0xff]
    %v663 = vld [vmem:[#allocation8 + $0x500] sm:$0xff]
    %v664 = vld [vmem:[#allocation8 + $0x508] sm:$0xff]
    %v665 = vld [vmem:[#allocation8 + $0x510] sm:$0xff]
    %v666 = vld [vmem:[#allocation8 + $0x518] sm:$0xff]
    %v667 = vld [vmem:[#allocation8 + $0x520] sm:$0xff]
    %v668 = vld [vmem:[#allocation8 + $0x528] sm:$0xff]
    %v669 = vld [vmem:[#allocation8 + $0x530] sm:$0xff]
    %v670 = vld [vmem:[#allocation8 + $0x538] sm:$0xff]
    %v671 = vld [vmem:[#allocation8 + $0x540] sm:$0xff]
    %v672 = vld [vmem:[#allocation8 + $0x548] sm:$0xff]
    %v673 = vld [vmem:[#allocation8 + $0x550] sm:$0xff]
    %v674 = vld [vmem:[#allocation8 + $0x558] sm:$0xff]
    %v675 = vld [vmem:[#allocation8 + $0x560] sm:$0xff]
    %v676 = vld [vmem:[#allocation8 + $0x568] sm:$0xff]
    %v677 = vld [vmem:[#allocation8 + $0x570] sm:$0xff]
    %v678 = vld [vmem:[#allocation8 + $0x578] sm:$0xff]
    %v679 = vld [vmem:[#allocation8 + $0x580] sm:$0xff]
    %v680 = vld [vmem:[#allocation8 + $0x588] sm:$0xff]
    %v681 = vld [vmem:[#allocation8 + $0x590] sm:$0xff]
    %v682 = vld [vmem:[#allocation8 + $0x598] sm:$0xff]
    %v683 = vld [vmem:[#allocation8 + $0x5a0] sm:$0xff]
    %v684 = vld [vmem:[#allocation8 + $0x5a8] sm:$0xff]
    %v685 = vld [vmem:[#allocation8 + $0x5b0] sm:$0xff]
    %v686 = vld [vmem:[#allocation8 + $0x5b8] sm:$0xff]
    %v687 = vld [vmem:[#allocation8 + $0x5c0] sm:$0xff]
    %v688 = vld [vmem:[#allocation8 + $0x5c8] sm:$0xff]
    %v689 = vld [vmem:[#allocation8 + $0x5d0] sm:$0xff]
    %v690 = vld [vmem:[#allocation8 + $0x5d8] sm:$0xff]
    %v691 = vld [vmem:[#allocation8 + $0x5e0] sm:$0xff]
    %v692 = vld [vmem:[#allocation8 + $0x5e8] sm:$0xff]
    %v693 = vld [vmem:[#allocation8 + $0x5f0] sm:$0xff]
    %v694 = vld [vmem:[#allocation8 + $0x5f8] sm:$0xff]
    %v695 = vld [vmem:[#allocation8 + $0x600] sm:$0xff]
    %v696 = vld [vmem:[#allocation8 + $0x608] sm:$0xff]
    %v697 = vld [vmem:[#allocation8 + $0x610] sm:$0xff]
    %v698 = vld [vmem:[#allocation8 + $0x618] sm:$0xff]
    %v699 = vld [vmem:[#allocation8 + $0x620] sm:$0xff]
    %v700 = vld [vmem:[#allocation8 + $0x628] sm:$0xff]
    %v701 = vld [vmem:[#allocation8 + $0x630] sm:$0xff]
    %v702 = vld [vmem:[#allocation8 + $0x638] sm:$0xff]
    %v703 = vld [vmem:[#allocation8 + $0x640] sm:$0xff]
    %v704 = vld [vmem:[#allocation8 + $0x648] sm:$0xff]
    %v705 = vld [vmem:[#allocation8 + $0x650] sm:$0xff]
    %v706 = vld [vmem:[#allocation8 + $0x658] sm:$0xff]
    %v707 = vld [vmem:[#allocation8 + $0x660] sm:$0xff]
    %v708 = vld [vmem:[#allocation8 + $0x668] sm:$0xff]
    %v709 = vld [vmem:[#allocation8 + $0x670] sm:$0xff]
    %v710 = vld [vmem:[#allocation8 + $0x678] sm:$0xff]
    %v711 = vld [vmem:[#allocation8 + $0x680] sm:$0xff]
    %v712 = vld [vmem:[#allocation8 + $0x688] sm:$0xff]
    %v713 = vld [vmem:[#allocation8 + $0x690] sm:$0xff]
    %v714 = vld [vmem:[#allocation8 + $0x698] sm:$0xff]
    %v715 = vld [vmem:[#allocation8 + $0x6a0] sm:$0xff]
    %v716 = vld [vmem:[#allocation8 + $0x6a8] sm:$0xff]
    %v717 = vld [vmem:[#allocation8 + $0x6b0] sm:$0xff]
    %v718 = vld [vmem:[#allocation8 + $0x6b8] sm:$0xff]
    %v719 = vld [vmem:[#allocation8 + $0x6c0] sm:$0xff]
    %v720 = vld [vmem:[#allocation8 + $0x6c8] sm:$0xff]
    %v721 = vld [vmem:[#allocation8 + $0x6d0] sm:$0xff]
    %v722 = vld [vmem:[#allocation8 + $0x6d8] sm:$0xff]
    %v723 = vld [vmem:[#allocation8 + $0x6e0] sm:$0xff]
    %v724 = vld [vmem:[#allocation8 + $0x6e8] sm:$0xff]
    %v725 = vld [vmem:[#allocation8 + $0x6f0] sm:$0xff]
    %v726 = vld [vmem:[#allocation8 + $0x6f8] sm:$0xff]
    %v727 = vld [vmem:[#allocation8 + $0x700] sm:$0xff]
    %v728 = vld [vmem:[#allocation8 + $0x708] sm:$0xff]
    %v729 = vld [vmem:[#allocation8 + $0x710] sm:$0xff]
    %v730 = vld [vmem:[#allocation8 + $0x718] sm:$0xff]
    %v731 = vld [vmem:[#allocation8 + $0x720] sm:$0xff]
    %v732 = vld [vmem:[#allocation8 + $0x728] sm:$0xff]
    %v733 = vld [vmem:[#allocation8 + $0x730] sm:$0xff]
    %v734 = vld [vmem:[#allocation8 + $0x738] sm:$0xff]
    %v735 = vld [vmem:[#allocation8 + $0x740] sm:$0xff]
    %v736 = vld [vmem:[#allocation8 + $0x748] sm:$0xff]
    %v737 = vld [vmem:[#allocation8 + $0x750] sm:$0xff]
    %v738 = vld [vmem:[#allocation8 + $0x758] sm:$0xff]
    %v739 = vld [vmem:[#allocation8 + $0x760] sm:$0xff]
    %v740 = vld [vmem:[#allocation8 + $0x768] sm:$0xff]
    %v741 = vld [vmem:[#allocation8 + $0x770] sm:$0xff]
    %v742 = vld [vmem:[#allocation8 + $0x778] sm:$0xff]
    %v743 = vld [vmem:[#allocation8 + $0x780] sm:$0xff]
    %v744 = vld [vmem:[#allocation8 + $0x788] sm:$0xff]
    %v745 = vld [vmem:[#allocation8 + $0x790] sm:$0xff]
    %v746 = vld [vmem:[#allocation8 + $0x798] sm:$0xff]
    %v747 = vld [vmem:[#allocation8 + $0x7a0] sm:$0xff]
    %v748 = vld [vmem:[#allocation8 + $0x7a8] sm:$0xff]
    %v749 = vld [vmem:[#allocation8 + $0x7b0] sm:$0xff]
    %v750 = vld [vmem:[#allocation8 + $0x7b8] sm:$0xff]
    %v751 = vld [vmem:[#allocation8 + $0x7c0] sm:$0xff]
    %v752 = vld [vmem:[#allocation8 + $0x7c8] sm:$0xff]
    %v753 = vld [vmem:[#allocation8 + $0x7d0] sm:$0xff]
    %v754 = vld [vmem:[#allocation8 + $0x7d8] sm:$0xff]
    %v755 = vld [vmem:[#allocation8 + $0x7e0] sm:$0xff]
    %v756 = vld [vmem:[#allocation8 + $0x7e8] sm:$0xff]
    %v757 = vld [vmem:[#allocation8 + $0x7f0] sm:$0xff]
    %v758 = vld [vmem:[#allocation8 + $0x7f8] sm:$0xff]
    %v759 = vld [vmem:[#allocation8 + $0x800] sm:$0xff]
    %v760 = vld [vmem:[#allocation8 + $0x808] sm:$0xff]
    %v761 = vld [vmem:[#allocation8 + $0x810] sm:$0xff]
    %v762 = vld [vmem:[#allocation8 + $0x818] sm:$0xff]
    %v763 = vld [vmem:[#allocation8 + $0x820] sm:$0xff]
    %v764 = vld [vmem:[#allocation8 + $0x828] sm:$0xff]
    %v765 = vld [vmem:[#allocation8 + $0x830] sm:$0xff]
    %v766 = vld [vmem:[#allocation8 + $0x838] sm:$0xff]
    %v767 = vld [vmem:[#allocation8 + $0x840] sm:$0xff]
    %v768 = vld [vmem:[#allocation8 + $0x848] sm:$0xff]
    %v769 = vld [vmem:[#allocation8 + $0x850] sm:$0xff]
    %v770 = vld [vmem:[#allocation8 + $0x858] sm:$0xff]
    %v771 = vld [vmem:[#allocation8 + $0x860] sm:$0xff]
    %v772 = vld [vmem:[#allocation8 + $0x868] sm:$0xff]
    %v773 = vld [vmem:[#allocation8 + $0x870] sm:$0xff]
    %v774 = vld [vmem:[#allocation8 + $0x878] sm:$0xff]
    %v775 = vld [vmem:[#allocation8 + $0x880] sm:$0xff]
    %v776 = vld [vmem:[#allocation8 + $0x888] sm:$0xff]
    %v777 = vld [vmem:[#allocation8 + $0x890] sm:$0xff]
    %v778 = vld [vmem:[#allocation8 + $0x898] sm:$0xff]
    %v779 = vld [vmem:[#allocation8 + $0x8a0] sm:$0xff]
    %v780 = vld [vmem:[#allocation8 + $0x8a8] sm:$0xff]
    %v781 = vld [vmem:[#allocation8 + $0x8b0] sm:$0xff]
    %v782 = vld [vmem:[#allocation8 + $0x8b8] sm:$0xff]
    %v783 = vld [vmem:[#allocation8 + $0x8c0] sm:$0xff]
    %v784 = vld [vmem:[#allocation8 + $0x8c8] sm:$0xff]
    %v785 = vld [vmem:[#allocation8 + $0x8d0] sm:$0xff]
    %v786 = vld [vmem:[#allocation8 + $0x8d8] sm:$0xff]
    %v787 = vld [vmem:[#allocation8 + $0x8e0] sm:$0xff]
    %v788 = vld [vmem:[#allocation8 + $0x8e8] sm:$0xff]
    %v789 = vld [vmem:[#allocation8 + $0x8f0] sm:$0xff]
    %v790 = vld [vmem:[#allocation8 + $0x8f8] sm:$0xff]
    %v791 = vld [vmem:[#allocation8 + $0x900] sm:$0xff]
    %v792 = vld [vmem:[#allocation8 + $0x908] sm:$0xff]
    %v793 = vld [vmem:[#allocation8 + $0x910] sm:$0xff]
    %v794 = vld [vmem:[#allocation8 + $0x918] sm:$0xff]
    %v795 = vld [vmem:[#allocation8 + $0x920] sm:$0xff]
    %v796 = vld [vmem:[#allocation8 + $0x928] sm:$0xff]
    %v797 = vld [vmem:[#allocation8 + $0x930] sm:$0xff]
    %v798 = vld [vmem:[#allocation8 + $0x938] sm:$0xff]
    %v799 = vld [vmem:[#allocation8 + $0x940] sm:$0xff]
    %v800 = vld [vmem:[#allocation8 + $0x948] sm:$0xff]
    %v801 = vld [vmem:[#allocation8 + $0x950] sm:$0xff]
    %v802 = vld [vmem:[#allocation8 + $0x958] sm:$0xff]
    %v803 = vld [vmem:[#allocation8 + $0x960] sm:$0xff]
    %v804 = vld [vmem:[#allocation8 + $0x968] sm:$0xff]
    %v805 = vld [vmem:[#allocation8 + $0x970] sm:$0xff]
    %v806 = vld [vmem:[#allocation8 + $0x978] sm:$0xff]
    %v807 = vld [vmem:[#allocation8 + $0x980] sm:$0xff]
    %v808 = vld [vmem:[#allocation8 + $0x988] sm:$0xff]
    %v809 = vld [vmem:[#allocation8 + $0x990] sm:$0xff]
    %v810 = vld [vmem:[#allocation8 + $0x998] sm:$0xff]
    %v811 = vld [vmem:[#allocation8 + $0x9a0] sm:$0xff]
    %v812 = vld [vmem:[#allocation8 + $0x9a8] sm:$0xff]
    %v813 = vld [vmem:[#allocation8 + $0x9b0] sm:$0xff]
    %v814 = vld [vmem:[#allocation8 + $0x9b8] sm:$0xff]
    %v815 = vld [vmem:[#allocation8 + $0x9c0] sm:$0xff]
    %v816 = vld [vmem:[#allocation8 + $0x9c8] sm:$0xff]
    %v817 = vld [vmem:[#allocation8 + $0x9d0] sm:$0xff]
    %v818 = vld [vmem:[#allocation8 + $0x9d8] sm:$0xff]
    %v819 = vld [vmem:[#allocation8 + $0x9e0] sm:$0xff]
    %v820 = vld [vmem:[#allocation8 + $0x9e8] sm:$0xff]
    %v821 = vld [vmem:[#allocation8 + $0x9f0] sm:$0xff]
    %v822 = vld [vmem:[#allocation8 + $0x9f8] sm:$0xff]
    %v823 = vld [vmem:[#allocation8 + $0xa00] sm:$0xff]
    %v824 = vld [vmem:[#allocation8 + $0xa08] sm:$0xff]
    %v825 = vld [vmem:[#allocation8 + $0xa10] sm:$0xff]
    %v826 = vld [vmem:[#allocation8 + $0xa18] sm:$0xff]
    %v827 = vld [vmem:[#allocation8 + $0xa20] sm:$0xff]
    %v828 = vld [vmem:[#allocation8 + $0xa28] sm:$0xff]
    %v829 = vld [vmem:[#allocation8 + $0xa30] sm:$0xff]
    %v830 = vld [vmem:[#allocation8 + $0xa38] sm:$0xff]
    %v831 = vld [vmem:[#allocation8 + $0xa40] sm:$0xff]
    %v832 = vld [vmem:[#allocation8 + $0xa48] sm:$0xff]
    %v833 = vld [vmem:[#allocation8 + $0xa50] sm:$0xff]
    %v834 = vld [vmem:[#allocation8 + $0xa58] sm:$0xff]
    %v835 = vld [vmem:[#allocation8 + $0xa60] sm:$0xff]
    %v836 = vld [vmem:[#allocation8 + $0xa68] sm:$0xff]
    %v837 = vld [vmem:[#allocation8 + $0xa70] sm:$0xff]
    %v838 = vld [vmem:[#allocation8 + $0xa78] sm:$0xff]
    %v839 = vld [vmem:[#allocation8 + $0xa80] sm:$0xff]
    %v840 = vld [vmem:[#allocation8 + $0xa88] sm:$0xff]
    %v841 = vld [vmem:[#allocation8 + $0xa90] sm:$0xff]
    %v842 = vld [vmem:[#allocation8 + $0xa98] sm:$0xff]
    %v843 = vld [vmem:[#allocation8 + $0xaa0] sm:$0xff]
    %v844 = vld [vmem:[#allocation8 + $0xaa8] sm:$0xff]
    %v845 = vld [vmem:[#allocation8 + $0xab0] sm:$0xff]
    %v846 = vld [vmem:[#allocation8 + $0xab8] sm:$0xff]
    %v847 = vld [vmem:[#allocation8 + $0xac0] sm:$0xff]
    %v848 = vld [vmem:[#allocation8 + $0xac8] sm:$0xff]
    %v849 = vld [vmem:[#allocation8 + $0xad0] sm:$0xff]
    %v850 = vld [vmem:[#allocation8 + $0xad8] sm:$0xff]
    %v851 = vld [vmem:[#allocation8 + $0xae0] sm:$0xff]
    %v852 = vld [vmem:[#allocation8 + $0xae8] sm:$0xff]
    %v853 = vld [vmem:[#allocation8 + $0xaf0] sm:$0xff]
    %v854 = vld [vmem:[#allocation8 + $0xaf8] sm:$0xff]
    %v855 = vld [vmem:[#allocation8 + $0xb00] sm:$0xff]
    %v856 = vld [vmem:[#allocation8 + $0xb08] sm:$0xff]
    %v857 = vld [vmem:[#allocation8 + $0xb10] sm:$0xff]
    %v858 = vld [vmem:[#allocation8 + $0xb18] sm:$0xff]
    %v859 = vld [vmem:[#allocation8 + $0xb20] sm:$0xff]
    %v860 = vld [vmem:[#allocation8 + $0xb28] sm:$0xff]
    %v861 = vld [vmem:[#allocation8 + $0xb30] sm:$0xff]
    %v862 = vld [vmem:[#allocation8 + $0xb38] sm:$0xff]
    %v863 = vld [vmem:[#allocation8 + $0xb40] sm:$0xff]
    %v864 = vld [vmem:[#allocation8 + $0xb48] sm:$0xff]
    %v865 = vld [vmem:[#allocation8 + $0xb50] sm:$0xff]
    %v866 = vld [vmem:[#allocation8 + $0xb58] sm:$0xff]
    %v867 = vld [vmem:[#allocation8 + $0xb60] sm:$0xff]
    %v868 = vld [vmem:[#allocation8 + $0xb68] sm:$0xff]
    %v869 = vld [vmem:[#allocation8 + $0xb70] sm:$0xff]
    %v870 = vld [vmem:[#allocation8 + $0xb78] sm:$0xff]
    %v871 = vld [vmem:[#allocation8 + $0xb80] sm:$0xff]
    %v872 = vld [vmem:[#allocation8 + $0xb88] sm:$0xff]
    %v873 = vld [vmem:[#allocation8 + $0xb90] sm:$0xff]
    %v874 = vld [vmem:[#allocation8 + $0xb98] sm:$0xff]
    %v875 = vld [vmem:[#allocation8 + $0xba0] sm:$0xff]
    %v876 = vld [vmem:[#allocation8 + $0xba8] sm:$0xff]
    %v877 = vld [vmem:[#allocation8 + $0xbb0] sm:$0xff]
    %v878 = vld [vmem:[#allocation8 + $0xbb8] sm:$0xff]
    %v879 = vld [vmem:[#allocation8 + $0xbc0] sm:$0xff]
    %v880 = vld [vmem:[#allocation8 + $0xbc8] sm:$0xff]
    %v881 = vld [vmem:[#allocation8 + $0xbd0] sm:$0xff]
    %v882 = vld [vmem:[#allocation8 + $0xbd8] sm:$0xff]
    %v883 = vld [vmem:[#allocation8 + $0xbe0] sm:$0xff]
    %v884 = vld [vmem:[#allocation8 + $0xbe8] sm:$0xff]
    %v885 = vld [vmem:[#allocation8 + $0xbf0] sm:$0xff]
    %v886 = vld [vmem:[#allocation8 + $0xbf8] sm:$0xff]
    %v887 = vld [vmem:[#allocation8 + $0xc00] sm:$0xff]
    %v888 = vld [vmem:[#allocation8 + $0xc08] sm:$0xff]
    %v889 = vld [vmem:[#allocation8 + $0xc10] sm:$0xff]
    %v890 = vld [vmem:[#allocation8 + $0xc18] sm:$0xff]
    %v891 = vld [vmem:[#allocation8 + $0xc20] sm:$0xff]
    %v892 = vld [vmem:[#allocation8 + $0xc28] sm:$0xff]
    %v893 = vld [vmem:[#allocation8 + $0xc30] sm:$0xff]
    %v894 = vld [vmem:[#allocation8 + $0xc38] sm:$0xff]
    %v895 = vld [vmem:[#allocation8 + $0xc40] sm:$0xff]
    %v896 = vld [vmem:[#allocation8 + $0xc48] sm:$0xff]
    %v897 = vld [vmem:[#allocation8 + $0xc50] sm:$0xff]
    %v898 = vld [vmem:[#allocation8 + $0xc58] sm:$0xff]
    %v899 = vld [vmem:[#allocation8 + $0xc60] sm:$0xff]
    %v900 = vld [vmem:[#allocation8 + $0xc68] sm:$0xff]
    %v901 = vld [vmem:[#allocation8 + $0xc70] sm:$0xff]
    %v902 = vld [vmem:[#allocation8 + $0xc78] sm:$0xff]
    %v903 = vld [vmem:[#allocation8 + $0xc80] sm:$0xff]
    %v904 = vld [vmem:[#allocation8 + $0xc88] sm:$0xff]
    %v905 = vld [vmem:[#allocation8 + $0xc90] sm:$0xff]
    %v906 = vld [vmem:[#allocation8 + $0xc98] sm:$0xff]
    %v907 = vld [vmem:[#allocation8 + $0xca0] sm:$0xff]
    %v908 = vld [vmem:[#allocation8 + $0xca8] sm:$0xff]
    %v909 = vld [vmem:[#allocation8 + $0xcb0] sm:$0xff]
    %v910 = vld [vmem:[#allocation8 + $0xcb8] sm:$0xff]
    %v911 = vld [vmem:[#allocation8 + $0xcc0] sm:$0xff]
    %v912 = vld [vmem:[#allocation8 + $0xcc8] sm:$0xff]
    %v913 = vld [vmem:[#allocation8 + $0xcd0] sm:$0xff]
    %v914 = vld [vmem:[#allocation8 + $0xcd8] sm:$0xff]
    %v915 = vld [vmem:[#allocation8 + $0xce0] sm:$0xff]
    %v916 = vld [vmem:[#allocation8 + $0xce8] sm:$0xff]
    %v917 = vld [vmem:[#allocation8 + $0xcf0] sm:$0xff]
    %v918 = vld [vmem:[#allocation8 + $0xcf8] sm:$0xff]
    %v919 = vld [vmem:[#allocation8 + $0xd00] sm:$0xff]
    %v920 = vld [vmem:[#allocation8 + $0xd08] sm:$0xff]
    %v921 = vld [vmem:[#allocation8 + $0xd10] sm:$0xff]
    %v922 = vld [vmem:[#allocation8 + $0xd18] sm:$0xff]
    %v923 = vld [vmem:[#allocation8 + $0xd20] sm:$0xff]
    %v924 = vld [vmem:[#allocation8 + $0xd28] sm:$0xff]
    %v925 = vld [vmem:[#allocation8 + $0xd30] sm:$0xff]
    %v926 = vld [vmem:[#allocation8 + $0xd38] sm:$0xff]
    %v927 = vld [vmem:[#allocation8 + $0xd40] sm:$0xff]
    %v928 = vld [vmem:[#allocation8 + $0xd48] sm:$0xff]
    %v929 = vld [vmem:[#allocation8 + $0xd50] sm:$0xff]
    %v930 = vld [vmem:[#allocation8 + $0xd58] sm:$0xff]
    %v931 = vld [vmem:[#allocation8 + $0xd60] sm:$0xff]
    %v932 = vld [vmem:[#allocation8 + $0xd68] sm:$0xff]
    %v933 = vld [vmem:[#allocation8 + $0xd70] sm:$0xff]
    %v934 = vld [vmem:[#allocation8 + $0xd78] sm:$0xff]
    %v935 = vld [vmem:[#allocation8 + $0xd80] sm:$0xff]
    %v936 = vld [vmem:[#allocation8 + $0xd88] sm:$0xff]
    %v937 = vld [vmem:[#allocation8 + $0xd90] sm:$0xff]
    %v938 = vld [vmem:[#allocation8 + $0xd98] sm:$0xff]
    %v939 = vld [vmem:[#allocation8 + $0xda0] sm:$0xff]
    %v940 = vld [vmem:[#allocation8 + $0xda8] sm:$0xff]
    %v941 = vld [vmem:[#allocation8 + $0xdb0] sm:$0xff]
    %v942 = vld [vmem:[#allocation8 + $0xdb8] sm:$0xff]
    %v943 = vld [vmem:[#allocation8 + $0xdc0] sm:$0xff]
    %v944 = vld [vmem:[#allocation8 + $0xdc8] sm:$0xff]
    %v945 = vld [vmem:[#allocation8 + $0xdd0] sm:$0xff]
    %v946 = vld [vmem:[#allocation8 + $0xdd8] sm:$0xff]
    %v947 = vld [vmem:[#allocation8 + $0xde0] sm:$0xff]
    %v948 = vld [vmem:[#allocation8 + $0xde8] sm:$0xff]
    %v949 = vld [vmem:[#allocation8 + $0xdf0] sm:$0xff]
    %v950 = vld [vmem:[#allocation8 + $0xdf8] sm:$0xff]
    %v951 = vld [vmem:[#allocation8 + $0xe00] sm:$0xff]
    %v952 = vld [vmem:[#allocation8 + $0xe08] sm:$0xff]
    %v953 = vld [vmem:[#allocation8 + $0xe10] sm:$0xff]
    %v954 = vld [vmem:[#allocation8 + $0xe18] sm:$0xff]
    %v955 = vld [vmem:[#allocation8 + $0xe20] sm:$0xff]
    %v956 = vld [vmem:[#allocation8 + $0xe28] sm:$0xff]
    %v957 = vld [vmem:[#allocation8 + $0xe30] sm:$0xff]
    %v958 = vld [vmem:[#allocation8 + $0xe38] sm:$0xff]
    %v959 = vld [vmem:[#allocation8 + $0xe40] sm:$0xff]
    %v960 = vld [vmem:[#allocation8 + $0xe48] sm:$0xff]
    %v961 = vld [vmem:[#allocation8 + $0xe50] sm:$0xff]
    %v962 = vld [vmem:[#allocation8 + $0xe58] sm:$0xff]
    %v963 = vld [vmem:[#allocation8 + $0xe60] sm:$0xff]
    %v964 = vld [vmem:[#allocation8 + $0xe68] sm:$0xff]
    %v965 = vld [vmem:[#allocation8 + $0xe70] sm:$0xff]
    %v966 = vld [vmem:[#allocation8 + $0xe78] sm:$0xff]
    %v967 = vld [vmem:[#allocation8 + $0xe80] sm:$0xff]
    %v968 = vld [vmem:[#allocation8 + $0xe88] sm:$0xff]
    %v969 = vld [vmem:[#allocation8 + $0xe90] sm:$0xff]
    %v970 = vld [vmem:[#allocation8 + $0xe98] sm:$0xff]
    %v971 = vld [vmem:[#allocation8 + $0xea0] sm:$0xff]
    %v972 = vld [vmem:[#allocation8 + $0xea8] sm:$0xff]
    %v973 = vld [vmem:[#allocation8 + $0xeb0] sm:$0xff]
    %v974 = vld [vmem:[#allocation8 + $0xeb8] sm:$0xff]
    %v975 = vld [vmem:[#allocation8 + $0xec0] sm:$0xff]
    %v976 = vld [vmem:[#allocation8 + $0xec8] sm:$0xff]
    %v977 = vld [vmem:[#allocation8 + $0xed0] sm:$0xff]
    %v978 = vld [vmem:[#allocation8 + $0xed8] sm:$0xff]
    %v979 = vld [vmem:[#allocation8 + $0xee0] sm:$0xff]
    %v980 = vld [vmem:[#allocation8 + $0xee8] sm:$0xff]
    %v981 = vld [vmem:[#allocation8 + $0xef0] sm:$0xff]
    %v982 = vld [vmem:[#allocation8 + $0xef8] sm:$0xff]
    %v983 = vld [vmem:[#allocation8 + $0xf00] sm:$0xff]
    %v984 = vld [vmem:[#allocation8 + $0xf08] sm:$0xff]
    %v985 = vld [vmem:[#allocation8 + $0xf10] sm:$0xff]
    %v986 = vld [vmem:[#allocation8 + $0xf18] sm:$0xff]
    %v987 = vld [vmem:[#allocation8 + $0xf20] sm:$0xff]
    %v988 = vld [vmem:[#allocation8 + $0xf28] sm:$0xff]
    %v989 = vld [vmem:[#allocation8 + $0xf30] sm:$0xff]
    %v990 = vld [vmem:[#allocation8 + $0xf38] sm:$0xff]
    %v991 = vld [vmem:[#allocation8 + $0xf40] sm:$0xff]
    %v992 = vld [vmem:[#allocation8 + $0xf48] sm:$0xff]
    %v993 = vld [vmem:[#allocation8 + $0xf50] sm:$0xff]
    %v994 = vld [vmem:[#allocation8 + $0xf58] sm:$0xff]
    %v995 = vld [vmem:[#allocation8 + $0xf60] sm:$0xff]
    %v996 = vld [vmem:[#allocation8 + $0xf68] sm:$0xff]
    %v997 = vld [vmem:[#allocation8 + $0xf70] sm:$0xff]
    %v998 = vld [vmem:[#allocation8 + $0xf78] sm:$0xff]
    %v999 = vld [vmem:[#allocation8 + $0xf80] sm:$0xff]
    %v1000 = vld [vmem:[#allocation8 + $0xf88] sm:$0xff]
    %v1001 = vld [vmem:[#allocation8 + $0xf90] sm:$0xff]
    %v1002 = vld [vmem:[#allocation8 + $0xf98] sm:$0xff]
    %v1003 = vld [vmem:[#allocation8 + $0xfa0] sm:$0xff]
    %v1004 = vld [vmem:[#allocation8 + $0xfa8] sm:$0xff]
    %v1005 = vld [vmem:[#allocation8 + $0xfb0] sm:$0xff]
    %v1006 = vld [vmem:[#allocation8 + $0xfb8] sm:$0xff]
    %v1007 = vld [vmem:[#allocation8 + $0xfc0] sm:$0xff]
    %v1008 = vld [vmem:[#allocation8 + $0xfc8] sm:$0xff]
    %v1009 = vld [vmem:[#allocation8 + $0xfd0] sm:$0xff]
    %v1010 = vld [vmem:[#allocation8 + $0xfd8] sm:$0xff]
    %v1011 = vld [vmem:[#allocation8 + $0xfe0] sm:$0xff]
    %v1012 = vld [vmem:[#allocation8 + $0xfe8] sm:$0xff]
    %v1013 = vld [vmem:[#allocation8 + $0xff0] sm:$0xff]
    %v1014 = vld [vmem:[#allocation8 + $0xff8] sm:$0xff]
    %v1015 = vld [vmem:[#allocation10] sm:$0xff]
    %v1017 = vperm.slane %v1015, 0
    %v1018 = vperm.slane %v1015, 1
    %v1019 = vperm.slane %v1015, 2
    %v1020 = vperm.slane %v1015, 3
    %v1021 = vperm.slane %v1015, 4
    %v1022 = vperm.slane %v1015, 5
    %v1023 = vperm.slane %v1015, 6
    %v1024 = vperm.slane %v1015, 7
    %v1545 = vunpack.c.l.b16 %v503
    %v1546 = vunpack.c.h.b16 %v503
    %v1547 = vunpack.c.l.b16 %v504
    %v1548 = vunpack.c.h.b16 %v504
    %v1549 = vunpack.c.l.b16 %v505
    %v1550 = vunpack.c.h.b16 %v505
    %v1551 = vunpack.c.l.b16 %v506
    %v1552 = vunpack.c.h.b16 %v506
    %v1553 = vunpack.c.l.b16 %v507
    %v1554 = vunpack.c.h.b16 %v507
    %v1555 = vunpack.c.l.b16 %v508
    %v1556 = vunpack.c.h.b16 %v508
    %v1557 = vunpack.c.l.b16 %v509
    %v1558 = vunpack.c.h.b16 %v509
    %v1559 = vunpack.c.l.b16 %v510
    %v1560 = vunpack.c.h.b16 %v510
    %v1561 = vunpack.c.l.b16 %v511
    %v1562 = vunpack.c.h.b16 %v511
    %v1563 = vunpack.c.l.b16 %v512
    %v1564 = vunpack.c.h.b16 %v512
    %v1565 = vunpack.c.l.b16 %v513
    %v1566 = vunpack.c.h.b16 %v513
    %v1567 = vunpack.c.l.b16 %v514
    %v1568 = vunpack.c.h.b16 %v514
    %v1569 = vunpack.c.l.b16 %v515
    %v1570 = vunpack.c.h.b16 %v515
    %v1571 = vunpack.c.l.b16 %v516
    %v1572 = vunpack.c.h.b16 %v516
    %v1573 = vunpack.c.l.b16 %v517
    %v1574 = vunpack.c.h.b16 %v517
    %v1575 = vunpack.c.l.b16 %v518
    %v1576 = vunpack.c.h.b16 %v518
    %v1577 = vunpack.c.l.b16 %v519
    %v1578 = vunpack.c.h.b16 %v519
    %v1579 = vunpack.c.l.b16 %v520
    %v1580 = vunpack.c.h.b16 %v520
    %v1581 = vunpack.c.l.b16 %v521
    %v1582 = vunpack.c.h.b16 %v521
    %v1583 = vunpack.c.l.b16 %v522
    %v1584 = vunpack.c.h.b16 %v522
    %v1585 = vunpack.c.l.b16 %v523
    %v1586 = vunpack.c.h.b16 %v523
    %v1587 = vunpack.c.l.b16 %v524
    %v1588 = vunpack.c.h.b16 %v524
    %v1589 = vunpack.c.l.b16 %v525
    %v1590 = vunpack.c.h.b16 %v525
    %v1591 = vunpack.c.l.b16 %v526
    %v1592 = vunpack.c.h.b16 %v526
    %v1593 = vunpack.c.l.b16 %v527
    %v1594 = vunpack.c.h.b16 %v527
    %v1595 = vunpack.c.l.b16 %v528
    %v1596 = vunpack.c.h.b16 %v528
    %v1597 = vunpack.c.l.b16 %v529
    %v1598 = vunpack.c.h.b16 %v529
    %v1599 = vunpack.c.l.b16 %v530
    %v1600 = vunpack.c.h.b16 %v530
    %v1601 = vunpack.c.l.b16 %v531
    %v1602 = vunpack.c.h.b16 %v531
    %v1603 = vunpack.c.l.b16 %v532
    %v1604 = vunpack.c.h.b16 %v532
    %v1605 = vunpack.c.l.b16 %v533
    %v1606 = vunpack.c.h.b16 %v533
    %v1607 = vunpack.c.l.b16 %v534
    %v1608 = vunpack.c.h.b16 %v534
    %v1609 = vunpack.c.l.b16 %v535
    %v1610 = vunpack.c.h.b16 %v535
    %v1611 = vunpack.c.l.b16 %v536
    %v1612 = vunpack.c.h.b16 %v536
    %v1613 = vunpack.c.l.b16 %v537
    %v1614 = vunpack.c.h.b16 %v537
    %v1615 = vunpack.c.l.b16 %v538
    %v1616 = vunpack.c.h.b16 %v538
    %v1617 = vunpack.c.l.b16 %v539
    %v1618 = vunpack.c.h.b16 %v539
    %v1619 = vunpack.c.l.b16 %v540
    %v1620 = vunpack.c.h.b16 %v540
    %v1621 = vunpack.c.l.b16 %v541
    %v1622 = vunpack.c.h.b16 %v541
    %v1623 = vunpack.c.l.b16 %v542
    %v1624 = vunpack.c.h.b16 %v542
    %v1625 = vunpack.c.l.b16 %v543
    %v1626 = vunpack.c.h.b16 %v543
    %v1627 = vunpack.c.l.b16 %v544
    %v1628 = vunpack.c.h.b16 %v544
    %v1629 = vunpack.c.l.b16 %v545
    %v1630 = vunpack.c.h.b16 %v545
    %v1631 = vunpack.c.l.b16 %v546
    %v1632 = vunpack.c.h.b16 %v546
    %v1633 = vunpack.c.l.b16 %v547
    %v1634 = vunpack.c.h.b16 %v547
    %v1635 = vunpack.c.l.b16 %v548
    %v1636 = vunpack.c.h.b16 %v548
    %v1637 = vunpack.c.l.b16 %v549
    %v1638 = vunpack.c.h.b16 %v549
    %v1639 = vunpack.c.l.b16 %v550
    %v1640 = vunpack.c.h.b16 %v550
    %v1641 = vunpack.c.l.b16 %v551
    %v1642 = vunpack.c.h.b16 %v551
    %v1643 = vunpack.c.l.b16 %v552
    %v1644 = vunpack.c.h.b16 %v552
    %v1645 = vunpack.c.l.b16 %v553
    %v1646 = vunpack.c.h.b16 %v553
    %v1647 = vunpack.c.l.b16 %v554
    %v1648 = vunpack.c.h.b16 %v554
    %v1649 = vunpack.c.l.b16 %v555
    %v1650 = vunpack.c.h.b16 %v555
    %v1651 = vunpack.c.l.b16 %v556
    %v1652 = vunpack.c.h.b16 %v556
    %v1653 = vunpack.c.l.b16 %v557
    %v1654 = vunpack.c.h.b16 %v557
    %v1655 = vunpack.c.l.b16 %v558
    %v1656 = vunpack.c.h.b16 %v558
    %v1657 = vunpack.c.l.b16 %v559
    %v1658 = vunpack.c.h.b16 %v559
    %v1659 = vunpack.c.l.b16 %v560
    %v1660 = vunpack.c.h.b16 %v560
    %v1661 = vunpack.c.l.b16 %v561
    %v1662 = vunpack.c.h.b16 %v561
    %v1663 = vunpack.c.l.b16 %v562
    %v1664 = vunpack.c.h.b16 %v562
    %v1665 = vunpack.c.l.b16 %v563
    %v1666 = vunpack.c.h.b16 %v563
    %v1667 = vunpack.c.l.b16 %v564
    %v1668 = vunpack.c.h.b16 %v564
    %v1669 = vunpack.c.l.b16 %v565
    %v1670 = vunpack.c.h.b16 %v565
    %v1671 = vunpack.c.l.b16 %v566
    %v1672 = vunpack.c.h.b16 %v566
    %v1673 = vunpack.c.l.b16 %v567
    %v1674 = vunpack.c.h.b16 %v567
    %v1675 = vunpack.c.l.b16 %v568
    %v1676 = vunpack.c.h.b16 %v568
    %v1677 = vunpack.c.l.b16 %v569
    %v1678 = vunpack.c.h.b16 %v569
    %v1679 = vunpack.c.l.b16 %v570
    %v1680 = vunpack.c.h.b16 %v570
    %v1681 = vunpack.c.l.b16 %v571
    %v1682 = vunpack.c.h.b16 %v571
    %v1683 = vunpack.c.l.b16 %v572
    %v1684 = vunpack.c.h.b16 %v572
    %v1685 = vunpack.c.l.b16 %v573
    %v1686 = vunpack.c.h.b16 %v573
    %v1687 = vunpack.c.l.b16 %v574
    %v1688 = vunpack.c.h.b16 %v574
    %v1689 = vunpack.c.l.b16 %v575
    %v1690 = vunpack.c.h.b16 %v575
    %v1691 = vunpack.c.l.b16 %v576
    %v1692 = vunpack.c.h.b16 %v576
    %v1693 = vunpack.c.l.b16 %v577
    %v1694 = vunpack.c.h.b16 %v577
    %v1695 = vunpack.c.l.b16 %v578
    %v1696 = vunpack.c.h.b16 %v578
    %v1697 = vunpack.c.l.b16 %v579
    %v1698 = vunpack.c.h.b16 %v579
    %v1699 = vunpack.c.l.b16 %v580
    %v1700 = vunpack.c.h.b16 %v580
    %v1701 = vunpack.c.l.b16 %v581
    %v1702 = vunpack.c.h.b16 %v581
    %v1703 = vunpack.c.l.b16 %v582
    %v1704 = vunpack.c.h.b16 %v582
    %v1705 = vunpack.c.l.b16 %v583
    %v1706 = vunpack.c.h.b16 %v583
    %v1707 = vunpack.c.l.b16 %v584
    %v1708 = vunpack.c.h.b16 %v584
    %v1709 = vunpack.c.l.b16 %v585
    %v1710 = vunpack.c.h.b16 %v585
    %v1711 = vunpack.c.l.b16 %v586
    %v1712 = vunpack.c.h.b16 %v586
    %v1713 = vunpack.c.l.b16 %v587
    %v1714 = vunpack.c.h.b16 %v587
    %v1715 = vunpack.c.l.b16 %v588
    %v1716 = vunpack.c.h.b16 %v588
    %v1717 = vunpack.c.l.b16 %v589
    %v1718 = vunpack.c.h.b16 %v589
    %v1719 = vunpack.c.l.b16 %v590
    %v1720 = vunpack.c.h.b16 %v590
    %v1721 = vunpack.c.l.b16 %v591
    %v1722 = vunpack.c.h.b16 %v591
    %v1723 = vunpack.c.l.b16 %v592
    %v1724 = vunpack.c.h.b16 %v592
    %v1725 = vunpack.c.l.b16 %v593
    %v1726 = vunpack.c.h.b16 %v593
    %v1727 = vunpack.c.l.b16 %v594
    %v1728 = vunpack.c.h.b16 %v594
    %v1729 = vunpack.c.l.b16 %v595
    %v1730 = vunpack.c.h.b16 %v595
    %v1731 = vunpack.c.l.b16 %v596
    %v1732 = vunpack.c.h.b16 %v596
    %v1733 = vunpack.c.l.b16 %v597
    %v1734 = vunpack.c.h.b16 %v597
    %v1735 = vunpack.c.l.b16 %v598
    %v1736 = vunpack.c.h.b16 %v598
    %v1737 = vunpack.c.l.b16 %v599
    %v1738 = vunpack.c.h.b16 %v599
    %v1739 = vunpack.c.l.b16 %v600
    %v1740 = vunpack.c.h.b16 %v600
    %v1741 = vunpack.c.l.b16 %v601
    %v1742 = vunpack.c.h.b16 %v601
    %v1743 = vunpack.c.l.b16 %v602
    %v1744 = vunpack.c.h.b16 %v602
    %v1745 = vunpack.c.l.b16 %v603
    %v1746 = vunpack.c.h.b16 %v603
    %v1747 = vunpack.c.l.b16 %v604
    %v1748 = vunpack.c.h.b16 %v604
    %v1749 = vunpack.c.l.b16 %v605
    %v1750 = vunpack.c.h.b16 %v605
    %v1751 = vunpack.c.l.b16 %v606
    %v1752 = vunpack.c.h.b16 %v606
    %v1753 = vunpack.c.l.b16 %v607
    %v1754 = vunpack.c.h.b16 %v607
    %v1755 = vunpack.c.l.b16 %v608
    %v1756 = vunpack.c.h.b16 %v608
    %v1757 = vunpack.c.l.b16 %v609
    %v1758 = vunpack.c.h.b16 %v609
    %v1759 = vunpack.c.l.b16 %v610
    %v1760 = vunpack.c.h.b16 %v610
    %v1761 = vunpack.c.l.b16 %v611
    %v1762 = vunpack.c.h.b16 %v611
    %v1763 = vunpack.c.l.b16 %v612
    %v1764 = vunpack.c.h.b16 %v612
    %v1765 = vunpack.c.l.b16 %v613
    %v1766 = vunpack.c.h.b16 %v613
    %v1767 = vunpack.c.l.b16 %v614
    %v1768 = vunpack.c.h.b16 %v614
    %v1769 = vunpack.c.l.b16 %v615
    %v1770 = vunpack.c.h.b16 %v615
    %v1771 = vunpack.c.l.b16 %v616
    %v1772 = vunpack.c.h.b16 %v616
    %v1773 = vunpack.c.l.b16 %v617
    %v1774 = vunpack.c.h.b16 %v617
    %v1775 = vunpack.c.l.b16 %v618
    %v1776 = vunpack.c.h.b16 %v618
    %v1777 = vunpack.c.l.b16 %v619
    %v1778 = vunpack.c.h.b16 %v619
    %v1779 = vunpack.c.l.b16 %v620
    %v1780 = vunpack.c.h.b16 %v620
    %v1781 = vunpack.c.l.b16 %v621
    %v1782 = vunpack.c.h.b16 %v621
    %v1783 = vunpack.c.l.b16 %v622
    %v1784 = vunpack.c.h.b16 %v622
    %v1785 = vunpack.c.l.b16 %v623
    %v1786 = vunpack.c.h.b16 %v623
    %v1787 = vunpack.c.l.b16 %v624
    %v1788 = vunpack.c.h.b16 %v624
    %v1789 = vunpack.c.l.b16 %v625
    %v1790 = vunpack.c.h.b16 %v625
    %v1791 = vunpack.c.l.b16 %v626
    %v1792 = vunpack.c.h.b16 %v626
    %v1793 = vunpack.c.l.b16 %v627
    %v1794 = vunpack.c.h.b16 %v627
    %v1795 = vunpack.c.l.b16 %v628
    %v1796 = vunpack.c.h.b16 %v628
    %v1797 = vunpack.c.l.b16 %v629
    %v1798 = vunpack.c.h.b16 %v629
    %v1799 = vunpack.c.l.b16 %v630
    %v1800 = vunpack.c.h.b16 %v630
    %v1801 = vunpack.c.l.b16 %v631
    %v1802 = vunpack.c.h.b16 %v631
    %v1803 = vunpack.c.l.b16 %v632
    %v1804 = vunpack.c.h.b16 %v632
    %v1805 = vunpack.c.l.b16 %v633
    %v1806 = vunpack.c.h.b16 %v633
    %v1807 = vunpack.c.l.b16 %v634
    %v1808 = vunpack.c.h.b16 %v634
    %v1809 = vunpack.c.l.b16 %v635
    %v1810 = vunpack.c.h.b16 %v635
    %v1811 = vunpack.c.l.b16 %v636
    %v1812 = vunpack.c.h.b16 %v636
    %v1813 = vunpack.c.l.b16 %v637
    %v1814 = vunpack.c.h.b16 %v637
    %v1815 = vunpack.c.l.b16 %v638
    %v1816 = vunpack.c.h.b16 %v638
    %v1817 = vunpack.c.l.b16 %v639
    %v1818 = vunpack.c.h.b16 %v639
    %v1819 = vunpack.c.l.b16 %v640
    %v1820 = vunpack.c.h.b16 %v640
    %v1821 = vunpack.c.l.b16 %v641
    %v1822 = vunpack.c.h.b16 %v641
    %v1823 = vunpack.c.l.b16 %v642
    %v1824 = vunpack.c.h.b16 %v642
    %v1825 = vunpack.c.l.b16 %v643
    %v1826 = vunpack.c.h.b16 %v643
    %v1827 = vunpack.c.l.b16 %v644
    %v1828 = vunpack.c.h.b16 %v644
    %v1829 = vunpack.c.l.b16 %v645
    %v1830 = vunpack.c.h.b16 %v645
    %v1831 = vunpack.c.l.b16 %v646
    %v1832 = vunpack.c.h.b16 %v646
    %v1833 = vunpack.c.l.b16 %v647
    %v1834 = vunpack.c.h.b16 %v647
    %v1835 = vunpack.c.l.b16 %v648
    %v1836 = vunpack.c.h.b16 %v648
    %v1837 = vunpack.c.l.b16 %v649
    %v1838 = vunpack.c.h.b16 %v649
    %v1839 = vunpack.c.l.b16 %v650
    %v1840 = vunpack.c.h.b16 %v650
    %v1841 = vunpack.c.l.b16 %v651
    %v1842 = vunpack.c.h.b16 %v651
    %v1843 = vunpack.c.l.b16 %v652
    %v1844 = vunpack.c.h.b16 %v652
    %v1845 = vunpack.c.l.b16 %v653
    %v1846 = vunpack.c.h.b16 %v653
    %v1847 = vunpack.c.l.b16 %v654
    %v1848 = vunpack.c.h.b16 %v654
    %v1849 = vunpack.c.l.b16 %v655
    %v1850 = vunpack.c.h.b16 %v655
    %v1851 = vunpack.c.l.b16 %v656
    %v1852 = vunpack.c.h.b16 %v656
    %v1853 = vunpack.c.l.b16 %v657
    %v1854 = vunpack.c.h.b16 %v657
    %v1855 = vunpack.c.l.b16 %v658
    %v1856 = vunpack.c.h.b16 %v658
    %v1857 = vunpack.c.l.b16 %v659
    %v1858 = vunpack.c.h.b16 %v659
    %v1859 = vunpack.c.l.b16 %v660
    %v1860 = vunpack.c.h.b16 %v660
    %v1861 = vunpack.c.l.b16 %v661
    %v1862 = vunpack.c.h.b16 %v661
    %v1863 = vunpack.c.l.b16 %v662
    %v1864 = vunpack.c.h.b16 %v662
    %v1865 = vunpack.c.l.b16 %v663
    %v1866 = vunpack.c.h.b16 %v663
    %v1867 = vunpack.c.l.b16 %v664
    %v1868 = vunpack.c.h.b16 %v664
    %v1869 = vunpack.c.l.b16 %v665
    %v1870 = vunpack.c.h.b16 %v665
    %v1871 = vunpack.c.l.b16 %v666
    %v1872 = vunpack.c.h.b16 %v666
    %v1873 = vunpack.c.l.b16 %v667
    %v1874 = vunpack.c.h.b16 %v667
    %v1875 = vunpack.c.l.b16 %v668
    %v1876 = vunpack.c.h.b16 %v668
    %v1877 = vunpack.c.l.b16 %v669
    %v1878 = vunpack.c.h.b16 %v669
    %v1879 = vunpack.c.l.b16 %v670
    %v1880 = vunpack.c.h.b16 %v670
    %v1881 = vunpack.c.l.b16 %v671
    %v1882 = vunpack.c.h.b16 %v671
    %v1883 = vunpack.c.l.b16 %v672
    %v1884 = vunpack.c.h.b16 %v672
    %v1885 = vunpack.c.l.b16 %v673
    %v1886 = vunpack.c.h.b16 %v673
    %v1887 = vunpack.c.l.b16 %v674
    %v1888 = vunpack.c.h.b16 %v674
    %v1889 = vunpack.c.l.b16 %v675
    %v1890 = vunpack.c.h.b16 %v675
    %v1891 = vunpack.c.l.b16 %v676
    %v1892 = vunpack.c.h.b16 %v676
    %v1893 = vunpack.c.l.b16 %v677
    %v1894 = vunpack.c.h.b16 %v677
    %v1895 = vunpack.c.l.b16 %v678
    %v1896 = vunpack.c.h.b16 %v678
    %v1897 = vunpack.c.l.b16 %v679
    %v1898 = vunpack.c.h.b16 %v679
    %v1899 = vunpack.c.l.b16 %v680
    %v1900 = vunpack.c.h.b16 %v680
    %v1901 = vunpack.c.l.b16 %v681
    %v1902 = vunpack.c.h.b16 %v681
    %v1903 = vunpack.c.l.b16 %v682
    %v1904 = vunpack.c.h.b16 %v682
    %v1905 = vunpack.c.l.b16 %v683
    %v1906 = vunpack.c.h.b16 %v683
    %v1907 = vunpack.c.l.b16 %v684
    %v1908 = vunpack.c.h.b16 %v684
    %v1909 = vunpack.c.l.b16 %v685
    %v1910 = vunpack.c.h.b16 %v685
    %v1911 = vunpack.c.l.b16 %v686
    %v1912 = vunpack.c.h.b16 %v686
    %v1913 = vunpack.c.l.b16 %v687
    %v1914 = vunpack.c.h.b16 %v687
    %v1915 = vunpack.c.l.b16 %v688
    %v1916 = vunpack.c.h.b16 %v688
    %v1917 = vunpack.c.l.b16 %v689
    %v1918 = vunpack.c.h.b16 %v689
    %v1919 = vunpack.c.l.b16 %v690
    %v1920 = vunpack.c.h.b16 %v690
    %v1921 = vunpack.c.l.b16 %v691
    %v1922 = vunpack.c.h.b16 %v691
    %v1923 = vunpack.c.l.b16 %v692
    %v1924 = vunpack.c.h.b16 %v692
    %v1925 = vunpack.c.l.b16 %v693
    %v1926 = vunpack.c.h.b16 %v693
    %v1927 = vunpack.c.l.b16 %v694
    %v1928 = vunpack.c.h.b16 %v694
    %v1929 = vunpack.c.l.b16 %v695
    %v1930 = vunpack.c.h.b16 %v695
    %v1931 = vunpack.c.l.b16 %v696
    %v1932 = vunpack.c.h.b16 %v696
    %v1933 = vunpack.c.l.b16 %v697
    %v1934 = vunpack.c.h.b16 %v697
    %v1935 = vunpack.c.l.b16 %v698
    %v1936 = vunpack.c.h.b16 %v698
    %v1937 = vunpack.c.l.b16 %v699
    %v1938 = vunpack.c.h.b16 %v699
    %v1939 = vunpack.c.l.b16 %v700
    %v1940 = vunpack.c.h.b16 %v700
    %v1941 = vunpack.c.l.b16 %v701
    %v1942 = vunpack.c.h.b16 %v701
    %v1943 = vunpack.c.l.b16 %v702
    %v1944 = vunpack.c.h.b16 %v702
    %v1945 = vunpack.c.l.b16 %v703
    %v1946 = vunpack.c.h.b16 %v703
    %v1947 = vunpack.c.l.b16 %v704
    %v1948 = vunpack.c.h.b16 %v704
    %v1949 = vunpack.c.l.b16 %v705
    %v1950 = vunpack.c.h.b16 %v705
    %v1951 = vunpack.c.l.b16 %v706
    %v1952 = vunpack.c.h.b16 %v706
    %v1953 = vunpack.c.l.b16 %v707
    %v1954 = vunpack.c.h.b16 %v707
    %v1955 = vunpack.c.l.b16 %v708
    %v1956 = vunpack.c.h.b16 %v708
    %v1957 = vunpack.c.l.b16 %v709
    %v1958 = vunpack.c.h.b16 %v709
    %v1959 = vunpack.c.l.b16 %v710
    %v1960 = vunpack.c.h.b16 %v710
    %v1961 = vunpack.c.l.b16 %v711
    %v1962 = vunpack.c.h.b16 %v711
    %v1963 = vunpack.c.l.b16 %v712
    %v1964 = vunpack.c.h.b16 %v712
    %v1965 = vunpack.c.l.b16 %v713
    %v1966 = vunpack.c.h.b16 %v713
    %v1967 = vunpack.c.l.b16 %v714
    %v1968 = vunpack.c.h.b16 %v714
    %v1969 = vunpack.c.l.b16 %v715
    %v1970 = vunpack.c.h.b16 %v715
    %v1971 = vunpack.c.l.b16 %v716
    %v1972 = vunpack.c.h.b16 %v716
    %v1973 = vunpack.c.l.b16 %v717
    %v1974 = vunpack.c.h.b16 %v717
    %v1975 = vunpack.c.l.b16 %v718
    %v1976 = vunpack.c.h.b16 %v718
    %v1977 = vunpack.c.l.b16 %v719
    %v1978 = vunpack.c.h.b16 %v719
    %v1979 = vunpack.c.l.b16 %v720
    %v1980 = vunpack.c.h.b16 %v720
    %v1981 = vunpack.c.l.b16 %v721
    %v1982 = vunpack.c.h.b16 %v721
    %v1983 = vunpack.c.l.b16 %v722
    %v1984 = vunpack.c.h.b16 %v722
    %v1985 = vunpack.c.l.b16 %v723
    %v1986 = vunpack.c.h.b16 %v723
    %v1987 = vunpack.c.l.b16 %v724
    %v1988 = vunpack.c.h.b16 %v724
    %v1989 = vunpack.c.l.b16 %v725
    %v1990 = vunpack.c.h.b16 %v725
    %v1991 = vunpack.c.l.b16 %v726
    %v1992 = vunpack.c.h.b16 %v726
    %v1993 = vunpack.c.l.b16 %v727
    %v1994 = vunpack.c.h.b16 %v727
    %v1995 = vunpack.c.l.b16 %v728
    %v1996 = vunpack.c.h.b16 %v728
    %v1997 = vunpack.c.l.b16 %v729
    %v1998 = vunpack.c.h.b16 %v729
    %v1999 = vunpack.c.l.b16 %v730
    %v2000 = vunpack.c.h.b16 %v730
    %v2001 = vunpack.c.l.b16 %v731
    %v2002 = vunpack.c.h.b16 %v731
    %v2003 = vunpack.c.l.b16 %v732
    %v2004 = vunpack.c.h.b16 %v732
    %v2005 = vunpack.c.l.b16 %v733
    %v2006 = vunpack.c.h.b16 %v733
    %v2007 = vunpack.c.l.b16 %v734
    %v2008 = vunpack.c.h.b16 %v734
    %v2009 = vunpack.c.l.b16 %v735
    %v2010 = vunpack.c.h.b16 %v735
    %v2011 = vunpack.c.l.b16 %v736
    %v2012 = vunpack.c.h.b16 %v736
    %v2013 = vunpack.c.l.b16 %v737
    %v2014 = vunpack.c.h.b16 %v737
    %v2015 = vunpack.c.l.b16 %v738
    %v2016 = vunpack.c.h.b16 %v738
    %v2017 = vunpack.c.l.b16 %v739
    %v2018 = vunpack.c.h.b16 %v739
    %v2019 = vunpack.c.l.b16 %v740
    %v2020 = vunpack.c.h.b16 %v740
    %v2021 = vunpack.c.l.b16 %v741
    %v2022 = vunpack.c.h.b16 %v741
    %v2023 = vunpack.c.l.b16 %v742
    %v2024 = vunpack.c.h.b16 %v742
    %v2025 = vunpack.c.l.b16 %v743
    %v2026 = vunpack.c.h.b16 %v743
    %v2027 = vunpack.c.l.b16 %v744
    %v2028 = vunpack.c.h.b16 %v744
    %v2029 = vunpack.c.l.b16 %v745
    %v2030 = vunpack.c.h.b16 %v745
    %v2031 = vunpack.c.l.b16 %v746
    %v2032 = vunpack.c.h.b16 %v746
    %v2033 = vunpack.c.l.b16 %v747
    %v2034 = vunpack.c.h.b16 %v747
    %v2035 = vunpack.c.l.b16 %v748
    %v2036 = vunpack.c.h.b16 %v748
    %v2037 = vunpack.c.l.b16 %v749
    %v2038 = vunpack.c.h.b16 %v749
    %v2039 = vunpack.c.l.b16 %v750
    %v2040 = vunpack.c.h.b16 %v750
    %v2041 = vunpack.c.l.b16 %v751
    %v2042 = vunpack.c.h.b16 %v751
    %v2043 = vunpack.c.l.b16 %v752
    %v2044 = vunpack.c.h.b16 %v752
    %v2045 = vunpack.c.l.b16 %v753
    %v2046 = vunpack.c.h.b16 %v753
    %v2047 = vunpack.c.l.b16 %v754
    %v2048 = vunpack.c.h.b16 %v754
    %v2049 = vunpack.c.l.b16 %v755
    %v2050 = vunpack.c.h.b16 %v755
    %v2051 = vunpack.c.l.b16 %v756
    %v2052 = vunpack.c.h.b16 %v756
    %v2053 = vunpack.c.l.b16 %v757
    %v2054 = vunpack.c.h.b16 %v757
    %v2055 = vunpack.c.l.b16 %v758
    %v2056 = vunpack.c.h.b16 %v758
    %v2057 = vunpack.c.l.b16 %v759
    %v2058 = vunpack.c.h.b16 %v759
    %v2059 = vunpack.c.l.b16 %v760
    %v2060 = vunpack.c.h.b16 %v760
    %v2061 = vunpack.c.l.b16 %v761
    %v2062 = vunpack.c.h.b16 %v761
    %v2063 = vunpack.c.l.b16 %v762
    %v2064 = vunpack.c.h.b16 %v762
    %v2065 = vunpack.c.l.b16 %v763
    %v2066 = vunpack.c.h.b16 %v763
    %v2067 = vunpack.c.l.b16 %v764
    %v2068 = vunpack.c.h.b16 %v764
    %v2069 = vunpack.c.l.b16 %v765
    %v2070 = vunpack.c.h.b16 %v765
    %v2071 = vunpack.c.l.b16 %v766
    %v2072 = vunpack.c.h.b16 %v766
    %v2073 = vunpack.c.l.b16 %v767
    %v2074 = vunpack.c.h.b16 %v767
    %v2075 = vunpack.c.l.b16 %v768
    %v2076 = vunpack.c.h.b16 %v768
    %v2077 = vunpack.c.l.b16 %v769
    %v2078 = vunpack.c.h.b16 %v769
    %v2079 = vunpack.c.l.b16 %v770
    %v2080 = vunpack.c.h.b16 %v770
    %v2081 = vunpack.c.l.b16 %v771
    %v2082 = vunpack.c.h.b16 %v771
    %v2083 = vunpack.c.l.b16 %v772
    %v2084 = vunpack.c.h.b16 %v772
    %v2085 = vunpack.c.l.b16 %v773
    %v2086 = vunpack.c.h.b16 %v773
    %v2087 = vunpack.c.l.b16 %v774
    %v2088 = vunpack.c.h.b16 %v774
    %v2089 = vunpack.c.l.b16 %v775
    %v2090 = vunpack.c.h.b16 %v775
    %v2091 = vunpack.c.l.b16 %v776
    %v2092 = vunpack.c.h.b16 %v776
    %v2093 = vunpack.c.l.b16 %v777
    %v2094 = vunpack.c.h.b16 %v777
    %v2095 = vunpack.c.l.b16 %v778
    %v2096 = vunpack.c.h.b16 %v778
    %v2097 = vunpack.c.l.b16 %v779
    %v2098 = vunpack.c.h.b16 %v779
    %v2099 = vunpack.c.l.b16 %v780
    %v2100 = vunpack.c.h.b16 %v780
    %v2101 = vunpack.c.l.b16 %v781
    %v2102 = vunpack.c.h.b16 %v781
    %v2103 = vunpack.c.l.b16 %v782
    %v2104 = vunpack.c.h.b16 %v782
    %v2105 = vunpack.c.l.b16 %v783
    %v2106 = vunpack.c.h.b16 %v783
    %v2107 = vunpack.c.l.b16 %v784
    %v2108 = vunpack.c.h.b16 %v784
    %v2109 = vunpack.c.l.b16 %v785
    %v2110 = vunpack.c.h.b16 %v785
    %v2111 = vunpack.c.l.b16 %v786
    %v2112 = vunpack.c.h.b16 %v786
    %v2113 = vunpack.c.l.b16 %v787
    %v2114 = vunpack.c.h.b16 %v787
    %v2115 = vunpack.c.l.b16 %v788
    %v2116 = vunpack.c.h.b16 %v788
    %v2117 = vunpack.c.l.b16 %v789
    %v2118 = vunpack.c.h.b16 %v789
    %v2119 = vunpack.c.l.b16 %v790
    %v2120 = vunpack.c.h.b16 %v790
    %v2121 = vunpack.c.l.b16 %v791
    %v2122 = vunpack.c.h.b16 %v791
    %v2123 = vunpack.c.l.b16 %v792
    %v2124 = vunpack.c.h.b16 %v792
    %v2125 = vunpack.c.l.b16 %v793
    %v2126 = vunpack.c.h.b16 %v793
    %v2127 = vunpack.c.l.b16 %v794
    %v2128 = vunpack.c.h.b16 %v794
    %v2129 = vunpack.c.l.b16 %v795
    %v2130 = vunpack.c.h.b16 %v795
    %v2131 = vunpack.c.l.b16 %v796
    %v2132 = vunpack.c.h.b16 %v796
    %v2133 = vunpack.c.l.b16 %v797
    %v2134 = vunpack.c.h.b16 %v797
    %v2135 = vunpack.c.l.b16 %v798
    %v2136 = vunpack.c.h.b16 %v798
    %v2137 = vunpack.c.l.b16 %v799
    %v2138 = vunpack.c.h.b16 %v799
    %v2139 = vunpack.c.l.b16 %v800
    %v2140 = vunpack.c.h.b16 %v800
    %v2141 = vunpack.c.l.b16 %v801
    %v2142 = vunpack.c.h.b16 %v801
    %v2143 = vunpack.c.l.b16 %v802
    %v2144 = vunpack.c.h.b16 %v802
    %v2145 = vunpack.c.l.b16 %v803
    %v2146 = vunpack.c.h.b16 %v803
    %v2147 = vunpack.c.l.b16 %v804
    %v2148 = vunpack.c.h.b16 %v804
    %v2149 = vunpack.c.l.b16 %v805
    %v2150 = vunpack.c.h.b16 %v805
    %v2151 = vunpack.c.l.b16 %v806
    %v2152 = vunpack.c.h.b16 %v806
    %v2153 = vunpack.c.l.b16 %v807
    %v2154 = vunpack.c.h.b16 %v807
    %v2155 = vunpack.c.l.b16 %v808
    %v2156 = vunpack.c.h.b16 %v808
    %v2157 = vunpack.c.l.b16 %v809
    %v2158 = vunpack.c.h.b16 %v809
    %v2159 = vunpack.c.l.b16 %v810
    %v2160 = vunpack.c.h.b16 %v810
    %v2161 = vunpack.c.l.b16 %v811
    %v2162 = vunpack.c.h.b16 %v811
    %v2163 = vunpack.c.l.b16 %v812
    %v2164 = vunpack.c.h.b16 %v812
    %v2165 = vunpack.c.l.b16 %v813
    %v2166 = vunpack.c.h.b16 %v813
    %v2167 = vunpack.c.l.b16 %v814
    %v2168 = vunpack.c.h.b16 %v814
    %v2169 = vunpack.c.l.b16 %v815
    %v2170 = vunpack.c.h.b16 %v815
    %v2171 = vunpack.c.l.b16 %v816
    %v2172 = vunpack.c.h.b16 %v816
    %v2173 = vunpack.c.l.b16 %v817
    %v2174 = vunpack.c.h.b16 %v817
    %v2175 = vunpack.c.l.b16 %v818
    %v2176 = vunpack.c.h.b16 %v818
    %v2177 = vunpack.c.l.b16 %v819
    %v2178 = vunpack.c.h.b16 %v819
    %v2179 = vunpack.c.l.b16 %v820
    %v2180 = vunpack.c.h.b16 %v820
    %v2181 = vunpack.c.l.b16 %v821
    %v2182 = vunpack.c.h.b16 %v821
    %v2183 = vunpack.c.l.b16 %v822
    %v2184 = vunpack.c.h.b16 %v822
    %v2185 = vunpack.c.l.b16 %v823
    %v2186 = vunpack.c.h.b16 %v823
    %v2187 = vunpack.c.l.b16 %v824
    %v2188 = vunpack.c.h.b16 %v824
    %v2189 = vunpack.c.l.b16 %v825
    %v2190 = vunpack.c.h.b16 %v825
    %v2191 = vunpack.c.l.b16 %v826
    %v2192 = vunpack.c.h.b16 %v826
    %v2193 = vunpack.c.l.b16 %v827
    %v2194 = vunpack.c.h.b16 %v827
    %v2195 = vunpack.c.l.b16 %v828
    %v2196 = vunpack.c.h.b16 %v828
    %v2197 = vunpack.c.l.b16 %v829
    %v2198 = vunpack.c.h.b16 %v829
    %v2199 = vunpack.c.l.b16 %v830
    %v2200 = vunpack.c.h.b16 %v830
    %v2201 = vunpack.c.l.b16 %v831
    %v2202 = vunpack.c.h.b16 %v831
    %v2203 = vunpack.c.l.b16 %v832
    %v2204 = vunpack.c.h.b16 %v832
    %v2205 = vunpack.c.l.b16 %v833
    %v2206 = vunpack.c.h.b16 %v833
    %v2207 = vunpack.c.l.b16 %v834
    %v2208 = vunpack.c.h.b16 %v834
    %v2209 = vunpack.c.l.b16 %v835
    %v2210 = vunpack.c.h.b16 %v835
    %v2211 = vunpack.c.l.b16 %v836
    %v2212 = vunpack.c.h.b16 %v836
    %v2213 = vunpack.c.l.b16 %v837
    %v2214 = vunpack.c.h.b16 %v837
    %v2215 = vunpack.c.l.b16 %v838
    %v2216 = vunpack.c.h.b16 %v838
    %v2217 = vunpack.c.l.b16 %v839
    %v2218 = vunpack.c.h.b16 %v839
    %v2219 = vunpack.c.l.b16 %v840
    %v2220 = vunpack.c.h.b16 %v840
    %v2221 = vunpack.c.l.b16 %v841
    %v2222 = vunpack.c.h.b16 %v841
    %v2223 = vunpack.c.l.b16 %v842
    %v2224 = vunpack.c.h.b16 %v842
    %v2225 = vunpack.c.l.b16 %v843
    %v2226 = vunpack.c.h.b16 %v843
    %v2227 = vunpack.c.l.b16 %v844
    %v2228 = vunpack.c.h.b16 %v844
    %v2229 = vunpack.c.l.b16 %v845
    %v2230 = vunpack.c.h.b16 %v845
    %v2231 = vunpack.c.l.b16 %v846
    %v2232 = vunpack.c.h.b16 %v846
    %v2233 = vunpack.c.l.b16 %v847
    %v2234 = vunpack.c.h.b16 %v847
    %v2235 = vunpack.c.l.b16 %v848
    %v2236 = vunpack.c.h.b16 %v848
    %v2237 = vunpack.c.l.b16 %v849
    %v2238 = vunpack.c.h.b16 %v849
    %v2239 = vunpack.c.l.b16 %v850
    %v2240 = vunpack.c.h.b16 %v850
    %v2241 = vunpack.c.l.b16 %v851
    %v2242 = vunpack.c.h.b16 %v851
    %v2243 = vunpack.c.l.b16 %v852
    %v2244 = vunpack.c.h.b16 %v852
    %v2245 = vunpack.c.l.b16 %v853
    %v2246 = vunpack.c.h.b16 %v853
    %v2247 = vunpack.c.l.b16 %v854
    %v2248 = vunpack.c.h.b16 %v854
    %v2249 = vunpack.c.l.b16 %v855
    %v2250 = vunpack.c.h.b16 %v855
    %v2251 = vunpack.c.l.b16 %v856
    %v2252 = vunpack.c.h.b16 %v856
    %v2253 = vunpack.c.l.b16 %v857
    %v2254 = vunpack.c.h.b16 %v857
    %v2255 = vunpack.c.l.b16 %v858
    %v2256 = vunpack.c.h.b16 %v858
    %v2257 = vunpack.c.l.b16 %v859
    %v2258 = vunpack.c.h.b16 %v859
    %v2259 = vunpack.c.l.b16 %v860
    %v2260 = vunpack.c.h.b16 %v860
    %v2261 = vunpack.c.l.b16 %v861
    %v2262 = vunpack.c.h.b16 %v861
    %v2263 = vunpack.c.l.b16 %v862
    %v2264 = vunpack.c.h.b16 %v862
    %v2265 = vunpack.c.l.b16 %v863
    %v2266 = vunpack.c.h.b16 %v863
    %v2267 = vunpack.c.l.b16 %v864
    %v2268 = vunpack.c.h.b16 %v864
    %v2269 = vunpack.c.l.b16 %v865
    %v2270 = vunpack.c.h.b16 %v865
    %v2271 = vunpack.c.l.b16 %v866
    %v2272 = vunpack.c.h.b16 %v866
    %v2273 = vunpack.c.l.b16 %v867
    %v2274 = vunpack.c.h.b16 %v867
    %v2275 = vunpack.c.l.b16 %v868
    %v2276 = vunpack.c.h.b16 %v868
    %v2277 = vunpack.c.l.b16 %v869
    %v2278 = vunpack.c.h.b16 %v869
    %v2279 = vunpack.c.l.b16 %v870
    %v2280 = vunpack.c.h.b16 %v870
    %v2281 = vunpack.c.l.b16 %v871
    %v2282 = vunpack.c.h.b16 %v871
    %v2283 = vunpack.c.l.b16 %v872
    %v2284 = vunpack.c.h.b16 %v872
    %v2285 = vunpack.c.l.b16 %v873
    %v2286 = vunpack.c.h.b16 %v873
    %v2287 = vunpack.c.l.b16 %v874
    %v2288 = vunpack.c.h.b16 %v874
    %v2289 = vunpack.c.l.b16 %v875
    %v2290 = vunpack.c.h.b16 %v875
    %v2291 = vunpack.c.l.b16 %v876
    %v2292 = vunpack.c.h.b16 %v876
    %v2293 = vunpack.c.l.b16 %v877
    %v2294 = vunpack.c.h.b16 %v877
    %v2295 = vunpack.c.l.b16 %v878
    %v2296 = vunpack.c.h.b16 %v878
    %v2297 = vunpack.c.l.b16 %v879
    %v2298 = vunpack.c.h.b16 %v879
    %v2299 = vunpack.c.l.b16 %v880
    %v2300 = vunpack.c.h.b16 %v880
    %v2301 = vunpack.c.l.b16 %v881
    %v2302 = vunpack.c.h.b16 %v881
    %v2303 = vunpack.c.l.b16 %v882
    %v2304 = vunpack.c.h.b16 %v882
    %v2305 = vunpack.c.l.b16 %v883
    %v2306 = vunpack.c.h.b16 %v883
    %v2307 = vunpack.c.l.b16 %v884
    %v2308 = vunpack.c.h.b16 %v884
    %v2309 = vunpack.c.l.b16 %v885
    %v2310 = vunpack.c.h.b16 %v885
    %v2311 = vunpack.c.l.b16 %v886
    %v2312 = vunpack.c.h.b16 %v886
    %v2313 = vunpack.c.l.b16 %v887
    %v2314 = vunpack.c.h.b16 %v887
    %v2315 = vunpack.c.l.b16 %v888
    %v2316 = vunpack.c.h.b16 %v888
    %v2317 = vunpack.c.l.b16 %v889
    %v2318 = vunpack.c.h.b16 %v889
    %v2319 = vunpack.c.l.b16 %v890
    %v2320 = vunpack.c.h.b16 %v890
    %v2321 = vunpack.c.l.b16 %v891
    %v2322 = vunpack.c.h.b16 %v891
    %v2323 = vunpack.c.l.b16 %v892
    %v2324 = vunpack.c.h.b16 %v892
    %v2325 = vunpack.c.l.b16 %v893
    %v2326 = vunpack.c.h.b16 %v893
    %v2327 = vunpack.c.l.b16 %v894
    %v2328 = vunpack.c.h.b16 %v894
    %v2329 = vunpack.c.l.b16 %v895
    %v2330 = vunpack.c.h.b16 %v895
    %v2331 = vunpack.c.l.b16 %v896
    %v2332 = vunpack.c.h.b16 %v896
    %v2333 = vunpack.c.l.b16 %v897
    %v2334 = vunpack.c.h.b16 %v897
    %v2335 = vunpack.c.l.b16 %v898
    %v2336 = vunpack.c.h.b16 %v898
    %v2337 = vunpack.c.l.b16 %v899
    %v2338 = vunpack.c.h.b16 %v899
    %v2339 = vunpack.c.l.b16 %v900
    %v2340 = vunpack.c.h.b16 %v900
    %v2341 = vunpack.c.l.b16 %v901
    %v2342 = vunpack.c.h.b16 %v901
    %v2343 = vunpack.c.l.b16 %v902
    %v2344 = vunpack.c.h.b16 %v902
    %v2345 = vunpack.c.l.b16 %v903
    %v2346 = vunpack.c.h.b16 %v903
    %v2347 = vunpack.c.l.b16 %v904
    %v2348 = vunpack.c.h.b16 %v904
    %v2349 = vunpack.c.l.b16 %v905
    %v2350 = vunpack.c.h.b16 %v905
    %v2351 = vunpack.c.l.b16 %v906
    %v2352 = vunpack.c.h.b16 %v906
    %v2353 = vunpack.c.l.b16 %v907
    %v2354 = vunpack.c.h.b16 %v907
    %v2355 = vunpack.c.l.b16 %v908
    %v2356 = vunpack.c.h.b16 %v908
    %v2357 = vunpack.c.l.b16 %v909
    %v2358 = vunpack.c.h.b16 %v909
    %v2359 = vunpack.c.l.b16 %v910
    %v2360 = vunpack.c.h.b16 %v910
    %v2361 = vunpack.c.l.b16 %v911
    %v2362 = vunpack.c.h.b16 %v911
    %v2363 = vunpack.c.l.b16 %v912
    %v2364 = vunpack.c.h.b16 %v912
    %v2365 = vunpack.c.l.b16 %v913
    %v2366 = vunpack.c.h.b16 %v913
    %v2367 = vunpack.c.l.b16 %v914
    %v2368 = vunpack.c.h.b16 %v914
    %v2369 = vunpack.c.l.b16 %v915
    %v2370 = vunpack.c.h.b16 %v915
    %v2371 = vunpack.c.l.b16 %v916
    %v2372 = vunpack.c.h.b16 %v916
    %v2373 = vunpack.c.l.b16 %v917
    %v2374 = vunpack.c.h.b16 %v917
    %v2375 = vunpack.c.l.b16 %v918
    %v2376 = vunpack.c.h.b16 %v918
    %v2377 = vunpack.c.l.b16 %v919
    %v2378 = vunpack.c.h.b16 %v919
    %v2379 = vunpack.c.l.b16 %v920
    %v2380 = vunpack.c.h.b16 %v920
    %v2381 = vunpack.c.l.b16 %v921
    %v2382 = vunpack.c.h.b16 %v921
    %v2383 = vunpack.c.l.b16 %v922
    %v2384 = vunpack.c.h.b16 %v922
    %v2385 = vunpack.c.l.b16 %v923
    %v2386 = vunpack.c.h.b16 %v923
    %v2387 = vunpack.c.l.b16 %v924
    %v2388 = vunpack.c.h.b16 %v924
    %v2389 = vunpack.c.l.b16 %v925
    %v2390 = vunpack.c.h.b16 %v925
    %v2391 = vunpack.c.l.b16 %v926
    %v2392 = vunpack.c.h.b16 %v926
    %v2393 = vunpack.c.l.b16 %v927
    %v2394 = vunpack.c.h.b16 %v927
    %v2395 = vunpack.c.l.b16 %v928
    %v2396 = vunpack.c.h.b16 %v928
    %v2397 = vunpack.c.l.b16 %v929
    %v2398 = vunpack.c.h.b16 %v929
    %v2399 = vunpack.c.l.b16 %v930
    %v2400 = vunpack.c.h.b16 %v930
    %v2401 = vunpack.c.l.b16 %v931
    %v2402 = vunpack.c.h.b16 %v931
    %v2403 = vunpack.c.l.b16 %v932
    %v2404 = vunpack.c.h.b16 %v932
    %v2405 = vunpack.c.l.b16 %v933
    %v2406 = vunpack.c.h.b16 %v933
    %v2407 = vunpack.c.l.b16 %v934
    %v2408 = vunpack.c.h.b16 %v934
    %v2409 = vunpack.c.l.b16 %v935
    %v2410 = vunpack.c.h.b16 %v935
    %v2411 = vunpack.c.l.b16 %v936
    %v2412 = vunpack.c.h.b16 %v936
    %v2413 = vunpack.c.l.b16 %v937
    %v2414 = vunpack.c.h.b16 %v937
    %v2415 = vunpack.c.l.b16 %v938
    %v2416 = vunpack.c.h.b16 %v938
    %v2417 = vunpack.c.l.b16 %v939
    %v2418 = vunpack.c.h.b16 %v939
    %v2419 = vunpack.c.l.b16 %v940
    %v2420 = vunpack.c.h.b16 %v940
    %v2421 = vunpack.c.l.b16 %v941
    %v2422 = vunpack.c.h.b16 %v941
    %v2423 = vunpack.c.l.b16 %v942
    %v2424 = vunpack.c.h.b16 %v942
    %v2425 = vunpack.c.l.b16 %v943
    %v2426 = vunpack.c.h.b16 %v943
    %v2427 = vunpack.c.l.b16 %v944
    %v2428 = vunpack.c.h.b16 %v944
    %v2429 = vunpack.c.l.b16 %v945
    %v2430 = vunpack.c.h.b16 %v945
    %v2431 = vunpack.c.l.b16 %v946
    %v2432 = vunpack.c.h.b16 %v946
    %v2433 = vunpack.c.l.b16 %v947
    %v2434 = vunpack.c.h.b16 %v947
    %v2435 = vunpack.c.l.b16 %v948
    %v2436 = vunpack.c.h.b16 %v948
    %v2437 = vunpack.c.l.b16 %v949
    %v2438 = vunpack.c.h.b16 %v949
    %v2439 = vunpack.c.l.b16 %v950
    %v2440 = vunpack.c.h.b16 %v950
    %v2441 = vunpack.c.l.b16 %v951
    %v2442 = vunpack.c.h.b16 %v951
    %v2443 = vunpack.c.l.b16 %v952
    %v2444 = vunpack.c.h.b16 %v952
    %v2445 = vunpack.c.l.b16 %v953
    %v2446 = vunpack.c.h.b16 %v953
    %v2447 = vunpack.c.l.b16 %v954
    %v2448 = vunpack.c.h.b16 %v954
    %v2449 = vunpack.c.l.b16 %v955
    %v2450 = vunpack.c.h.b16 %v955
    %v2451 = vunpack.c.l.b16 %v956
    %v2452 = vunpack.c.h.b16 %v956
    %v2453 = vunpack.c.l.b16 %v957
    %v2454 = vunpack.c.h.b16 %v957
    %v2455 = vunpack.c.l.b16 %v958
    %v2456 = vunpack.c.h.b16 %v958
    %v2457 = vunpack.c.l.b16 %v959
    %v2458 = vunpack.c.h.b16 %v959
    %v2459 = vunpack.c.l.b16 %v960
    %v2460 = vunpack.c.h.b16 %v960
    %v2461 = vunpack.c.l.b16 %v961
    %v2462 = vunpack.c.h.b16 %v961
    %v2463 = vunpack.c.l.b16 %v962
    %v2464 = vunpack.c.h.b16 %v962
    %v2465 = vunpack.c.l.b16 %v963
    %v2466 = vunpack.c.h.b16 %v963
    %v2467 = vunpack.c.l.b16 %v964
    %v2468 = vunpack.c.h.b16 %v964
    %v2469 = vunpack.c.l.b16 %v965
    %v2470 = vunpack.c.h.b16 %v965
    %v2471 = vunpack.c.l.b16 %v966
    %v2472 = vunpack.c.h.b16 %v966
    %v2473 = vunpack.c.l.b16 %v967
    %v2474 = vunpack.c.h.b16 %v967
    %v2475 = vunpack.c.l.b16 %v968
    %v2476 = vunpack.c.h.b16 %v968
    %v2477 = vunpack.c.l.b16 %v969
    %v2478 = vunpack.c.h.b16 %v969
    %v2479 = vunpack.c.l.b16 %v970
    %v2480 = vunpack.c.h.b16 %v970
    %v2481 = vunpack.c.l.b16 %v971
    %v2482 = vunpack.c.h.b16 %v971
    %v2483 = vunpack.c.l.b16 %v972
    %v2484 = vunpack.c.h.b16 %v972
    %v2485 = vunpack.c.l.b16 %v973
    %v2486 = vunpack.c.h.b16 %v973
    %v2487 = vunpack.c.l.b16 %v974
    %v2488 = vunpack.c.h.b16 %v974
    %v2489 = vunpack.c.l.b16 %v975
    %v2490 = vunpack.c.h.b16 %v975
    %v2491 = vunpack.c.l.b16 %v976
    %v2492 = vunpack.c.h.b16 %v976
    %v2493 = vunpack.c.l.b16 %v977
    %v2494 = vunpack.c.h.b16 %v977
    %v2495 = vunpack.c.l.b16 %v978
    %v2496 = vunpack.c.h.b16 %v978
    %v2497 = vunpack.c.l.b16 %v979
    %v2498 = vunpack.c.h.b16 %v979
    %v2499 = vunpack.c.l.b16 %v980
    %v2500 = vunpack.c.h.b16 %v980
    %v2501 = vunpack.c.l.b16 %v981
    %v2502 = vunpack.c.h.b16 %v981
    %v2503 = vunpack.c.l.b16 %v982
    %v2504 = vunpack.c.h.b16 %v982
    %v2505 = vunpack.c.l.b16 %v983
    %v2506 = vunpack.c.h.b16 %v983
    %v2507 = vunpack.c.l.b16 %v984
    %v2508 = vunpack.c.h.b16 %v984
    %v2509 = vunpack.c.l.b16 %v985
    %v2510 = vunpack.c.h.b16 %v985
    %v2511 = vunpack.c.l.b16 %v986
    %v2512 = vunpack.c.h.b16 %v986
    %v2513 = vunpack.c.l.b16 %v987
    %v2514 = vunpack.c.h.b16 %v987
    %v2515 = vunpack.c.l.b16 %v988
    %v2516 = vunpack.c.h.b16 %v988
    %v2517 = vunpack.c.l.b16 %v989
    %v2518 = vunpack.c.h.b16 %v989
    %v2519 = vunpack.c.l.b16 %v990
    %v2520 = vunpack.c.h.b16 %v990
    %v2521 = vunpack.c.l.b16 %v991
    %v2522 = vunpack.c.h.b16 %v991
    %v2523 = vunpack.c.l.b16 %v992
    %v2524 = vunpack.c.h.b16 %v992
    %v2525 = vunpack.c.l.b16 %v993
    %v2526 = vunpack.c.h.b16 %v993
    %v2527 = vunpack.c.l.b16 %v994
    %v2528 = vunpack.c.h.b16 %v994
    %v2529 = vunpack.c.l.b16 %v995
    %v2530 = vunpack.c.h.b16 %v995
    %v2531 = vunpack.c.l.b16 %v996
    %v2532 = vunpack.c.h.b16 %v996
    %v2533 = vunpack.c.l.b16 %v997
    %v2534 = vunpack.c.h.b16 %v997
    %v2535 = vunpack.c.l.b16 %v998
    %v2536 = vunpack.c.h.b16 %v998
    %v2537 = vunpack.c.l.b16 %v999
    %v2538 = vunpack.c.h.b16 %v999
    %v2539 = vunpack.c.l.b16 %v1000
    %v2540 = vunpack.c.h.b16 %v1000
    %v2541 = vunpack.c.l.b16 %v1001
    %v2542 = vunpack.c.h.b16 %v1001
    %v2543 = vunpack.c.l.b16 %v1002
    %v2544 = vunpack.c.h.b16 %v1002
    %v2545 = vunpack.c.l.b16 %v1003
    %v2546 = vunpack.c.h.b16 %v1003
    %v2547 = vunpack.c.l.b16 %v1004
    %v2548 = vunpack.c.h.b16 %v1004
    %v2549 = vunpack.c.l.b16 %v1005
    %v2550 = vunpack.c.h.b16 %v1005
    %v2551 = vunpack.c.l.b16 %v1006
    %v2552 = vunpack.c.h.b16 %v1006
    %v2553 = vunpack.c.l.b16 %v1007
    %v2554 = vunpack.c.h.b16 %v1007
    %v2555 = vunpack.c.l.b16 %v1008
    %v2556 = vunpack.c.h.b16 %v1008
    %v2557 = vunpack.c.l.b16 %v1009
    %v2558 = vunpack.c.h.b16 %v1009
    %v2559 = vunpack.c.l.b16 %v1010
    %v2560 = vunpack.c.h.b16 %v1010
    %v2561 = vunpack.c.l.b16 %v1011
    %v2562 = vunpack.c.h.b16 %v1011
    %v2563 = vunpack.c.l.b16 %v1012
    %v2564 = vunpack.c.h.b16 %v1012
    %v2565 = vunpack.c.l.b16 %v1013
    %v2566 = vunpack.c.h.b16 %v1013
    %v2567 = vunpack.c.l.b16 %v1014
    %v2568 = vunpack.c.h.b16 %v1014
    %v2569 = vpack.c.b16 %v1553, %v1545
    %v2570 = vpack.c.b16 %v1554, %v1546
    %v2571 = vpack.c.b16 %v1555, %v1547
    %v2572 = vpack.c.b16 %v1556, %v1548
    %v2573 = vpack.c.b16 %v1557, %v1549
    %v2574 = vpack.c.b16 %v1558, %v1550
    %v2575 = vpack.c.b16 %v1559, %v1551
    %v2576 = vpack.c.b16 %v1560, %v1552
    %v2577 = vpack.c.b16 %v1569, %v1561
    %v2578 = vpack.c.b16 %v1570, %v1562
    %v2579 = vpack.c.b16 %v1571, %v1563
    %v2580 = vpack.c.b16 %v1572, %v1564
    %v2581 = vpack.c.b16 %v1573, %v1565
    %v2582 = vpack.c.b16 %v1574, %v1566
    %v2583 = vpack.c.b16 %v1575, %v1567
    %v2584 = vpack.c.b16 %v1576, %v1568
    %v2585 = vpack.c.b16 %v1585, %v1577
    %v2586 = vpack.c.b16 %v1586, %v1578
    %v2587 = vpack.c.b16 %v1587, %v1579
    %v2588 = vpack.c.b16 %v1588, %v1580
    %v2589 = vpack.c.b16 %v1589, %v1581
    %v2590 = vpack.c.b16 %v1590, %v1582
    %v2591 = vpack.c.b16 %v1591, %v1583
    %v2592 = vpack.c.b16 %v1592, %v1584
    %v2593 = vpack.c.b16 %v1601, %v1593
    %v2594 = vpack.c.b16 %v1602, %v1594
    %v2595 = vpack.c.b16 %v1603, %v1595
    %v2596 = vpack.c.b16 %v1604, %v1596
    %v2597 = vpack.c.b16 %v1605, %v1597
    %v2598 = vpack.c.b16 %v1606, %v1598
    %v2599 = vpack.c.b16 %v1607, %v1599
    %v2600 = vpack.c.b16 %v1608, %v1600
    %v2601 = vpack.c.b16 %v1617, %v1609
    %v2602 = vpack.c.b16 %v1618, %v1610
    %v2603 = vpack.c.b16 %v1619, %v1611
    %v2604 = vpack.c.b16 %v1620, %v1612
    %v2605 = vpack.c.b16 %v1621, %v1613
    %v2606 = vpack.c.b16 %v1622, %v1614
    %v2607 = vpack.c.b16 %v1623, %v1615
    %v2608 = vpack.c.b16 %v1624, %v1616
    %v2609 = vpack.c.b16 %v1633, %v1625
    %v2610 = vpack.c.b16 %v1634, %v1626
    %v2611 = vpack.c.b16 %v1635, %v1627
    %v2612 = vpack.c.b16 %v1636, %v1628
    %v2613 = vpack.c.b16 %v1637, %v1629
    %v2614 = vpack.c.b16 %v1638, %v1630
    %v2615 = vpack.c.b16 %v1639, %v1631
    %v2616 = vpack.c.b16 %v1640, %v1632
    %v2617 = vpack.c.b16 %v1649, %v1641
    %v2618 = vpack.c.b16 %v1650, %v1642
    %v2619 = vpack.c.b16 %v1651, %v1643
    %v2620 = vpack.c.b16 %v1652, %v1644
    %v2621 = vpack.c.b16 %v1653, %v1645
    %v2622 = vpack.c.b16 %v1654, %v1646
    %v2623 = vpack.c.b16 %v1655, %v1647
    %v2624 = vpack.c.b16 %v1656, %v1648
    %v2625 = vpack.c.b16 %v1665, %v1657
    %v2626 = vpack.c.b16 %v1666, %v1658
    %v2627 = vpack.c.b16 %v1667, %v1659
    %v2628 = vpack.c.b16 %v1668, %v1660
    %v2629 = vpack.c.b16 %v1669, %v1661
    %v2630 = vpack.c.b16 %v1670, %v1662
    %v2631 = vpack.c.b16 %v1671, %v1663
    %v2632 = vpack.c.b16 %v1672, %v1664
    %v2633 = vpack.c.b16 %v1681, %v1673
    %v2634 = vpack.c.b16 %v1682, %v1674
    %v2635 = vpack.c.b16 %v1683, %v1675
    %v2636 = vpack.c.b16 %v1684, %v1676
    %v2637 = vpack.c.b16 %v1685, %v1677
    %v2638 = vpack.c.b16 %v1686, %v1678
    %v2639 = vpack.c.b16 %v1687, %v1679
    %v2640 = vpack.c.b16 %v1688, %v1680
    %v2641 = vpack.c.b16 %v1697, %v1689
    %v2642 = vpack.c.b16 %v1698, %v1690
    %v2643 = vpack.c.b16 %v1699, %v1691
    %v2644 = vpack.c.b16 %v1700, %v1692
    %v2645 = vpack.c.b16 %v1701, %v1693
    %v2646 = vpack.c.b16 %v1702, %v1694
    %v2647 = vpack.c.b16 %v1703, %v1695
    %v2648 = vpack.c.b16 %v1704, %v1696
    %v2649 = vpack.c.b16 %v1713, %v1705
    %v2650 = vpack.c.b16 %v1714, %v1706
    %v2651 = vpack.c.b16 %v1715, %v1707
    %v2652 = vpack.c.b16 %v1716, %v1708
    %v2653 = vpack.c.b16 %v1717, %v1709
    %v2654 = vpack.c.b16 %v1718, %v1710
    %v2655 = vpack.c.b16 %v1719, %v1711
    %v2656 = vpack.c.b16 %v1720, %v1712
    %v2657 = vpack.c.b16 %v1729, %v1721
    %v2658 = vpack.c.b16 %v1730, %v1722
    %v2659 = vpack.c.b16 %v1731, %v1723
    %v2660 = vpack.c.b16 %v1732, %v1724
    %v2661 = vpack.c.b16 %v1733, %v1725
    %v2662 = vpack.c.b16 %v1734, %v1726
    %v2663 = vpack.c.b16 %v1735, %v1727
    %v2664 = vpack.c.b16 %v1736, %v1728
    %v2665 = vpack.c.b16 %v1745, %v1737
    %v2666 = vpack.c.b16 %v1746, %v1738
    %v2667 = vpack.c.b16 %v1747, %v1739
    %v2668 = vpack.c.b16 %v1748, %v1740
    %v2669 = vpack.c.b16 %v1749, %v1741
    %v2670 = vpack.c.b16 %v1750, %v1742
    %v2671 = vpack.c.b16 %v1751, %v1743
    %v2672 = vpack.c.b16 %v1752, %v1744
    %v2673 = vpack.c.b16 %v1761, %v1753
    %v2674 = vpack.c.b16 %v1762, %v1754
    %v2675 = vpack.c.b16 %v1763, %v1755
    %v2676 = vpack.c.b16 %v1764, %v1756
    %v2677 = vpack.c.b16 %v1765, %v1757
    %v2678 = vpack.c.b16 %v1766, %v1758
    %v2679 = vpack.c.b16 %v1767, %v1759
    %v2680 = vpack.c.b16 %v1768, %v1760
    %v2681 = vpack.c.b16 %v1777, %v1769
    %v2682 = vpack.c.b16 %v1778, %v1770
    %v2683 = vpack.c.b16 %v1779, %v1771
    %v2684 = vpack.c.b16 %v1780, %v1772
    %v2685 = vpack.c.b16 %v1781, %v1773
    %v2686 = vpack.c.b16 %v1782, %v1774
    %v2687 = vpack.c.b16 %v1783, %v1775
    %v2688 = vpack.c.b16 %v1784, %v1776
    %v2689 = vpack.c.b16 %v1793, %v1785
    %v2690 = vpack.c.b16 %v1794, %v1786
    %v2691 = vpack.c.b16 %v1795, %v1787
    %v2692 = vpack.c.b16 %v1796, %v1788
    %v2693 = vpack.c.b16 %v1797, %v1789
    %v2694 = vpack.c.b16 %v1798, %v1790
    %v2695 = vpack.c.b16 %v1799, %v1791
    %v2696 = vpack.c.b16 %v1800, %v1792
    %v2697 = vpack.c.b16 %v1809, %v1801
    %v2698 = vpack.c.b16 %v1810, %v1802
    %v2699 = vpack.c.b16 %v1811, %v1803
    %v2700 = vpack.c.b16 %v1812, %v1804
    %v2701 = vpack.c.b16 %v1813, %v1805
    %v2702 = vpack.c.b16 %v1814, %v1806
    %v2703 = vpack.c.b16 %v1815, %v1807
    %v2704 = vpack.c.b16 %v1816, %v1808
    %v2705 = vpack.c.b16 %v1825, %v1817
    %v2706 = vpack.c.b16 %v1826, %v1818
    %v2707 = vpack.c.b16 %v1827, %v1819
    %v2708 = vpack.c.b16 %v1828, %v1820
    %v2709 = vpack.c.b16 %v1829, %v1821
    %v2710 = vpack.c.b16 %v1830, %v1822
    %v2711 = vpack.c.b16 %v1831, %v1823
    %v2712 = vpack.c.b16 %v1832, %v1824
    %v2713 = vpack.c.b16 %v1841, %v1833
    %v2714 = vpack.c.b16 %v1842, %v1834
    %v2715 = vpack.c.b16 %v1843, %v1835
    %v2716 = vpack.c.b16 %v1844, %v1836
    %v2717 = vpack.c.b16 %v1845, %v1837
    %v2718 = vpack.c.b16 %v1846, %v1838
    %v2719 = vpack.c.b16 %v1847, %v1839
    %v2720 = vpack.c.b16 %v1848, %v1840
    %v2721 = vpack.c.b16 %v1857, %v1849
    %v2722 = vpack.c.b16 %v1858, %v1850
    %v2723 = vpack.c.b16 %v1859, %v1851
    %v2724 = vpack.c.b16 %v1860, %v1852
    %v2725 = vpack.c.b16 %v1861, %v1853
    %v2726 = vpack.c.b16 %v1862, %v1854
    %v2727 = vpack.c.b16 %v1863, %v1855
    %v2728 = vpack.c.b16 %v1864, %v1856
    %v2729 = vpack.c.b16 %v1873, %v1865
    %v2730 = vpack.c.b16 %v1874, %v1866
    %v2731 = vpack.c.b16 %v1875, %v1867
    %v2732 = vpack.c.b16 %v1876, %v1868
    %v2733 = vpack.c.b16 %v1877, %v1869
    %v2734 = vpack.c.b16 %v1878, %v1870
    %v2735 = vpack.c.b16 %v1879, %v1871
    %v2736 = vpack.c.b16 %v1880, %v1872
    %v2737 = vpack.c.b16 %v1889, %v1881
    %v2738 = vpack.c.b16 %v1890, %v1882
    %v2739 = vpack.c.b16 %v1891, %v1883
    %v2740 = vpack.c.b16 %v1892, %v1884
    %v2741 = vpack.c.b16 %v1893, %v1885
    %v2742 = vpack.c.b16 %v1894, %v1886
    %v2743 = vpack.c.b16 %v1895, %v1887
    %v2744 = vpack.c.b16 %v1896, %v1888
    %v2745 = vpack.c.b16 %v1905, %v1897
    %v2746 = vpack.c.b16 %v1906, %v1898
    %v2747 = vpack.c.b16 %v1907, %v1899
    %v2748 = vpack.c.b16 %v1908, %v1900
    %v2749 = vpack.c.b16 %v1909, %v1901
    %v2750 = vpack.c.b16 %v1910, %v1902
    %v2751 = vpack.c.b16 %v1911, %v1903
    %v2752 = vpack.c.b16 %v1912, %v1904
    %v2753 = vpack.c.b16 %v1921, %v1913
    %v2754 = vpack.c.b16 %v1922, %v1914
    %v2755 = vpack.c.b16 %v1923, %v1915
    %v2756 = vpack.c.b16 %v1924, %v1916
    %v2757 = vpack.c.b16 %v1925, %v1917
    %v2758 = vpack.c.b16 %v1926, %v1918
    %v2759 = vpack.c.b16 %v1927, %v1919
    %v2760 = vpack.c.b16 %v1928, %v1920
    %v2761 = vpack.c.b16 %v1937, %v1929
    %v2762 = vpack.c.b16 %v1938, %v1930
    %v2763 = vpack.c.b16 %v1939, %v1931
    %v2764 = vpack.c.b16 %v1940, %v1932
    %v2765 = vpack.c.b16 %v1941, %v1933
    %v2766 = vpack.c.b16 %v1942, %v1934
    %v2767 = vpack.c.b16 %v1943, %v1935
    %v2768 = vpack.c.b16 %v1944, %v1936
    %v2769 = vpack.c.b16 %v1953, %v1945
    %v2770 = vpack.c.b16 %v1954, %v1946
    %v2771 = vpack.c.b16 %v1955, %v1947
    %v2772 = vpack.c.b16 %v1956, %v1948
    %v2773 = vpack.c.b16 %v1957, %v1949
    %v2774 = vpack.c.b16 %v1958, %v1950
    %v2775 = vpack.c.b16 %v1959, %v1951
    %v2776 = vpack.c.b16 %v1960, %v1952
    %v2777 = vpack.c.b16 %v1969, %v1961
    %v2778 = vpack.c.b16 %v1970, %v1962
    %v2779 = vpack.c.b16 %v1971, %v1963
    %v2780 = vpack.c.b16 %v1972, %v1964
    %v2781 = vpack.c.b16 %v1973, %v1965
    %v2782 = vpack.c.b16 %v1974, %v1966
    %v2783 = vpack.c.b16 %v1975, %v1967
    %v2784 = vpack.c.b16 %v1976, %v1968
    %v2785 = vpack.c.b16 %v1985, %v1977
    %v2786 = vpack.c.b16 %v1986, %v1978
    %v2787 = vpack.c.b16 %v1987, %v1979
    %v2788 = vpack.c.b16 %v1988, %v1980
    %v2789 = vpack.c.b16 %v1989, %v1981
    %v2790 = vpack.c.b16 %v1990, %v1982
    %v2791 = vpack.c.b16 %v1991, %v1983
    %v2792 = vpack.c.b16 %v1992, %v1984
    %v2793 = vpack.c.b16 %v2001, %v1993
    %v2794 = vpack.c.b16 %v2002, %v1994
    %v2795 = vpack.c.b16 %v2003, %v1995
    %v2796 = vpack.c.b16 %v2004, %v1996
    %v2797 = vpack.c.b16 %v2005, %v1997
    %v2798 = vpack.c.b16 %v2006, %v1998
    %v2799 = vpack.c.b16 %v2007, %v1999
    %v2800 = vpack.c.b16 %v2008, %v2000
    %v2801 = vpack.c.b16 %v2017, %v2009
    %v2802 = vpack.c.b16 %v2018, %v2010
    %v2803 = vpack.c.b16 %v2019, %v2011
    %v2804 = vpack.c.b16 %v2020, %v2012
    %v2805 = vpack.c.b16 %v2021, %v2013
    %v2806 = vpack.c.b16 %v2022, %v2014
    %v2807 = vpack.c.b16 %v2023, %v2015
    %v2808 = vpack.c.b16 %v2024, %v2016
    %v2809 = vpack.c.b16 %v2033, %v2025
    %v2810 = vpack.c.b16 %v2034, %v2026
    %v2811 = vpack.c.b16 %v2035, %v2027
    %v2812 = vpack.c.b16 %v2036, %v2028
    %v2813 = vpack.c.b16 %v2037, %v2029
    %v2814 = vpack.c.b16 %v2038, %v2030
    %v2815 = vpack.c.b16 %v2039, %v2031
    %v2816 = vpack.c.b16 %v2040, %v2032
    %v2817 = vpack.c.b16 %v2049, %v2041
    %v2818 = vpack.c.b16 %v2050, %v2042
    %v2819 = vpack.c.b16 %v2051, %v2043
    %v2820 = vpack.c.b16 %v2052, %v2044
    %v2821 = vpack.c.b16 %v2053, %v2045
    %v2822 = vpack.c.b16 %v2054, %v2046
    %v2823 = vpack.c.b16 %v2055, %v2047
    %v2824 = vpack.c.b16 %v2056, %v2048
    %v2825 = vpack.c.b16 %v2065, %v2057
    %v2826 = vpack.c.b16 %v2066, %v2058
    %v2827 = vpack.c.b16 %v2067, %v2059
    %v2828 = vpack.c.b16 %v2068, %v2060
    %v2829 = vpack.c.b16 %v2069, %v2061
    %v2830 = vpack.c.b16 %v2070, %v2062
    %v2831 = vpack.c.b16 %v2071, %v2063
    %v2832 = vpack.c.b16 %v2072, %v2064
    %v2833 = vpack.c.b16 %v2081, %v2073
    %v2834 = vpack.c.b16 %v2082, %v2074
    %v2835 = vpack.c.b16 %v2083, %v2075
    %v2836 = vpack.c.b16 %v2084, %v2076
    %v2837 = vpack.c.b16 %v2085, %v2077
    %v2838 = vpack.c.b16 %v2086, %v2078
    %v2839 = vpack.c.b16 %v2087, %v2079
    %v2840 = vpack.c.b16 %v2088, %v2080
    %v2841 = vpack.c.b16 %v2097, %v2089
    %v2842 = vpack.c.b16 %v2098, %v2090
    %v2843 = vpack.c.b16 %v2099, %v2091
    %v2844 = vpack.c.b16 %v2100, %v2092
    %v2845 = vpack.c.b16 %v2101, %v2093
    %v2846 = vpack.c.b16 %v2102, %v2094
    %v2847 = vpack.c.b16 %v2103, %v2095
    %v2848 = vpack.c.b16 %v2104, %v2096
    %v2849 = vpack.c.b16 %v2113, %v2105
    %v2850 = vpack.c.b16 %v2114, %v2106
    %v2851 = vpack.c.b16 %v2115, %v2107
    %v2852 = vpack.c.b16 %v2116, %v2108
    %v2853 = vpack.c.b16 %v2117, %v2109
    %v2854 = vpack.c.b16 %v2118, %v2110
    %v2855 = vpack.c.b16 %v2119, %v2111
    %v2856 = vpack.c.b16 %v2120, %v2112
    %v2857 = vpack.c.b16 %v2129, %v2121
    %v2858 = vpack.c.b16 %v2130, %v2122
    %v2859 = vpack.c.b16 %v2131, %v2123
    %v2860 = vpack.c.b16 %v2132, %v2124
    %v2861 = vpack.c.b16 %v2133, %v2125
    %v2862 = vpack.c.b16 %v2134, %v2126
    %v2863 = vpack.c.b16 %v2135, %v2127
    %v2864 = vpack.c.b16 %v2136, %v2128
    %v2865 = vpack.c.b16 %v2145, %v2137
    %v2866 = vpack.c.b16 %v2146, %v2138
    %v2867 = vpack.c.b16 %v2147, %v2139
    %v2868 = vpack.c.b16 %v2148, %v2140
    %v2869 = vpack.c.b16 %v2149, %v2141
    %v2870 = vpack.c.b16 %v2150, %v2142
    %v2871 = vpack.c.b16 %v2151, %v2143
    %v2872 = vpack.c.b16 %v2152, %v2144
    %v2873 = vpack.c.b16 %v2161, %v2153
    %v2874 = vpack.c.b16 %v2162, %v2154
    %v2875 = vpack.c.b16 %v2163, %v2155
    %v2876 = vpack.c.b16 %v2164, %v2156
    %v2877 = vpack.c.b16 %v2165, %v2157
    %v2878 = vpack.c.b16 %v2166, %v2158
    %v2879 = vpack.c.b16 %v2167, %v2159
    %v2880 = vpack.c.b16 %v2168, %v2160
    %v2881 = vpack.c.b16 %v2177, %v2169
    %v2882 = vpack.c.b16 %v2178, %v2170
    %v2883 = vpack.c.b16 %v2179, %v2171
    %v2884 = vpack.c.b16 %v2180, %v2172
    %v2885 = vpack.c.b16 %v2181, %v2173
    %v2886 = vpack.c.b16 %v2182, %v2174
    %v2887 = vpack.c.b16 %v2183, %v2175
    %v2888 = vpack.c.b16 %v2184, %v2176
    %v2889 = vpack.c.b16 %v2193, %v2185
    %v2890 = vpack.c.b16 %v2194, %v2186
    %v2891 = vpack.c.b16 %v2195, %v2187
    %v2892 = vpack.c.b16 %v2196, %v2188
    %v2893 = vpack.c.b16 %v2197, %v2189
    %v2894 = vpack.c.b16 %v2198, %v2190
    %v2895 = vpack.c.b16 %v2199, %v2191
    %v2896 = vpack.c.b16 %v2200, %v2192
    %v2897 = vpack.c.b16 %v2209, %v2201
    %v2898 = vpack.c.b16 %v2210, %v2202
    %v2899 = vpack.c.b16 %v2211, %v2203
    %v2900 = vpack.c.b16 %v2212, %v2204
    %v2901 = vpack.c.b16 %v2213, %v2205
    %v2902 = vpack.c.b16 %v2214, %v2206
    %v2903 = vpack.c.b16 %v2215, %v2207
    %v2904 = vpack.c.b16 %v2216, %v2208
    %v2905 = vpack.c.b16 %v2225, %v2217
    %v2906 = vpack.c.b16 %v2226, %v2218
    %v2907 = vpack.c.b16 %v2227, %v2219
    %v2908 = vpack.c.b16 %v2228, %v2220
    %v2909 = vpack.c.b16 %v2229, %v2221
    %v2910 = vpack.c.b16 %v2230, %v2222
    %v2911 = vpack.c.b16 %v2231, %v2223
    %v2912 = vpack.c.b16 %v2232, %v2224
    %v2913 = vpack.c.b16 %v2241, %v2233
    %v2914 = vpack.c.b16 %v2242, %v2234
    %v2915 = vpack.c.b16 %v2243, %v2235
    %v2916 = vpack.c.b16 %v2244, %v2236
    %v2917 = vpack.c.b16 %v2245, %v2237
    %v2918 = vpack.c.b16 %v2246, %v2238
    %v2919 = vpack.c.b16 %v2247, %v2239
    %v2920 = vpack.c.b16 %v2248, %v2240
    %v2921 = vpack.c.b16 %v2257, %v2249
    %v2922 = vpack.c.b16 %v2258, %v2250
    %v2923 = vpack.c.b16 %v2259, %v2251
    %v2924 = vpack.c.b16 %v2260, %v2252
    %v2925 = vpack.c.b16 %v2261, %v2253
    %v2926 = vpack.c.b16 %v2262, %v2254
    %v2927 = vpack.c.b16 %v2263, %v2255
    %v2928 = vpack.c.b16 %v2264, %v2256
    %v2929 = vpack.c.b16 %v2273, %v2265
    %v2930 = vpack.c.b16 %v2274, %v2266
    %v2931 = vpack.c.b16 %v2275, %v2267
    %v2932 = vpack.c.b16 %v2276, %v2268
    %v2933 = vpack.c.b16 %v2277, %v2269
    %v2934 = vpack.c.b16 %v2278, %v2270
    %v2935 = vpack.c.b16 %v2279, %v2271
    %v2936 = vpack.c.b16 %v2280, %v2272
    %v2937 = vpack.c.b16 %v2289, %v2281
    %v2938 = vpack.c.b16 %v2290, %v2282
    %v2939 = vpack.c.b16 %v2291, %v2283
    %v2940 = vpack.c.b16 %v2292, %v2284
    %v2941 = vpack.c.b16 %v2293, %v2285
    %v2942 = vpack.c.b16 %v2294, %v2286
    %v2943 = vpack.c.b16 %v2295, %v2287
    %v2944 = vpack.c.b16 %v2296, %v2288
    %v2945 = vpack.c.b16 %v2305, %v2297
    %v2946 = vpack.c.b16 %v2306, %v2298
    %v2947 = vpack.c.b16 %v2307, %v2299
    %v2948 = vpack.c.b16 %v2308, %v2300
    %v2949 = vpack.c.b16 %v2309, %v2301
    %v2950 = vpack.c.b16 %v2310, %v2302
    %v2951 = vpack.c.b16 %v2311, %v2303
    %v2952 = vpack.c.b16 %v2312, %v2304
    %v2953 = vpack.c.b16 %v2321, %v2313
    %v2954 = vpack.c.b16 %v2322, %v2314
    %v2955 = vpack.c.b16 %v2323, %v2315
    %v2956 = vpack.c.b16 %v2324, %v2316
    %v2957 = vpack.c.b16 %v2325, %v2317
    %v2958 = vpack.c.b16 %v2326, %v2318
    %v2959 = vpack.c.b16 %v2327, %v2319
    %v2960 = vpack.c.b16 %v2328, %v2320
    %v2961 = vpack.c.b16 %v2337, %v2329
    %v2962 = vpack.c.b16 %v2338, %v2330
    %v2963 = vpack.c.b16 %v2339, %v2331
    %v2964 = vpack.c.b16 %v2340, %v2332
    %v2965 = vpack.c.b16 %v2341, %v2333
    %v2966 = vpack.c.b16 %v2342, %v2334
    %v2967 = vpack.c.b16 %v2343, %v2335
    %v2968 = vpack.c.b16 %v2344, %v2336
    %v2969 = vpack.c.b16 %v2353, %v2345
    %v2970 = vpack.c.b16 %v2354, %v2346
    %v2971 = vpack.c.b16 %v2355, %v2347
    %v2972 = vpack.c.b16 %v2356, %v2348
    %v2973 = vpack.c.b16 %v2357, %v2349
    %v2974 = vpack.c.b16 %v2358, %v2350
    %v2975 = vpack.c.b16 %v2359, %v2351
    %v2976 = vpack.c.b16 %v2360, %v2352
    %v2977 = vpack.c.b16 %v2369, %v2361
    %v2978 = vpack.c.b16 %v2370, %v2362
    %v2979 = vpack.c.b16 %v2371, %v2363
    %v2980 = vpack.c.b16 %v2372, %v2364
    %v2981 = vpack.c.b16 %v2373, %v2365
    %v2982 = vpack.c.b16 %v2374, %v2366
    %v2983 = vpack.c.b16 %v2375, %v2367
    %v2984 = vpack.c.b16 %v2376, %v2368
    %v2985 = vpack.c.b16 %v2385, %v2377
    %v2986 = vpack.c.b16 %v2386, %v2378
    %v2987 = vpack.c.b16 %v2387, %v2379
    %v2988 = vpack.c.b16 %v2388, %v2380
    %v2989 = vpack.c.b16 %v2389, %v2381
    %v2990 = vpack.c.b16 %v2390, %v2382
    %v2991 = vpack.c.b16 %v2391, %v2383
    %v2992 = vpack.c.b16 %v2392, %v2384
    %v2993 = vpack.c.b16 %v2401, %v2393
    %v2994 = vpack.c.b16 %v2402, %v2394
    %v2995 = vpack.c.b16 %v2403, %v2395
    %v2996 = vpack.c.b16 %v2404, %v2396
    %v2997 = vpack.c.b16 %v2405, %v2397
    %v2998 = vpack.c.b16 %v2406, %v2398
    %v2999 = vpack.c.b16 %v2407, %v2399
    %v3000 = vpack.c.b16 %v2408, %v2400
    %v3001 = vpack.c.b16 %v2417, %v2409
    %v3002 = vpack.c.b16 %v2418, %v2410
    %v3003 = vpack.c.b16 %v2419, %v2411
    %v3004 = vpack.c.b16 %v2420, %v2412
    %v3005 = vpack.c.b16 %v2421, %v2413
    %v3006 = vpack.c.b16 %v2422, %v2414
    %v3007 = vpack.c.b16 %v2423, %v2415
    %v3008 = vpack.c.b16 %v2424, %v2416
    %v3009 = vpack.c.b16 %v2433, %v2425
    %v3010 = vpack.c.b16 %v2434, %v2426
    %v3011 = vpack.c.b16 %v2435, %v2427
    %v3012 = vpack.c.b16 %v2436, %v2428
    %v3013 = vpack.c.b16 %v2437, %v2429
    %v3014 = vpack.c.b16 %v2438, %v2430
    %v3015 = vpack.c.b16 %v2439, %v2431
    %v3016 = vpack.c.b16 %v2440, %v2432
    %v3017 = vpack.c.b16 %v2449, %v2441
    %v3018 = vpack.c.b16 %v2450, %v2442
    %v3019 = vpack.c.b16 %v2451, %v2443
    %v3020 = vpack.c.b16 %v2452, %v2444
    %v3021 = vpack.c.b16 %v2453, %v2445
    %v3022 = vpack.c.b16 %v2454, %v2446
    %v3023 = vpack.c.b16 %v2455, %v2447
    %v3024 = vpack.c.b16 %v2456, %v2448
    %v3025 = vpack.c.b16 %v2465, %v2457
    %v3026 = vpack.c.b16 %v2466, %v2458
    %v3027 = vpack.c.b16 %v2467, %v2459
    %v3028 = vpack.c.b16 %v2468, %v2460
    %v3029 = vpack.c.b16 %v2469, %v2461
    %v3030 = vpack.c.b16 %v2470, %v2462
    %v3031 = vpack.c.b16 %v2471, %v2463
    %v3032 = vpack.c.b16 %v2472, %v2464
    %v3033 = vpack.c.b16 %v2481, %v2473
    %v3034 = vpack.c.b16 %v2482, %v2474
    %v3035 = vpack.c.b16 %v2483, %v2475
    %v3036 = vpack.c.b16 %v2484, %v2476
    %v3037 = vpack.c.b16 %v2485, %v2477
    %v3038 = vpack.c.b16 %v2486, %v2478
    %v3039 = vpack.c.b16 %v2487, %v2479
    %v3040 = vpack.c.b16 %v2488, %v2480
    %v3041 = vpack.c.b16 %v2497, %v2489
    %v3042 = vpack.c.b16 %v2498, %v2490
    %v3043 = vpack.c.b16 %v2499, %v2491
    %v3044 = vpack.c.b16 %v2500, %v2492
    %v3045 = vpack.c.b16 %v2501, %v2493
    %v3046 = vpack.c.b16 %v2502, %v2494
    %v3047 = vpack.c.b16 %v2503, %v2495
    %v3048 = vpack.c.b16 %v2504, %v2496
    %v3049 = vpack.c.b16 %v2513, %v2505
    %v3050 = vpack.c.b16 %v2514, %v2506
    %v3051 = vpack.c.b16 %v2515, %v2507
    %v3052 = vpack.c.b16 %v2516, %v2508
    %v3053 = vpack.c.b16 %v2517, %v2509
    %v3054 = vpack.c.b16 %v2518, %v2510
    %v3055 = vpack.c.b16 %v2519, %v2511
    %v3056 = vpack.c.b16 %v2520, %v2512
    %v3057 = vpack.c.b16 %v2529, %v2521
    %v3058 = vpack.c.b16 %v2530, %v2522
    %v3059 = vpack.c.b16 %v2531, %v2523
    %v3060 = vpack.c.b16 %v2532, %v2524
    %v3061 = vpack.c.b16 %v2533, %v2525
    %v3062 = vpack.c.b16 %v2534, %v2526
    %v3063 = vpack.c.b16 %v2535, %v2527
    %v3064 = vpack.c.b16 %v2536, %v2528
    %v3065 = vpack.c.b16 %v2545, %v2537
    %v3066 = vpack.c.b16 %v2546, %v2538
    %v3067 = vpack.c.b16 %v2547, %v2539
    %v3068 = vpack.c.b16 %v2548, %v2540
    %v3069 = vpack.c.b16 %v2549, %v2541
    %v3070 = vpack.c.b16 %v2550, %v2542
    %v3071 = vpack.c.b16 %v2551, %v2543
    %v3072 = vpack.c.b16 %v2552, %v2544
    %v3073 = vpack.c.b16 %v2561, %v2553
    %v3074 = vpack.c.b16 %v2562, %v2554
    %v3075 = vpack.c.b16 %v2563, %v2555
    %v3076 = vpack.c.b16 %v2564, %v2556
    %v3077 = vpack.c.b16 %v2565, %v2557
    %v3078 = vpack.c.b16 %v2566, %v2558
    %v3079 = vpack.c.b16 %v2567, %v2559
    %v3080 = vpack.c.b16 %v2568, %v2560
    %3593 = vmatpush.bf16.msra.mxu0 %v2625
    %3594 = vmatpush.bf16.msra.mxu0 %v2617
    %3595 = vmatpush.bf16.msra.mxu0 %v2609
    %3596 = vmatpush.bf16.msra.mxu0 %v2601
    %3597 = vmatpush.bf16.msra.mxu0 %v2593
    %3598 = vmatpush.bf16.msra.mxu0 %v2585
    %3599 = vmatpush.bf16.msra.mxu0 %v2577
    %3600 = vmatpush.bf16.msra.mxu0 %v2569
    %3601 = vmatmul.bf16.gmra.mxu0 %v495
    %v3602 = vpop.f32.mrf.mxu0
    %v3603 = vadd.f32 %v1017, %v3602
    %v3604 = vpop.f32.mrf.mxu0
    %3605 = vdwg.mxu0
    %3606 = vmatpush.bf16.msra.mxu0 %v2689
    %3607 = vmatpush.bf16.msra.mxu0 %v2681
    %3608 = vmatpush.bf16.msra.mxu0 %v2673
    %3609 = vmatpush.bf16.msra.mxu0 %v2665
    %3610 = vmatpush.bf16.msra.mxu0 %v2657
    %3611 = vmatpush.bf16.msra.mxu0 %v2649
    %3612 = vmatpush.bf16.msra.mxu0 %v2641
    %3613 = vmatpush.bf16.msra.mxu0 %v2633
    %3614 = vmatmul.bf16.gmra.mxu0 %v496
    %v3615 = vpop.f32.mrf.mxu0
    %v3616 = vadd.f32 %v3603, %v3615
    %v3617 = vpop.f32.mrf.mxu0
    %3618 = vdwg.mxu0
    %3619 = vmatpush.bf16.msra.mxu0 %v2753
    %3620 = vmatpush.bf16.msra.mxu0 %v2745
    %3621 = vmatpush.bf16.msra.mxu0 %v2737
    %3622 = vmatpush.bf16.msra.mxu0 %v2729
    %3623 = vmatpush.bf16.msra.mxu0 %v2721
    %3624 = vmatpush.bf16.msra.mxu0 %v2713
    %3625 = vmatpush.bf16.msra.mxu0 %v2705
    %3626 = vmatpush.bf16.msra.mxu0 %v2697
    %3627 = vmatmul.bf16.gmra.mxu0 %v497
    %v3628 = vpop.f32.mrf.mxu0
    %v3629 = vadd.f32 %v3616, %v3628
    %v3630 = vpop.f32.mrf.mxu0
    %3631 = vdwg.mxu0
    %3632 = vmatpush.bf16.msra.mxu0 %v2817
    %3633 = vmatpush.bf16.msra.mxu0 %v2809
    %3634 = vmatpush.bf16.msra.mxu0 %v2801
    %3635 = vmatpush.bf16.msra.mxu0 %v2793
    %3636 = vmatpush.bf16.msra.mxu0 %v2785
    %3637 = vmatpush.bf16.msra.mxu0 %v2777
    %3638 = vmatpush.bf16.msra.mxu0 %v2769
    %3639 = vmatpush.bf16.msra.mxu0 %v2761
    %3640 = vmatmul.bf16.gmra.mxu0 %v498
    %v3641 = vpop.f32.mrf.mxu0
    %v3642 = vadd.f32 %v3629, %v3641
    %v3643 = vpop.f32.mrf.mxu0
    %3644 = vdwg.mxu0
    %3645 = vmatpush.bf16.msra.mxu0 %v2881
    %3646 = vmatpush.bf16.msra.mxu0 %v2873
    %3647 = vmatpush.bf16.msra.mxu0 %v2865
    %3648 = vmatpush.bf16.msra.mxu0 %v2857
    %3649 = vmatpush.bf16.msra.mxu0 %v2849
    %3650 = vmatpush.bf16.msra.mxu0 %v2841
    %3651 = vmatpush.bf16.msra.mxu0 %v2833
    %3652 = vmatpush.bf16.msra.mxu0 %v2825
    %3653 = vmatmul.bf16.gmra.mxu0 %v499
    %v3654 = vpop.f32.mrf.mxu0
    %v3655 = vadd.f32 %v3642, %v3654
    %v3656 = vpop.f32.mrf.mxu0
    %3657 = vdwg.mxu0
    %3658 = vmatpush.bf16.msra.mxu0 %v2945
    %3659 = vmatpush.bf16.msra.mxu0 %v2937
    %3660 = vmatpush.bf16.msra.mxu0 %v2929
    %3661 = vmatpush.bf16.msra.mxu0 %v2921
    %3662 = vmatpush.bf16.msra.mxu0 %v2913
    %3663 = vmatpush.bf16.msra.mxu0 %v2905
    %3664 = vmatpush.bf16.msra.mxu0 %v2897
    %3665 = vmatpush.bf16.msra.mxu0 %v2889
    %3666 = vmatmul.bf16.gmra.mxu0 %v500
    %v3667 = vpop.f32.mrf.mxu0
    %v3668 = vadd.f32 %v3655, %v3667
    %v3669 = vpop.f32.mrf.mxu0
    %3670 = vdwg.mxu0
    %3671 = vmatpush.bf16.msra.mxu0 %v3009
    %3672 = vmatpush.bf16.msra.mxu0 %v3001
    %3673 = vmatpush.bf16.msra.mxu0 %v2993
    %3674 = vmatpush.bf16.msra.mxu0 %v2985
    %3675 = vmatpush.bf16.msra.mxu0 %v2977
    %3676 = vmatpush.bf16.msra.mxu0 %v2969
    %3677 = vmatpush.bf16.msra.mxu0 %v2961
    %3678 = vmatpush.bf16.msra.mxu0 %v2953
    %3679 = vmatmul.bf16.gmra.mxu0 %v501
    %v3680 = vpop.f32.mrf.mxu0
    %v3681 = vadd.f32 %v3668, %v3680
    %v3682 = vpop.f32.mrf.mxu0
    %3683 = vdwg.mxu0
    %3684 = vmatpush.bf16.msra.mxu0 %v3073
    %3685 = vmatpush.bf16.msra.mxu0 %v3065
    %3686 = vmatpush.bf16.msra.mxu0 %v3057
    %3687 = vmatpush.bf16.msra.mxu0 %v3049
    %3688 = vmatpush.bf16.msra.mxu0 %v3041
    %3689 = vmatpush.bf16.msra.mxu0 %v3033
    %3690 = vmatpush.bf16.msra.mxu0 %v3025
    %3691 = vmatpush.bf16.msra.mxu0 %v3017
    %3692 = vmatmul.bf16.gmra.mxu0 %v502
    %v3693 = vpop.f32.mrf.mxu0
    %v3694 = vadd.f32 %v3681, %v3693
    %v3695 = vpop.f32.mrf.mxu0
    %3696 = vdwg.mxu0
    %3697 = vmatpush.bf16.msra.mxu0 %v2626
    %3698 = vmatpush.bf16.msra.mxu0 %v2618
    %3699 = vmatpush.bf16.msra.mxu0 %v2610
    %3700 = vmatpush.bf16.msra.mxu0 %v2602
    %3701 = vmatpush.bf16.msra.mxu0 %v2594
    %3702 = vmatpush.bf16.msra.mxu0 %v2586
    %3703 = vmatpush.bf16.msra.mxu0 %v2578
    %3704 = vmatpush.bf16.msra.mxu0 %v2570
    %3705 = vmatmul.bf16.gmra.mxu0 %v495
    %v3706 = vpop.f32.mrf.mxu0
    %v3707 = vadd.f32 %v1018, %v3706
    %v3708 = vpop.f32.mrf.mxu0
    %3709 = vdwg.mxu0
    %3710 = vmatpush.bf16.msra.mxu0 %v2690
    %3711 = vmatpush.bf16.msra.mxu0 %v2682
    %3712 = vmatpush.bf16.msra.mxu0 %v2674
    %3713 = vmatpush.bf16.msra.mxu0 %v2666
    %3714 = vmatpush.bf16.msra.mxu0 %v2658
    %3715 = vmatpush.bf16.msra.mxu0 %v2650
    %3716 = vmatpush.bf16.msra.mxu0 %v2642
    %3717 = vmatpush.bf16.msra.mxu0 %v2634
    %3718 = vmatmul.bf16.gmra.mxu0 %v496
    %v3719 = vpop.f32.mrf.mxu0
    %v3720 = vadd.f32 %v3707, %v3719
    %v3721 = vpop.f32.mrf.mxu0
    %3722 = vdwg.mxu0
    %3723 = vmatpush.bf16.msra.mxu0 %v2754
    %3724 = vmatpush.bf16.msra.mxu0 %v2746
    %3725 = vmatpush.bf16.msra.mxu0 %v2738
    %3726 = vmatpush.bf16.msra.mxu0 %v2730
    %3727 = vmatpush.bf16.msra.mxu0 %v2722
    %3728 = vmatpush.bf16.msra.mxu0 %v2714
    %3729 = vmatpush.bf16.msra.mxu0 %v2706
    %3730 = vmatpush.bf16.msra.mxu0 %v2698
    %3731 = vmatmul.bf16.gmra.mxu0 %v497
    %v3732 = vpop.f32.mrf.mxu0
    %v3733 = vadd.f32 %v3720, %v3732
    %v3734 = vpop.f32.mrf.mxu0
    %3735 = vdwg.mxu0
    %3736 = vmatpush.bf16.msra.mxu0 %v2818
    %3737 = vmatpush.bf16.msra.mxu0 %v2810
    %3738 = vmatpush.bf16.msra.mxu0 %v2802
    %3739 = vmatpush.bf16.msra.mxu0 %v2794
    %3740 = vmatpush.bf16.msra.mxu0 %v2786
    %3741 = vmatpush.bf16.msra.mxu0 %v2778
    %3742 = vmatpush.bf16.msra.mxu0 %v2770
    %3743 = vmatpush.bf16.msra.mxu0 %v2762
    %3744 = vmatmul.bf16.gmra.mxu0 %v498
    %v3745 = vpop.f32.mrf.mxu0
    %v3746 = vadd.f32 %v3733, %v3745
    %v3747 = vpop.f32.mrf.mxu0
    %3748 = vdwg.mxu0
    %3749 = vmatpush.bf16.msra.mxu0 %v2882
    %3750 = vmatpush.bf16.msra.mxu0 %v2874
    %3751 = vmatpush.bf16.msra.mxu0 %v2866
    %3752 = vmatpush.bf16.msra.mxu0 %v2858
    %3753 = vmatpush.bf16.msra.mxu0 %v2850
    %3754 = vmatpush.bf16.msra.mxu0 %v2842
    %3755 = vmatpush.bf16.msra.mxu0 %v2834
    %3756 = vmatpush.bf16.msra.mxu0 %v2826
    %3757 = vmatmul.bf16.gmra.mxu0 %v499
    %v3758 = vpop.f32.mrf.mxu0
    %v3759 = vadd.f32 %v3746, %v3758
    %v3760 = vpop.f32.mrf.mxu0
    %3761 = vdwg.mxu0
    %3762 = vmatpush.bf16.msra.mxu0 %v2946
    %3763 = vmatpush.bf16.msra.mxu0 %v2938
    %3764 = vmatpush.bf16.msra.mxu0 %v2930
    %3765 = vmatpush.bf16.msra.mxu0 %v2922
    %3766 = vmatpush.bf16.msra.mxu0 %v2914
    %3767 = vmatpush.bf16.msra.mxu0 %v2906
    %3768 = vmatpush.bf16.msra.mxu0 %v2898
    %3769 = vmatpush.bf16.msra.mxu0 %v2890
    %3770 = vmatmul.bf16.gmra.mxu0 %v500
    %v3771 = vpop.f32.mrf.mxu0
    %v3772 = vadd.f32 %v3759, %v3771
    %v3773 = vpop.f32.mrf.mxu0
    %3774 = vdwg.mxu0
    %3775 = vmatpush.bf16.msra.mxu0 %v3010
    %3776 = vmatpush.bf16.msra.mxu0 %v3002
    %3777 = vmatpush.bf16.msra.mxu0 %v2994
    %3778 = vmatpush.bf16.msra.mxu0 %v2986
    %3779 = vmatpush.bf16.msra.mxu0 %v2978
    %3780 = vmatpush.bf16.msra.mxu0 %v2970
    %3781 = vmatpush.bf16.msra.mxu0 %v2962
    %3782 = vmatpush.bf16.msra.mxu0 %v2954
    %3783 = vmatmul.bf16.gmra.mxu0 %v501
    %v3784 = vpop.f32.mrf.mxu0
    %v3785 = vadd.f32 %v3772, %v3784
    %v3786 = vpop.f32.mrf.mxu0
    %3787 = vdwg.mxu0
    %3788 = vmatpush.bf16.msra.mxu0 %v3074
    %3789 = vmatpush.bf16.msra.mxu0 %v3066
    %3790 = vmatpush.bf16.msra.mxu0 %v3058
    %3791 = vmatpush.bf16.msra.mxu0 %v3050
    %3792 = vmatpush.bf16.msra.mxu0 %v3042
    %3793 = vmatpush.bf16.msra.mxu0 %v3034
    %3794 = vmatpush.bf16.msra.mxu0 %v3026
    %3795 = vmatpush.bf16.msra.mxu0 %v3018
    %3796 = vmatmul.bf16.gmra.mxu0 %v502
    %v3797 = vpop.f32.mrf.mxu0
    %v3798 = vadd.f32 %v3785, %v3797
    %v3799 = vpop.f32.mrf.mxu0
    %3800 = vdwg.mxu0
    %3801 = vmatpush.bf16.msra.mxu0 %v2627
    %3802 = vmatpush.bf16.msra.mxu0 %v2619
    %3803 = vmatpush.bf16.msra.mxu0 %v2611
    %3804 = vmatpush.bf16.msra.mxu0 %v2603
    %3805 = vmatpush.bf16.msra.mxu0 %v2595
    %3806 = vmatpush.bf16.msra.mxu0 %v2587
    %3807 = vmatpush.bf16.msra.mxu0 %v2579
    %3808 = vmatpush.bf16.msra.mxu0 %v2571
    %3809 = vmatmul.bf16.gmra.mxu0 %v495
    %v3810 = vpop.f32.mrf.mxu0
    %v3811 = vadd.f32 %v1019, %v3810
    %v3812 = vpop.f32.mrf.mxu0
    %3813 = vdwg.mxu0
    %3814 = vmatpush.bf16.msra.mxu0 %v2691
    %3815 = vmatpush.bf16.msra.mxu0 %v2683
    %3816 = vmatpush.bf16.msra.mxu0 %v2675
    %3817 = vmatpush.bf16.msra.mxu0 %v2667
    %3818 = vmatpush.bf16.msra.mxu0 %v2659
    %3819 = vmatpush.bf16.msra.mxu0 %v2651
    %3820 = vmatpush.bf16.msra.mxu0 %v2643
    %3821 = vmatpush.bf16.msra.mxu0 %v2635
    %3822 = vmatmul.bf16.gmra.mxu0 %v496
    %v3823 = vpop.f32.mrf.mxu0
    %v3824 = vadd.f32 %v3811, %v3823
    %v3825 = vpop.f32.mrf.mxu0
    %3826 = vdwg.mxu0
    %3827 = vmatpush.bf16.msra.mxu0 %v2755
    %3828 = vmatpush.bf16.msra.mxu0 %v2747
    %3829 = vmatpush.bf16.msra.mxu0 %v2739
    %3830 = vmatpush.bf16.msra.mxu0 %v2731
    %3831 = vmatpush.bf16.msra.mxu0 %v2723
    %3832 = vmatpush.bf16.msra.mxu0 %v2715
    %3833 = vmatpush.bf16.msra.mxu0 %v2707
    %3834 = vmatpush.bf16.msra.mxu0 %v2699
    %3835 = vmatmul.bf16.gmra.mxu0 %v497
    %v3836 = vpop.f32.mrf.mxu0
    %v3837 = vadd.f32 %v3824, %v3836
    %v3838 = vpop.f32.mrf.mxu0
    %3839 = vdwg.mxu0
    %3840 = vmatpush.bf16.msra.mxu0 %v2819
    %3841 = vmatpush.bf16.msra.mxu0 %v2811
    %3842 = vmatpush.bf16.msra.mxu0 %v2803
    %3843 = vmatpush.bf16.msra.mxu0 %v2795
    %3844 = vmatpush.bf16.msra.mxu0 %v2787
    %3845 = vmatpush.bf16.msra.mxu0 %v2779
    %3846 = vmatpush.bf16.msra.mxu0 %v2771
    %3847 = vmatpush.bf16.msra.mxu0 %v2763
    %3848 = vmatmul.bf16.gmra.mxu0 %v498
    %v3849 = vpop.f32.mrf.mxu0
    %v3850 = vadd.f32 %v3837, %v3849
    %v3851 = vpop.f32.mrf.mxu0
    %3852 = vdwg.mxu0
    %3853 = vmatpush.bf16.msra.mxu0 %v2883
    %3854 = vmatpush.bf16.msra.mxu0 %v2875
    %3855 = vmatpush.bf16.msra.mxu0 %v2867
    %3856 = vmatpush.bf16.msra.mxu0 %v2859
    %3857 = vmatpush.bf16.msra.mxu0 %v2851
    %3858 = vmatpush.bf16.msra.mxu0 %v2843
    %3859 = vmatpush.bf16.msra.mxu0 %v2835
    %3860 = vmatpush.bf16.msra.mxu0 %v2827
    %3861 = vmatmul.bf16.gmra.mxu0 %v499
    %v3862 = vpop.f32.mrf.mxu0
    %v3863 = vadd.f32 %v3850, %v3862
    %v3864 = vpop.f32.mrf.mxu0
    %3865 = vdwg.mxu0
    %3866 = vmatpush.bf16.msra.mxu0 %v2947
    %3867 = vmatpush.bf16.msra.mxu0 %v2939
    %3868 = vmatpush.bf16.msra.mxu0 %v2931
    %3869 = vmatpush.bf16.msra.mxu0 %v2923
    %3870 = vmatpush.bf16.msra.mxu0 %v2915
    %3871 = vmatpush.bf16.msra.mxu0 %v2907
    %3872 = vmatpush.bf16.msra.mxu0 %v2899
    %3873 = vmatpush.bf16.msra.mxu0 %v2891
    %3874 = vmatmul.bf16.gmra.mxu0 %v500
    %v3875 = vpop.f32.mrf.mxu0
    %v3876 = vadd.f32 %v3863, %v3875
    %v3877 = vpop.f32.mrf.mxu0
    %3878 = vdwg.mxu0
    %3879 = vmatpush.bf16.msra.mxu0 %v3011
    %3880 = vmatpush.bf16.msra.mxu0 %v3003
    %3881 = vmatpush.bf16.msra.mxu0 %v2995
    %3882 = vmatpush.bf16.msra.mxu0 %v2987
    %3883 = vmatpush.bf16.msra.mxu0 %v2979
    %3884 = vmatpush.bf16.msra.mxu0 %v2971
    %3885 = vmatpush.bf16.msra.mxu0 %v2963
    %3886 = vmatpush.bf16.msra.mxu0 %v2955
    %3887 = vmatmul.bf16.gmra.mxu0 %v501
    %v3888 = vpop.f32.mrf.mxu0
    %v3889 = vadd.f32 %v3876, %v3888
    %v3890 = vpop.f32.mrf.mxu0
    %3891 = vdwg.mxu0
    %3892 = vmatpush.bf16.msra.mxu0 %v3075
    %3893 = vmatpush.bf16.msra.mxu0 %v3067
    %3894 = vmatpush.bf16.msra.mxu0 %v3059
    %3895 = vmatpush.bf16.msra.mxu0 %v3051
    %3896 = vmatpush.bf16.msra.mxu0 %v3043
    %3897 = vmatpush.bf16.msra.mxu0 %v3035
    %3898 = vmatpush.bf16.msra.mxu0 %v3027
    %3899 = vmatpush.bf16.msra.mxu0 %v3019
    %3900 = vmatmul.bf16.gmra.mxu0 %v502
    %v3901 = vpop.f32.mrf.mxu0
    %v3902 = vadd.f32 %v3889, %v3901
    %v3903 = vpop.f32.mrf.mxu0
    %3904 = vdwg.mxu0
    %3905 = vmatpush.bf16.msra.mxu0 %v2628
    %3906 = vmatpush.bf16.msra.mxu0 %v2620
    %3907 = vmatpush.bf16.msra.mxu0 %v2612
    %3908 = vmatpush.bf16.msra.mxu0 %v2604
    %3909 = vmatpush.bf16.msra.mxu0 %v2596
    %3910 = vmatpush.bf16.msra.mxu0 %v2588
    %3911 = vmatpush.bf16.msra.mxu0 %v2580
    %3912 = vmatpush.bf16.msra.mxu0 %v2572
    %3913 = vmatmul.bf16.gmra.mxu0 %v495
    %v3914 = vpop.f32.mrf.mxu0
    %v3915 = vadd.f32 %v1020, %v3914
    %v3916 = vpop.f32.mrf.mxu0
    %3917 = vdwg.mxu0
    %3918 = vmatpush.bf16.msra.mxu0 %v2692
    %3919 = vmatpush.bf16.msra.mxu0 %v2684
    %3920 = vmatpush.bf16.msra.mxu0 %v2676
    %3921 = vmatpush.bf16.msra.mxu0 %v2668
    %3922 = vmatpush.bf16.msra.mxu0 %v2660
    %3923 = vmatpush.bf16.msra.mxu0 %v2652
    %3924 = vmatpush.bf16.msra.mxu0 %v2644
    %3925 = vmatpush.bf16.msra.mxu0 %v2636
    %3926 = vmatmul.bf16.gmra.mxu0 %v496
    %v3927 = vpop.f32.mrf.mxu0
    %v3928 = vadd.f32 %v3915, %v3927
    %v3929 = vpop.f32.mrf.mxu0
    %3930 = vdwg.mxu0
    %3931 = vmatpush.bf16.msra.mxu0 %v2756
    %3932 = vmatpush.bf16.msra.mxu0 %v2748
    %3933 = vmatpush.bf16.msra.mxu0 %v2740
    %3934 = vmatpush.bf16.msra.mxu0 %v2732
    %3935 = vmatpush.bf16.msra.mxu0 %v2724
    %3936 = vmatpush.bf16.msra.mxu0 %v2716
    %3937 = vmatpush.bf16.msra.mxu0 %v2708
    %3938 = vmatpush.bf16.msra.mxu0 %v2700
    %3939 = vmatmul.bf16.gmra.mxu0 %v497
    %v3940 = vpop.f32.mrf.mxu0
    %v3941 = vadd.f32 %v3928, %v3940
    %v3942 = vpop.f32.mrf.mxu0
    %3943 = vdwg.mxu0
    %3944 = vmatpush.bf16.msra.mxu0 %v2820
    %3945 = vmatpush.bf16.msra.mxu0 %v2812
    %3946 = vmatpush.bf16.msra.mxu0 %v2804
    %3947 = vmatpush.bf16.msra.mxu0 %v2796
    %3948 = vmatpush.bf16.msra.mxu0 %v2788
    %3949 = vmatpush.bf16.msra.mxu0 %v2780
    %3950 = vmatpush.bf16.msra.mxu0 %v2772
    %3951 = vmatpush.bf16.msra.mxu0 %v2764
    %3952 = vmatmul.bf16.gmra.mxu0 %v498
    %v3953 = vpop.f32.mrf.mxu0
    %v3954 = vadd.f32 %v3941, %v3953
    %v3955 = vpop.f32.mrf.mxu0
    %3956 = vdwg.mxu0
    %3957 = vmatpush.bf16.msra.mxu0 %v2884
    %3958 = vmatpush.bf16.msra.mxu0 %v2876
    %3959 = vmatpush.bf16.msra.mxu0 %v2868
    %3960 = vmatpush.bf16.msra.mxu0 %v2860
    %3961 = vmatpush.bf16.msra.mxu0 %v2852
    %3962 = vmatpush.bf16.msra.mxu0 %v2844
    %3963 = vmatpush.bf16.msra.mxu0 %v2836
    %3964 = vmatpush.bf16.msra.mxu0 %v2828
    %3965 = vmatmul.bf16.gmra.mxu0 %v499
    %v3966 = vpop.f32.mrf.mxu0
    %v3967 = vadd.f32 %v3954, %v3966
    %v3968 = vpop.f32.mrf.mxu0
    %3969 = vdwg.mxu0
    %3970 = vmatpush.bf16.msra.mxu0 %v2948
    %3971 = vmatpush.bf16.msra.mxu0 %v2940
    %3972 = vmatpush.bf16.msra.mxu0 %v2932
    %3973 = vmatpush.bf16.msra.mxu0 %v2924
    %3974 = vmatpush.bf16.msra.mxu0 %v2916
    %3975 = vmatpush.bf16.msra.mxu0 %v2908
    %3976 = vmatpush.bf16.msra.mxu0 %v2900
    %3977 = vmatpush.bf16.msra.mxu0 %v2892
    %3978 = vmatmul.bf16.gmra.mxu0 %v500
    %v3979 = vpop.f32.mrf.mxu0
    %v3980 = vadd.f32 %v3967, %v3979
    %v3981 = vpop.f32.mrf.mxu0
    %3982 = vdwg.mxu0
    %3983 = vmatpush.bf16.msra.mxu0 %v3012
    %3984 = vmatpush.bf16.msra.mxu0 %v3004
    %3985 = vmatpush.bf16.msra.mxu0 %v2996
    %3986 = vmatpush.bf16.msra.mxu0 %v2988
    %3987 = vmatpush.bf16.msra.mxu0 %v2980
    %3988 = vmatpush.bf16.msra.mxu0 %v2972
    %3989 = vmatpush.bf16.msra.mxu0 %v2964
    %3990 = vmatpush.bf16.msra.mxu0 %v2956
    %3991 = vmatmul.bf16.gmra.mxu0 %v501
    %v3992 = vpop.f32.mrf.mxu0
    %v3993 = vadd.f32 %v3980, %v3992
    %v3994 = vpop.f32.mrf.mxu0
    %3995 = vdwg.mxu0
    %3996 = vmatpush.bf16.msra.mxu0 %v3076
    %3997 = vmatpush.bf16.msra.mxu0 %v3068
    %3998 = vmatpush.bf16.msra.mxu0 %v3060
    %3999 = vmatpush.bf16.msra.mxu0 %v3052
    %4000 = vmatpush.bf16.msra.mxu0 %v3044
    %4001 = vmatpush.bf16.msra.mxu0 %v3036
    %4002 = vmatpush.bf16.msra.mxu0 %v3028
    %4003 = vmatpush.bf16.msra.mxu0 %v3020
    %4004 = vmatmul.bf16.gmra.mxu0 %v502
    %v4005 = vpop.f32.mrf.mxu0
    %v4006 = vadd.f32 %v3993, %v4005
    %v4007 = vpop.f32.mrf.mxu0
    %4008 = vdwg.mxu0
    %4009 = vmatpush.bf16.msra.mxu0 %v2629
    %4010 = vmatpush.bf16.msra.mxu0 %v2621
    %4011 = vmatpush.bf16.msra.mxu0 %v2613
    %4012 = vmatpush.bf16.msra.mxu0 %v2605
    %4013 = vmatpush.bf16.msra.mxu0 %v2597
    %4014 = vmatpush.bf16.msra.mxu0 %v2589
    %4015 = vmatpush.bf16.msra.mxu0 %v2581
    %4016 = vmatpush.bf16.msra.mxu0 %v2573
    %4017 = vmatmul.bf16.gmra.mxu0 %v495
    %v4018 = vpop.f32.mrf.mxu0
    %v4019 = vadd.f32 %v1021, %v4018
    %v4020 = vpop.f32.mrf.mxu0
    %4021 = vdwg.mxu0
    %4022 = vmatpush.bf16.msra.mxu0 %v2693
    %4023 = vmatpush.bf16.msra.mxu0 %v2685
    %4024 = vmatpush.bf16.msra.mxu0 %v2677
    %4025 = vmatpush.bf16.msra.mxu0 %v2669
    %4026 = vmatpush.bf16.msra.mxu0 %v2661
    %4027 = vmatpush.bf16.msra.mxu0 %v2653
    %4028 = vmatpush.bf16.msra.mxu0 %v2645
    %4029 = vmatpush.bf16.msra.mxu0 %v2637
    %4030 = vmatmul.bf16.gmra.mxu0 %v496
    %v4031 = vpop.f32.mrf.mxu0
    %v4032 = vadd.f32 %v4019, %v4031
    %v4033 = vpop.f32.mrf.mxu0
    %4034 = vdwg.mxu0
    %4035 = vmatpush.bf16.msra.mxu0 %v2757
    %4036 = vmatpush.bf16.msra.mxu0 %v2749
    %4037 = vmatpush.bf16.msra.mxu0 %v2741
    %4038 = vmatpush.bf16.msra.mxu0 %v2733
    %4039 = vmatpush.bf16.msra.mxu0 %v2725
    %4040 = vmatpush.bf16.msra.mxu0 %v2717
    %4041 = vmatpush.bf16.msra.mxu0 %v2709
    %4042 = vmatpush.bf16.msra.mxu0 %v2701
    %4043 = vmatmul.bf16.gmra.mxu0 %v497
    %v4044 = vpop.f32.mrf.mxu0
    %v4045 = vadd.f32 %v4032, %v4044
    %v4046 = vpop.f32.mrf.mxu0
    %4047 = vdwg.mxu0
    %4048 = vmatpush.bf16.msra.mxu0 %v2821
    %4049 = vmatpush.bf16.msra.mxu0 %v2813
    %4050 = vmatpush.bf16.msra.mxu0 %v2805
    %4051 = vmatpush.bf16.msra.mxu0 %v2797
    %4052 = vmatpush.bf16.msra.mxu0 %v2789
    %4053 = vmatpush.bf16.msra.mxu0 %v2781
    %4054 = vmatpush.bf16.msra.mxu0 %v2773
    %4055 = vmatpush.bf16.msra.mxu0 %v2765
    %4056 = vmatmul.bf16.gmra.mxu0 %v498
    %v4057 = vpop.f32.mrf.mxu0
    %v4058 = vadd.f32 %v4045, %v4057
    %v4059 = vpop.f32.mrf.mxu0
    %4060 = vdwg.mxu0
    %4061 = vmatpush.bf16.msra.mxu0 %v2885
    %4062 = vmatpush.bf16.msra.mxu0 %v2877
    %4063 = vmatpush.bf16.msra.mxu0 %v2869
    %4064 = vmatpush.bf16.msra.mxu0 %v2861
    %4065 = vmatpush.bf16.msra.mxu0 %v2853
    %4066 = vmatpush.bf16.msra.mxu0 %v2845
    %4067 = vmatpush.bf16.msra.mxu0 %v2837
    %4068 = vmatpush.bf16.msra.mxu0 %v2829
    %4069 = vmatmul.bf16.gmra.mxu0 %v499
    %v4070 = vpop.f32.mrf.mxu0
    %v4071 = vadd.f32 %v4058, %v4070
    %v4072 = vpop.f32.mrf.mxu0
    %4073 = vdwg.mxu0
    %4074 = vmatpush.bf16.msra.mxu0 %v2949
    %4075 = vmatpush.bf16.msra.mxu0 %v2941
    %4076 = vmatpush.bf16.msra.mxu0 %v2933
    %4077 = vmatpush.bf16.msra.mxu0 %v2925
    %4078 = vmatpush.bf16.msra.mxu0 %v2917
    %4079 = vmatpush.bf16.msra.mxu0 %v2909
    %4080 = vmatpush.bf16.msra.mxu0 %v2901
    %4081 = vmatpush.bf16.msra.mxu0 %v2893
    %4082 = vmatmul.bf16.gmra.mxu0 %v500
    %v4083 = vpop.f32.mrf.mxu0
    %v4084 = vadd.f32 %v4071, %v4083
    %v4085 = vpop.f32.mrf.mxu0
    %4086 = vdwg.mxu0
    %4087 = vmatpush.bf16.msra.mxu0 %v3013
    %4088 = vmatpush.bf16.msra.mxu0 %v3005
    %4089 = vmatpush.bf16.msra.mxu0 %v2997
    %4090 = vmatpush.bf16.msra.mxu0 %v2989
    %4091 = vmatpush.bf16.msra.mxu0 %v2981
    %4092 = vmatpush.bf16.msra.mxu0 %v2973
    %4093 = vmatpush.bf16.msra.mxu0 %v2965
    %4094 = vmatpush.bf16.msra.mxu0 %v2957
    %4095 = vmatmul.bf16.gmra.mxu0 %v501
    %v4096 = vpop.f32.mrf.mxu0
    %v4097 = vadd.f32 %v4084, %v4096
    %v4098 = vpop.f32.mrf.mxu0
    %4099 = vdwg.mxu0
    %4100 = vmatpush.bf16.msra.mxu0 %v3077
    %4101 = vmatpush.bf16.msra.mxu0 %v3069
    %4102 = vmatpush.bf16.msra.mxu0 %v3061
    %4103 = vmatpush.bf16.msra.mxu0 %v3053
    %4104 = vmatpush.bf16.msra.mxu0 %v3045
    %4105 = vmatpush.bf16.msra.mxu0 %v3037
    %4106 = vmatpush.bf16.msra.mxu0 %v3029
    %4107 = vmatpush.bf16.msra.mxu0 %v3021
    %4108 = vmatmul.bf16.gmra.mxu0 %v502
    %v4109 = vpop.f32.mrf.mxu0
    %v4110 = vadd.f32 %v4097, %v4109
    %v4111 = vpop.f32.mrf.mxu0
    %4112 = vdwg.mxu0
    %4113 = vmatpush.bf16.msra.mxu0 %v2630
    %4114 = vmatpush.bf16.msra.mxu0 %v2622
    %4115 = vmatpush.bf16.msra.mxu0 %v2614
    %4116 = vmatpush.bf16.msra.mxu0 %v2606
    %4117 = vmatpush.bf16.msra.mxu0 %v2598
    %4118 = vmatpush.bf16.msra.mxu0 %v2590
    %4119 = vmatpush.bf16.msra.mxu0 %v2582
    %4120 = vmatpush.bf16.msra.mxu0 %v2574
    %4121 = vmatmul.bf16.gmra.mxu0 %v495
    %v4122 = vpop.f32.mrf.mxu0
    %v4123 = vadd.f32 %v1022, %v4122
    %v4124 = vpop.f32.mrf.mxu0
    %4125 = vdwg.mxu0
    %4126 = vmatpush.bf16.msra.mxu0 %v2694
    %4127 = vmatpush.bf16.msra.mxu0 %v2686
    %4128 = vmatpush.bf16.msra.mxu0 %v2678
    %4129 = vmatpush.bf16.msra.mxu0 %v2670
    %4130 = vmatpush.bf16.msra.mxu0 %v2662
    %4131 = vmatpush.bf16.msra.mxu0 %v2654
    %4132 = vmatpush.bf16.msra.mxu0 %v2646
    %4133 = vmatpush.bf16.msra.mxu0 %v2638
    %4134 = vmatmul.bf16.gmra.mxu0 %v496
    %v4135 = vpop.f32.mrf.mxu0
    %v4136 = vadd.f32 %v4123, %v4135
    %v4137 = vpop.f32.mrf.mxu0
    %4138 = vdwg.mxu0
    %4139 = vmatpush.bf16.msra.mxu0 %v2758
    %4140 = vmatpush.bf16.msra.mxu0 %v2750
    %4141 = vmatpush.bf16.msra.mxu0 %v2742
    %4142 = vmatpush.bf16.msra.mxu0 %v2734
    %4143 = vmatpush.bf16.msra.mxu0 %v2726
    %4144 = vmatpush.bf16.msra.mxu0 %v2718
    %4145 = vmatpush.bf16.msra.mxu0 %v2710
    %4146 = vmatpush.bf16.msra.mxu0 %v2702
    %4147 = vmatmul.bf16.gmra.mxu0 %v497
    %v4148 = vpop.f32.mrf.mxu0
    %v4149 = vadd.f32 %v4136, %v4148
    %v4150 = vpop.f32.mrf.mxu0
    %4151 = vdwg.mxu0
    %4152 = vmatpush.bf16.msra.mxu0 %v2822
    %4153 = vmatpush.bf16.msra.mxu0 %v2814
    %4154 = vmatpush.bf16.msra.mxu0 %v2806
    %4155 = vmatpush.bf16.msra.mxu0 %v2798
    %4156 = vmatpush.bf16.msra.mxu0 %v2790
    %4157 = vmatpush.bf16.msra.mxu0 %v2782
    %4158 = vmatpush.bf16.msra.mxu0 %v2774
    %4159 = vmatpush.bf16.msra.mxu0 %v2766
    %4160 = vmatmul.bf16.gmra.mxu0 %v498
    %v4161 = vpop.f32.mrf.mxu0
    %v4162 = vadd.f32 %v4149, %v4161
    %v4163 = vpop.f32.mrf.mxu0
    %4164 = vdwg.mxu0
    %4165 = vmatpush.bf16.msra.mxu0 %v2886
    %4166 = vmatpush.bf16.msra.mxu0 %v2878
    %4167 = vmatpush.bf16.msra.mxu0 %v2870
    %4168 = vmatpush.bf16.msra.mxu0 %v2862
    %4169 = vmatpush.bf16.msra.mxu0 %v2854
    %4170 = vmatpush.bf16.msra.mxu0 %v2846
    %4171 = vmatpush.bf16.msra.mxu0 %v2838
    %4172 = vmatpush.bf16.msra.mxu0 %v2830
    %4173 = vmatmul.bf16.gmra.mxu0 %v499
    %v4174 = vpop.f32.mrf.mxu0
    %v4175 = vadd.f32 %v4162, %v4174
    %v4176 = vpop.f32.mrf.mxu0
    %4177 = vdwg.mxu0
    %4178 = vmatpush.bf16.msra.mxu0 %v2950
    %4179 = vmatpush.bf16.msra.mxu0 %v2942
    %4180 = vmatpush.bf16.msra.mxu0 %v2934
    %4181 = vmatpush.bf16.msra.mxu0 %v2926
    %4182 = vmatpush.bf16.msra.mxu0 %v2918
    %4183 = vmatpush.bf16.msra.mxu0 %v2910
    %4184 = vmatpush.bf16.msra.mxu0 %v2902
    %4185 = vmatpush.bf16.msra.mxu0 %v2894
    %4186 = vmatmul.bf16.gmra.mxu0 %v500
    %v4187 = vpop.f32.mrf.mxu0
    %v4188 = vadd.f32 %v4175, %v4187
    %v4189 = vpop.f32.mrf.mxu0
    %4190 = vdwg.mxu0
    %4191 = vmatpush.bf16.msra.mxu0 %v3014
    %4192 = vmatpush.bf16.msra.mxu0 %v3006
    %4193 = vmatpush.bf16.msra.mxu0 %v2998
    %4194 = vmatpush.bf16.msra.mxu0 %v2990
    %4195 = vmatpush.bf16.msra.mxu0 %v2982
    %4196 = vmatpush.bf16.msra.mxu0 %v2974
    %4197 = vmatpush.bf16.msra.mxu0 %v2966
    %4198 = vmatpush.bf16.msra.mxu0 %v2958
    %4199 = vmatmul.bf16.gmra.mxu0 %v501
    %v4200 = vpop.f32.mrf.mxu0
    %v4201 = vadd.f32 %v4188, %v4200
    %v4202 = vpop.f32.mrf.mxu0
    %4203 = vdwg.mxu0
    %4204 = vmatpush.bf16.msra.mxu0 %v3078
    %4205 = vmatpush.bf16.msra.mxu0 %v3070
    %4206 = vmatpush.bf16.msra.mxu0 %v3062
    %4207 = vmatpush.bf16.msra.mxu0 %v3054
    %4208 = vmatpush.bf16.msra.mxu0 %v3046
    %4209 = vmatpush.bf16.msra.mxu0 %v3038
    %4210 = vmatpush.bf16.msra.mxu0 %v3030
    %4211 = vmatpush.bf16.msra.mxu0 %v3022
    %4212 = vmatmul.bf16.gmra.mxu0 %v502
    %v4213 = vpop.f32.mrf.mxu0
    %v4214 = vadd.f32 %v4201, %v4213
    %v4215 = vpop.f32.mrf.mxu0
    %4216 = vdwg.mxu0
    %4217 = vmatpush.bf16.msra.mxu0 %v2631
    %4218 = vmatpush.bf16.msra.mxu0 %v2623
    %4219 = vmatpush.bf16.msra.mxu0 %v2615
    %4220 = vmatpush.bf16.msra.mxu0 %v2607
    %4221 = vmatpush.bf16.msra.mxu0 %v2599
    %4222 = vmatpush.bf16.msra.mxu0 %v2591
    %4223 = vmatpush.bf16.msra.mxu0 %v2583
    %4224 = vmatpush.bf16.msra.mxu0 %v2575
    %4225 = vmatmul.bf16.gmra.mxu0 %v495
    %v4226 = vpop.f32.mrf.mxu0
    %v4227 = vadd.f32 %v1023, %v4226
    %v4228 = vpop.f32.mrf.mxu0
    %4229 = vdwg.mxu0
    %4230 = vmatpush.bf16.msra.mxu0 %v2695
    %4231 = vmatpush.bf16.msra.mxu0 %v2687
    %4232 = vmatpush.bf16.msra.mxu0 %v2679
    %4233 = vmatpush.bf16.msra.mxu0 %v2671
    %4234 = vmatpush.bf16.msra.mxu0 %v2663
    %4235 = vmatpush.bf16.msra.mxu0 %v2655
    %4236 = vmatpush.bf16.msra.mxu0 %v2647
    %4237 = vmatpush.bf16.msra.mxu0 %v2639
    %4238 = vmatmul.bf16.gmra.mxu0 %v496
    %v4239 = vpop.f32.mrf.mxu0
    %v4240 = vadd.f32 %v4227, %v4239
    %v4241 = vpop.f32.mrf.mxu0
    %4242 = vdwg.mxu0
    %4243 = vmatpush.bf16.msra.mxu0 %v2759
    %4244 = vmatpush.bf16.msra.mxu0 %v2751
    %4245 = vmatpush.bf16.msra.mxu0 %v2743
    %4246 = vmatpush.bf16.msra.mxu0 %v2735
    %4247 = vmatpush.bf16.msra.mxu0 %v2727
    %4248 = vmatpush.bf16.msra.mxu0 %v2719
    %4249 = vmatpush.bf16.msra.mxu0 %v2711
    %4250 = vmatpush.bf16.msra.mxu0 %v2703
    %4251 = vmatmul.bf16.gmra.mxu0 %v497
    %v4252 = vpop.f32.mrf.mxu0
    %v4253 = vadd.f32 %v4240, %v4252
    %v4254 = vpop.f32.mrf.mxu0
    %4255 = vdwg.mxu0
    %4256 = vmatpush.bf16.msra.mxu0 %v2823
    %4257 = vmatpush.bf16.msra.mxu0 %v2815
    %4258 = vmatpush.bf16.msra.mxu0 %v2807
    %4259 = vmatpush.bf16.msra.mxu0 %v2799
    %4260 = vmatpush.bf16.msra.mxu0 %v2791
    %4261 = vmatpush.bf16.msra.mxu0 %v2783
    %4262 = vmatpush.bf16.msra.mxu0 %v2775
    %4263 = vmatpush.bf16.msra.mxu0 %v2767
    %4264 = vmatmul.bf16.gmra.mxu0 %v498
    %v4265 = vpop.f32.mrf.mxu0
    %v4266 = vadd.f32 %v4253, %v4265
    %v4267 = vpop.f32.mrf.mxu0
    %4268 = vdwg.mxu0
    %4269 = vmatpush.bf16.msra.mxu0 %v2887
    %4270 = vmatpush.bf16.msra.mxu0 %v2879
    %4271 = vmatpush.bf16.msra.mxu0 %v2871
    %4272 = vmatpush.bf16.msra.mxu0 %v2863
    %4273 = vmatpush.bf16.msra.mxu0 %v2855
    %4274 = vmatpush.bf16.msra.mxu0 %v2847
    %4275 = vmatpush.bf16.msra.mxu0 %v2839
    %4276 = vmatpush.bf16.msra.mxu0 %v2831
    %4277 = vmatmul.bf16.gmra.mxu0 %v499
    %v4278 = vpop.f32.mrf.mxu0
    %v4279 = vadd.f32 %v4266, %v4278
    %v4280 = vpop.f32.mrf.mxu0
    %4281 = vdwg.mxu0
    %4282 = vmatpush.bf16.msra.mxu0 %v2951
    %4283 = vmatpush.bf16.msra.mxu0 %v2943
    %4284 = vmatpush.bf16.msra.mxu0 %v2935
    %4285 = vmatpush.bf16.msra.mxu0 %v2927
    %4286 = vmatpush.bf16.msra.mxu0 %v2919
    %4287 = vmatpush.bf16.msra.mxu0 %v2911
    %4288 = vmatpush.bf16.msra.mxu0 %v2903
    %4289 = vmatpush.bf16.msra.mxu0 %v2895
    %4290 = vmatmul.bf16.gmra.mxu0 %v500
    %v4291 = vpop.f32.mrf.mxu0
    %v4292 = vadd.f32 %v4279, %v4291
    %v4293 = vpop.f32.mrf.mxu0
    %4294 = vdwg.mxu0
    %4295 = vmatpush.bf16.msra.mxu0 %v3015
    %4296 = vmatpush.bf16.msra.mxu0 %v3007
    %4297 = vmatpush.bf16.msra.mxu0 %v2999
    %4298 = vmatpush.bf16.msra.mxu0 %v2991
    %4299 = vmatpush.bf16.msra.mxu0 %v2983
    %4300 = vmatpush.bf16.msra.mxu0 %v2975
    %4301 = vmatpush.bf16.msra.mxu0 %v2967
    %4302 = vmatpush.bf16.msra.mxu0 %v2959
    %4303 = vmatmul.bf16.gmra.mxu0 %v501
    %v4304 = vpop.f32.mrf.mxu0
    %v4305 = vadd.f32 %v4292, %v4304
    %v4306 = vpop.f32.mrf.mxu0
    %4307 = vdwg.mxu0
    %4308 = vmatpush.bf16.msra.mxu0 %v3079
    %4309 = vmatpush.bf16.msra.mxu0 %v3071
    %4310 = vmatpush.bf16.msra.mxu0 %v3063
    %4311 = vmatpush.bf16.msra.mxu0 %v3055
    %4312 = vmatpush.bf16.msra.mxu0 %v3047
    %4313 = vmatpush.bf16.msra.mxu0 %v3039
    %4314 = vmatpush.bf16.msra.mxu0 %v3031
    %4315 = vmatpush.bf16.msra.mxu0 %v3023
    %4316 = vmatmul.bf16.gmra.mxu0 %v502
    %v4317 = vpop.f32.mrf.mxu0
    %v4318 = vadd.f32 %v4305, %v4317
    %v4319 = vpop.f32.mrf.mxu0
    %4320 = vdwg.mxu0
    %4321 = vmatpush.bf16.msra.mxu0 %v2632
    %4322 = vmatpush.bf16.msra.mxu0 %v2624
    %4323 = vmatpush.bf16.msra.mxu0 %v2616
    %4324 = vmatpush.bf16.msra.mxu0 %v2608
    %4325 = vmatpush.bf16.msra.mxu0 %v2600
    %4326 = vmatpush.bf16.msra.mxu0 %v2592
    %4327 = vmatpush.bf16.msra.mxu0 %v2584
    %4328 = vmatpush.bf16.msra.mxu0 %v2576
    %4329 = vmatmul.bf16.gmra.mxu0 %v495
    %v4330 = vpop.f32.mrf.mxu0
    %v4331 = vadd.f32 %v1024, %v4330
    %v4332 = vpop.f32.mrf.mxu0
    %4333 = vdwg.mxu0
    %4334 = vmatpush.bf16.msra.mxu0 %v2696
    %4335 = vmatpush.bf16.msra.mxu0 %v2688
    %4336 = vmatpush.bf16.msra.mxu0 %v2680
    %4337 = vmatpush.bf16.msra.mxu0 %v2672
    %4338 = vmatpush.bf16.msra.mxu0 %v2664
    %4339 = vmatpush.bf16.msra.mxu0 %v2656
    %4340 = vmatpush.bf16.msra.mxu0 %v2648
    %4341 = vmatpush.bf16.msra.mxu0 %v2640
    %4342 = vmatmul.bf16.gmra.mxu0 %v496
    %v4343 = vpop.f32.mrf.mxu0
    %v4344 = vadd.f32 %v4331, %v4343
    %v4345 = vpop.f32.mrf.mxu0
    %4346 = vdwg.mxu0
    %4347 = vmatpush.bf16.msra.mxu0 %v2760
    %4348 = vmatpush.bf16.msra.mxu0 %v2752
    %4349 = vmatpush.bf16.msra.mxu0 %v2744
    %4350 = vmatpush.bf16.msra.mxu0 %v2736
    %4351 = vmatpush.bf16.msra.mxu0 %v2728
    %4352 = vmatpush.bf16.msra.mxu0 %v2720
    %4353 = vmatpush.bf16.msra.mxu0 %v2712
    %4354 = vmatpush.bf16.msra.mxu0 %v2704
    %4355 = vmatmul.bf16.gmra.mxu0 %v497
    %v4356 = vpop.f32.mrf.mxu0
    %v4357 = vadd.f32 %v4344, %v4356
    %v4358 = vpop.f32.mrf.mxu0
    %4359 = vdwg.mxu0
    %4360 = vmatpush.bf16.msra.mxu0 %v2824
    %4361 = vmatpush.bf16.msra.mxu0 %v2816
    %4362 = vmatpush.bf16.msra.mxu0 %v2808
    %4363 = vmatpush.bf16.msra.mxu0 %v2800
    %4364 = vmatpush.bf16.msra.mxu0 %v2792
    %4365 = vmatpush.bf16.msra.mxu0 %v2784
    %4366 = vmatpush.bf16.msra.mxu0 %v2776
    %4367 = vmatpush.bf16.msra.mxu0 %v2768
    %4368 = vmatmul.bf16.gmra.mxu0 %v498
    %v4369 = vpop.f32.mrf.mxu0
    %v4370 = vadd.f32 %v4357, %v4369
    %v4371 = vpop.f32.mrf.mxu0
    %4372 = vdwg.mxu0
    %4373 = vmatpush.bf16.msra.mxu0 %v2888
    %4374 = vmatpush.bf16.msra.mxu0 %v2880
    %4375 = vmatpush.bf16.msra.mxu0 %v2872
    %4376 = vmatpush.bf16.msra.mxu0 %v2864
    %4377 = vmatpush.bf16.msra.mxu0 %v2856
    %4378 = vmatpush.bf16.msra.mxu0 %v2848
    %4379 = vmatpush.bf16.msra.mxu0 %v2840
    %4380 = vmatpush.bf16.msra.mxu0 %v2832
    %4381 = vmatmul.bf16.gmra.mxu0 %v499
    %v4382 = vpop.f32.mrf.mxu0
    %v4383 = vadd.f32 %v4370, %v4382
    %v4384 = vpop.f32.mrf.mxu0
    %4385 = vdwg.mxu0
    %4386 = vmatpush.bf16.msra.mxu0 %v2952
    %4387 = vmatpush.bf16.msra.mxu0 %v2944
    %4388 = vmatpush.bf16.msra.mxu0 %v2936
    %4389 = vmatpush.bf16.msra.mxu0 %v2928
    %4390 = vmatpush.bf16.msra.mxu0 %v2920
    %4391 = vmatpush.bf16.msra.mxu0 %v2912
    %4392 = vmatpush.bf16.msra.mxu0 %v2904
    %4393 = vmatpush.bf16.msra.mxu0 %v2896
    %4394 = vmatmul.bf16.gmra.mxu0 %v500
    %v4395 = vpop.f32.mrf.mxu0
    %v4396 = vadd.f32 %v4383, %v4395
    %v4397 = vpop.f32.mrf.mxu0
    %4398 = vdwg.mxu0
    %4399 = vmatpush.bf16.msra.mxu0 %v3016
    %4400 = vmatpush.bf16.msra.mxu0 %v3008
    %4401 = vmatpush.bf16.msra.mxu0 %v3000
    %4402 = vmatpush.bf16.msra.mxu0 %v2992
    %4403 = vmatpush.bf16.msra.mxu0 %v2984
    %4404 = vmatpush.bf16.msra.mxu0 %v2976
    %4405 = vmatpush.bf16.msra.mxu0 %v2968
    %4406 = vmatpush.bf16.msra.mxu0 %v2960
    %4407 = vmatmul.bf16.gmra.mxu0 %v501
    %v4408 = vpop.f32.mrf.mxu0
    %v4409 = vadd.f32 %v4396, %v4408
    %v4410 = vpop.f32.mrf.mxu0
    %4411 = vdwg.mxu0
    %4412 = vmatpush.bf16.msra.mxu0 %v3080
    %4413 = vmatpush.bf16.msra.mxu0 %v3072
    %4414 = vmatpush.bf16.msra.mxu0 %v3064
    %4415 = vmatpush.bf16.msra.mxu0 %v3056
    %4416 = vmatpush.bf16.msra.mxu0 %v3048
    %4417 = vmatpush.bf16.msra.mxu0 %v3040
    %4418 = vmatpush.bf16.msra.mxu0 %v3032
    %4419 = vmatpush.bf16.msra.mxu0 %v3024
    %4420 = vmatmul.bf16.gmra.mxu0 %v502
    %v4421 = vpop.f32.mrf.mxu0
    %v4422 = vadd.f32 %v4409, %v4421
    %v4423 = vpop.f32.mrf.mxu0
    %4424 = vdwg.mxu0
    %v4425 = vmax.f32 %v3694, 0.0
    %v4426 = vmax.f32 %v3798, 0.0
    %v4427 = vmax.f32 %v3902, 0.0
    %v4428 = vmax.f32 %v4006, 0.0
    %v4429 = vmax.f32 %v4110, 0.0
    %v4430 = vmax.f32 %v4214, 0.0
    %v4431 = vmax.f32 %v4318, 0.0
    %v4432 = vmax.f32 %v4422, 0.0
    %v4433 = vpack.c.bf16 %v4425, %v4425
    %v4434 = vpack.c.bf16 %v4426, %v4426
    %v4435 = vpack.c.bf16 %v4427, %v4427
    %v4436 = vpack.c.bf16 %v4428, %v4428
    %v4437 = vpack.c.bf16 %v4429, %v4429
    %v4438 = vpack.c.bf16 %v4430, %v4430
    %v4439 = vpack.c.bf16 %v4431, %v4431
    %v4440 = vpack.c.bf16 %v4432, %v4432
    %v4441 = vld [vmem:[#allocation11] sm:$0xff]
    %v4442 = vld [vmem:[#allocation11 + $0x8] sm:$0xff]
    %v4443 = vld [vmem:[#allocation11 + $0x10] sm:$0xff]
    %v4444 = vld [vmem:[#allocation11 + $0x18] sm:$0xff]
    %v4445 = vld [vmem:[#allocation11 + $0x20] sm:$0xff]
    %v4446 = vld [vmem:[#allocation11 + $0x28] sm:$0xff]
    %v4447 = vld [vmem:[#allocation11 + $0x30] sm:$0xff]
    %v4448 = vld [vmem:[#allocation11 + $0x38] sm:$0xff]
    %v4449 = vld [vmem:[#allocation11 + $0x40] sm:$0xff]
    %v4450 = vld [vmem:[#allocation11 + $0x48] sm:$0xff]
    %v4451 = vld [vmem:[#allocation11 + $0x50] sm:$0xff]
    %v4452 = vld [vmem:[#allocation11 + $0x58] sm:$0xff]
    %v4453 = vld [vmem:[#allocation11 + $0x60] sm:$0xff]
    %v4454 = vld [vmem:[#allocation11 + $0x68] sm:$0xff]
    %v4455 = vld [vmem:[#allocation11 + $0x70] sm:$0xff]
    %v4456 = vld [vmem:[#allocation11 + $0x78] sm:$0xff]
    %v4457 = vld [vmem:[#allocation11 + $0x80] sm:$0xff]
    %v4458 = vld [vmem:[#allocation11 + $0x88] sm:$0xff]
    %v4459 = vld [vmem:[#allocation11 + $0x90] sm:$0xff]
    %v4460 = vld [vmem:[#allocation11 + $0x98] sm:$0xff]
    %v4461 = vld [vmem:[#allocation11 + $0xa0] sm:$0xff]
    %v4462 = vld [vmem:[#allocation11 + $0xa8] sm:$0xff]
    %v4463 = vld [vmem:[#allocation11 + $0xb0] sm:$0xff]
    %v4464 = vld [vmem:[#allocation11 + $0xb8] sm:$0xff]
    %v4465 = vld [vmem:[#allocation11 + $0xc0] sm:$0xff]
    %v4466 = vld [vmem:[#allocation11 + $0xc8] sm:$0xff]
    %v4467 = vld [vmem:[#allocation11 + $0xd0] sm:$0xff]
    %v4468 = vld [vmem:[#allocation11 + $0xd8] sm:$0xff]
    %v4469 = vld [vmem:[#allocation11 + $0xe0] sm:$0xff]
    %v4470 = vld [vmem:[#allocation11 + $0xe8] sm:$0xff]
    %v4471 = vld [vmem:[#allocation11 + $0xf0] sm:$0xff]
    %v4472 = vld [vmem:[#allocation11 + $0xf8] sm:$0xff]
    %v4473 = vld [vmem:[#allocation11 + $0x100] sm:$0xff]
    %v4474 = vld [vmem:[#allocation11 + $0x108] sm:$0xff]
    %v4475 = vld [vmem:[#allocation11 + $0x110] sm:$0xff]
    %v4476 = vld [vmem:[#allocation11 + $0x118] sm:$0xff]
    %v4477 = vld [vmem:[#allocation11 + $0x120] sm:$0xff]
    %v4478 = vld [vmem:[#allocation11 + $0x128] sm:$0xff]
    %v4479 = vld [vmem:[#allocation11 + $0x130] sm:$0xff]
    %v4480 = vld [vmem:[#allocation11 + $0x138] sm:$0xff]
    %v4481 = vld [vmem:[#allocation11 + $0x140] sm:$0xff]
    %v4482 = vld [vmem:[#allocation11 + $0x148] sm:$0xff]
    %v4483 = vld [vmem:[#allocation11 + $0x150] sm:$0xff]
    %v4484 = vld [vmem:[#allocation11 + $0x158] sm:$0xff]
    %v4485 = vld [vmem:[#allocation11 + $0x160] sm:$0xff]
    %v4486 = vld [vmem:[#allocation11 + $0x168] sm:$0xff]
    %v4487 = vld [vmem:[#allocation11 + $0x170] sm:$0xff]
    %v4488 = vld [vmem:[#allocation11 + $0x178] sm:$0xff]
    %v4489 = vld [vmem:[#allocation11 + $0x180] sm:$0xff]
    %v4490 = vld [vmem:[#allocation11 + $0x188] sm:$0xff]
    %v4491 = vld [vmem:[#allocation11 + $0x190] sm:$0xff]
    %v4492 = vld [vmem:[#allocation11 + $0x198] sm:$0xff]
    %v4493 = vld [vmem:[#allocation11 + $0x1a0] sm:$0xff]
    %v4494 = vld [vmem:[#allocation11 + $0x1a8] sm:$0xff]
    %v4495 = vld [vmem:[#allocation11 + $0x1b0] sm:$0xff]
    %v4496 = vld [vmem:[#allocation11 + $0x1b8] sm:$0xff]
    %v4497 = vld [vmem:[#allocation11 + $0x1c0] sm:$0xff]
    %v4498 = vld [vmem:[#allocation11 + $0x1c8] sm:$0xff]
    %v4499 = vld [vmem:[#allocation11 + $0x1d0] sm:$0xff]
    %v4500 = vld [vmem:[#allocation11 + $0x1d8] sm:$0xff]
    %v4501 = vld [vmem:[#allocation11 + $0x1e0] sm:$0xff]
    %v4502 = vld [vmem:[#allocation11 + $0x1e8] sm:$0xff]
    %v4503 = vld [vmem:[#allocation11 + $0x1f0] sm:$0xff]
    %v4504 = vld [vmem:[#allocation11 + $0x1f8] sm:$0xff]
    %v4505 = vld [vmem:[#allocation11 + $0x200] sm:$0xff]
    %v4506 = vld [vmem:[#allocation11 + $0x208] sm:$0xff]
    %v4507 = vld [vmem:[#allocation11 + $0x210] sm:$0xff]
    %v4508 = vld [vmem:[#allocation11 + $0x218] sm:$0xff]
    %v4509 = vld [vmem:[#allocation11 + $0x220] sm:$0xff]
    %v4510 = vld [vmem:[#allocation11 + $0x228] sm:$0xff]
    %v4511 = vld [vmem:[#allocation11 + $0x230] sm:$0xff]
    %v4512 = vld [vmem:[#allocation11 + $0x238] sm:$0xff]
    %v4513 = vld [vmem:[#allocation11 + $0x240] sm:$0xff]
    %v4514 = vld [vmem:[#allocation11 + $0x248] sm:$0xff]
    %v4515 = vld [vmem:[#allocation11 + $0x250] sm:$0xff]
    %v4516 = vld [vmem:[#allocation11 + $0x258] sm:$0xff]
    %v4517 = vld [vmem:[#allocation11 + $0x260] sm:$0xff]
    %v4518 = vld [vmem:[#allocation11 + $0x268] sm:$0xff]
    %v4519 = vld [vmem:[#allocation11 + $0x270] sm:$0xff]
    %v4520 = vld [vmem:[#allocation11 + $0x278] sm:$0xff]
    %v4521 = vld [vmem:[#allocation11 + $0x280] sm:$0xff]
    %v4522 = vld [vmem:[#allocation11 + $0x288] sm:$0xff]
    %v4523 = vld [vmem:[#allocation11 + $0x290] sm:$0xff]
    %v4524 = vld [vmem:[#allocation11 + $0x298] sm:$0xff]
    %v4525 = vld [vmem:[#allocation11 + $0x2a0] sm:$0xff]
    %v4526 = vld [vmem:[#allocation11 + $0x2a8] sm:$0xff]
    %v4527 = vld [vmem:[#allocation11 + $0x2b0] sm:$0xff]
    %v4528 = vld [vmem:[#allocation11 + $0x2b8] sm:$0xff]
    %v4529 = vld [vmem:[#allocation11 + $0x2c0] sm:$0xff]
    %v4530 = vld [vmem:[#allocation11 + $0x2c8] sm:$0xff]
    %v4531 = vld [vmem:[#allocation11 + $0x2d0] sm:$0xff]
    %v4532 = vld [vmem:[#allocation11 + $0x2d8] sm:$0xff]
    %v4533 = vld [vmem:[#allocation11 + $0x2e0] sm:$0xff]
    %v4534 = vld [vmem:[#allocation11 + $0x2e8] sm:$0xff]
    %v4535 = vld [vmem:[#allocation11 + $0x2f0] sm:$0xff]
    %v4536 = vld [vmem:[#allocation11 + $0x2f8] sm:$0xff]
    %v4537 = vld [vmem:[#allocation11 + $0x300] sm:$0xff]
    %v4538 = vld [vmem:[#allocation11 + $0x308] sm:$0xff]
    %v4539 = vld [vmem:[#allocation11 + $0x310] sm:$0xff]
    %v4540 = vld [vmem:[#allocation11 + $0x318] sm:$0xff]
    %v4541 = vld [vmem:[#allocation11 + $0x320] sm:$0xff]
    %v4542 = vld [vmem:[#allocation11 + $0x328] sm:$0xff]
    %v4543 = vld [vmem:[#allocation11 + $0x330] sm:$0xff]
    %v4544 = vld [vmem:[#allocation11 + $0x338] sm:$0xff]
    %v4545 = vld [vmem:[#allocation11 + $0x340] sm:$0xff]
    %v4546 = vld [vmem:[#allocation11 + $0x348] sm:$0xff]
    %v4547 = vld [vmem:[#allocation11 + $0x350] sm:$0xff]
    %v4548 = vld [vmem:[#allocation11 + $0x358] sm:$0xff]
    %v4549 = vld [vmem:[#allocation11 + $0x360] sm:$0xff]
    %v4550 = vld [vmem:[#allocation11 + $0x368] sm:$0xff]
    %v4551 = vld [vmem:[#allocation11 + $0x370] sm:$0xff]
    %v4552 = vld [vmem:[#allocation11 + $0x378] sm:$0xff]
    %v4553 = vld [vmem:[#allocation11 + $0x380] sm:$0xff]
    %v4554 = vld [vmem:[#allocation11 + $0x388] sm:$0xff]
    %v4555 = vld [vmem:[#allocation11 + $0x390] sm:$0xff]
    %v4556 = vld [vmem:[#allocation11 + $0x398] sm:$0xff]
    %v4557 = vld [vmem:[#allocation11 + $0x3a0] sm:$0xff]
    %v4558 = vld [vmem:[#allocation11 + $0x3a8] sm:$0xff]
    %v4559 = vld [vmem:[#allocation11 + $0x3b0] sm:$0xff]
    %v4560 = vld [vmem:[#allocation11 + $0x3b8] sm:$0xff]
    %v4561 = vld [vmem:[#allocation11 + $0x3c0] sm:$0xff]
    %v4562 = vld [vmem:[#allocation11 + $0x3c8] sm:$0xff]
    %v4563 = vld [vmem:[#allocation11 + $0x3d0] sm:$0xff]
    %v4564 = vld [vmem:[#allocation11 + $0x3d8] sm:$0xff]
    %v4565 = vld [vmem:[#allocation11 + $0x3e0] sm:$0xff]
    %v4566 = vld [vmem:[#allocation11 + $0x3e8] sm:$0xff]
    %v4567 = vld [vmem:[#allocation11 + $0x3f0] sm:$0xff]
    %v4568 = vld [vmem:[#allocation11 + $0x3f8] sm:$0xff]
    %v4569 = vld [vmem:[#allocation13] sm:$0x3]
    %v4571 = vperm.slane %v4569, 0
    %v4572 = vperm.slane %v4569, 1
    %v4703 = vunpack.c.l.b16 %v4441
    %v4704 = vunpack.c.h.b16 %v4441
    %v4705 = vunpack.c.l.b16 %v4442
    %v4706 = vunpack.c.h.b16 %v4442
    %v4707 = vunpack.c.l.b16 %v4443
    %v4708 = vunpack.c.h.b16 %v4443
    %v4709 = vunpack.c.l.b16 %v4444
    %v4710 = vunpack.c.h.b16 %v4444
    %v4711 = vunpack.c.l.b16 %v4445
    %v4712 = vunpack.c.h.b16 %v4445
    %v4713 = vunpack.c.l.b16 %v4446
    %v4714 = vunpack.c.h.b16 %v4446
    %v4715 = vunpack.c.l.b16 %v4447
    %v4716 = vunpack.c.h.b16 %v4447
    %v4717 = vunpack.c.l.b16 %v4448
    %v4718 = vunpack.c.h.b16 %v4448
    %v4719 = vunpack.c.l.b16 %v4449
    %v4720 = vunpack.c.h.b16 %v4449
    %v4721 = vunpack.c.l.b16 %v4450
    %v4722 = vunpack.c.h.b16 %v4450
    %v4723 = vunpack.c.l.b16 %v4451
    %v4724 = vunpack.c.h.b16 %v4451
    %v4725 = vunpack.c.l.b16 %v4452
    %v4726 = vunpack.c.h.b16 %v4452
    %v4727 = vunpack.c.l.b16 %v4453
    %v4728 = vunpack.c.h.b16 %v4453
    %v4729 = vunpack.c.l.b16 %v4454
    %v4730 = vunpack.c.h.b16 %v4454
    %v4731 = vunpack.c.l.b16 %v4455
    %v4732 = vunpack.c.h.b16 %v4455
    %v4733 = vunpack.c.l.b16 %v4456
    %v4734 = vunpack.c.h.b16 %v4456
    %v4735 = vunpack.c.l.b16 %v4457
    %v4736 = vunpack.c.h.b16 %v4457
    %v4737 = vunpack.c.l.b16 %v4458
    %v4738 = vunpack.c.h.b16 %v4458
    %v4739 = vunpack.c.l.b16 %v4459
    %v4740 = vunpack.c.h.b16 %v4459
    %v4741 = vunpack.c.l.b16 %v4460
    %v4742 = vunpack.c.h.b16 %v4460
    %v4743 = vunpack.c.l.b16 %v4461
    %v4744 = vunpack.c.h.b16 %v4461
    %v4745 = vunpack.c.l.b16 %v4462
    %v4746 = vunpack.c.h.b16 %v4462
    %v4747 = vunpack.c.l.b16 %v4463
    %v4748 = vunpack.c.h.b16 %v4463
    %v4749 = vunpack.c.l.b16 %v4464
    %v4750 = vunpack.c.h.b16 %v4464
    %v4751 = vunpack.c.l.b16 %v4465
    %v4752 = vunpack.c.h.b16 %v4465
    %v4753 = vunpack.c.l.b16 %v4466
    %v4754 = vunpack.c.h.b16 %v4466
    %v4755 = vunpack.c.l.b16 %v4467
    %v4756 = vunpack.c.h.b16 %v4467
    %v4757 = vunpack.c.l.b16 %v4468
    %v4758 = vunpack.c.h.b16 %v4468
    %v4759 = vunpack.c.l.b16 %v4469
    %v4760 = vunpack.c.h.b16 %v4469
    %v4761 = vunpack.c.l.b16 %v4470
    %v4762 = vunpack.c.h.b16 %v4470
    %v4763 = vunpack.c.l.b16 %v4471
    %v4764 = vunpack.c.h.b16 %v4471
    %v4765 = vunpack.c.l.b16 %v4472
    %v4766 = vunpack.c.h.b16 %v4472
    %v4767 = vunpack.c.l.b16 %v4473
    %v4768 = vunpack.c.h.b16 %v4473
    %v4769 = vunpack.c.l.b16 %v4474
    %v4770 = vunpack.c.h.b16 %v4474
    %v4771 = vunpack.c.l.b16 %v4475
    %v4772 = vunpack.c.h.b16 %v4475
    %v4773 = vunpack.c.l.b16 %v4476
    %v4774 = vunpack.c.h.b16 %v4476
    %v4775 = vunpack.c.l.b16 %v4477
    %v4776 = vunpack.c.h.b16 %v4477
    %v4777 = vunpack.c.l.b16 %v4478
    %v4778 = vunpack.c.h.b16 %v4478
    %v4779 = vunpack.c.l.b16 %v4479
    %v4780 = vunpack.c.h.b16 %v4479
    %v4781 = vunpack.c.l.b16 %v4480
    %v4782 = vunpack.c.h.b16 %v4480
    %v4783 = vunpack.c.l.b16 %v4481
    %v4784 = vunpack.c.h.b16 %v4481
    %v4785 = vunpack.c.l.b16 %v4482
    %v4786 = vunpack.c.h.b16 %v4482
    %v4787 = vunpack.c.l.b16 %v4483
    %v4788 = vunpack.c.h.b16 %v4483
    %v4789 = vunpack.c.l.b16 %v4484
    %v4790 = vunpack.c.h.b16 %v4484
    %v4791 = vunpack.c.l.b16 %v4485
    %v4792 = vunpack.c.h.b16 %v4485
    %v4793 = vunpack.c.l.b16 %v4486
    %v4794 = vunpack.c.h.b16 %v4486
    %v4795 = vunpack.c.l.b16 %v4487
    %v4796 = vunpack.c.h.b16 %v4487
    %v4797 = vunpack.c.l.b16 %v4488
    %v4798 = vunpack.c.h.b16 %v4488
    %v4799 = vunpack.c.l.b16 %v4489
    %v4800 = vunpack.c.h.b16 %v4489
    %v4801 = vunpack.c.l.b16 %v4490
    %v4802 = vunpack.c.h.b16 %v4490
    %v4803 = vunpack.c.l.b16 %v4491
    %v4804 = vunpack.c.h.b16 %v4491
    %v4805 = vunpack.c.l.b16 %v4492
    %v4806 = vunpack.c.h.b16 %v4492
    %v4807 = vunpack.c.l.b16 %v4493
    %v4808 = vunpack.c.h.b16 %v4493
    %v4809 = vunpack.c.l.b16 %v4494
    %v4810 = vunpack.c.h.b16 %v4494
    %v4811 = vunpack.c.l.b16 %v4495
    %v4812 = vunpack.c.h.b16 %v4495
    %v4813 = vunpack.c.l.b16 %v4496
    %v4814 = vunpack.c.h.b16 %v4496
    %v4815 = vunpack.c.l.b16 %v4497
    %v4816 = vunpack.c.h.b16 %v4497
    %v4817 = vunpack.c.l.b16 %v4498
    %v4818 = vunpack.c.h.b16 %v4498
    %v4819 = vunpack.c.l.b16 %v4499
    %v4820 = vunpack.c.h.b16 %v4499
    %v4821 = vunpack.c.l.b16 %v4500
    %v4822 = vunpack.c.h.b16 %v4500
    %v4823 = vunpack.c.l.b16 %v4501
    %v4824 = vunpack.c.h.b16 %v4501
    %v4825 = vunpack.c.l.b16 %v4502
    %v4826 = vunpack.c.h.b16 %v4502
    %v4827 = vunpack.c.l.b16 %v4503
    %v4828 = vunpack.c.h.b16 %v4503
    %v4829 = vunpack.c.l.b16 %v4504
    %v4830 = vunpack.c.h.b16 %v4504
    %v4831 = vunpack.c.l.b16 %v4505
    %v4832 = vunpack.c.h.b16 %v4505
    %v4833 = vunpack.c.l.b16 %v4506
    %v4834 = vunpack.c.h.b16 %v4506
    %v4835 = vunpack.c.l.b16 %v4507
    %v4836 = vunpack.c.h.b16 %v4507
    %v4837 = vunpack.c.l.b16 %v4508
    %v4838 = vunpack.c.h.b16 %v4508
    %v4839 = vunpack.c.l.b16 %v4509
    %v4840 = vunpack.c.h.b16 %v4509
    %v4841 = vunpack.c.l.b16 %v4510
    %v4842 = vunpack.c.h.b16 %v4510
    %v4843 = vunpack.c.l.b16 %v4511
    %v4844 = vunpack.c.h.b16 %v4511
    %v4845 = vunpack.c.l.b16 %v4512
    %v4846 = vunpack.c.h.b16 %v4512
    %v4847 = vunpack.c.l.b16 %v4513
    %v4848 = vunpack.c.h.b16 %v4513
    %v4849 = vunpack.c.l.b16 %v4514
    %v4850 = vunpack.c.h.b16 %v4514
    %v4851 = vunpack.c.l.b16 %v4515
    %v4852 = vunpack.c.h.b16 %v4515
    %v4853 = vunpack.c.l.b16 %v4516
    %v4854 = vunpack.c.h.b16 %v4516
    %v4855 = vunpack.c.l.b16 %v4517
    %v4856 = vunpack.c.h.b16 %v4517
    %v4857 = vunpack.c.l.b16 %v4518
    %v4858 = vunpack.c.h.b16 %v4518
    %v4859 = vunpack.c.l.b16 %v4519
    %v4860 = vunpack.c.h.b16 %v4519
    %v4861 = vunpack.c.l.b16 %v4520
    %v4862 = vunpack.c.h.b16 %v4520
    %v4863 = vunpack.c.l.b16 %v4521
    %v4864 = vunpack.c.h.b16 %v4521
    %v4865 = vunpack.c.l.b16 %v4522
    %v4866 = vunpack.c.h.b16 %v4522
    %v4867 = vunpack.c.l.b16 %v4523
    %v4868 = vunpack.c.h.b16 %v4523
    %v4869 = vunpack.c.l.b16 %v4524
    %v4870 = vunpack.c.h.b16 %v4524
    %v4871 = vunpack.c.l.b16 %v4525
    %v4872 = vunpack.c.h.b16 %v4525
    %v4873 = vunpack.c.l.b16 %v4526
    %v4874 = vunpack.c.h.b16 %v4526
    %v4875 = vunpack.c.l.b16 %v4527
    %v4876 = vunpack.c.h.b16 %v4527
    %v4877 = vunpack.c.l.b16 %v4528
    %v4878 = vunpack.c.h.b16 %v4528
    %v4879 = vunpack.c.l.b16 %v4529
    %v4880 = vunpack.c.h.b16 %v4529
    %v4881 = vunpack.c.l.b16 %v4530
    %v4882 = vunpack.c.h.b16 %v4530
    %v4883 = vunpack.c.l.b16 %v4531
    %v4884 = vunpack.c.h.b16 %v4531
    %v4885 = vunpack.c.l.b16 %v4532
    %v4886 = vunpack.c.h.b16 %v4532
    %v4887 = vunpack.c.l.b16 %v4533
    %v4888 = vunpack.c.h.b16 %v4533
    %v4889 = vunpack.c.l.b16 %v4534
    %v4890 = vunpack.c.h.b16 %v4534
    %v4891 = vunpack.c.l.b16 %v4535
    %v4892 = vunpack.c.h.b16 %v4535
    %v4893 = vunpack.c.l.b16 %v4536
    %v4894 = vunpack.c.h.b16 %v4536
    %v4895 = vunpack.c.l.b16 %v4537
    %v4896 = vunpack.c.h.b16 %v4537
    %v4897 = vunpack.c.l.b16 %v4538
    %v4898 = vunpack.c.h.b16 %v4538
    %v4899 = vunpack.c.l.b16 %v4539
    %v4900 = vunpack.c.h.b16 %v4539
    %v4901 = vunpack.c.l.b16 %v4540
    %v4902 = vunpack.c.h.b16 %v4540
    %v4903 = vunpack.c.l.b16 %v4541
    %v4904 = vunpack.c.h.b16 %v4541
    %v4905 = vunpack.c.l.b16 %v4542
    %v4906 = vunpack.c.h.b16 %v4542
    %v4907 = vunpack.c.l.b16 %v4543
    %v4908 = vunpack.c.h.b16 %v4543
    %v4909 = vunpack.c.l.b16 %v4544
    %v4910 = vunpack.c.h.b16 %v4544
    %v4911 = vunpack.c.l.b16 %v4545
    %v4912 = vunpack.c.h.b16 %v4545
    %v4913 = vunpack.c.l.b16 %v4546
    %v4914 = vunpack.c.h.b16 %v4546
    %v4915 = vunpack.c.l.b16 %v4547
    %v4916 = vunpack.c.h.b16 %v4547
    %v4917 = vunpack.c.l.b16 %v4548
    %v4918 = vunpack.c.h.b16 %v4548
    %v4919 = vunpack.c.l.b16 %v4549
    %v4920 = vunpack.c.h.b16 %v4549
    %v4921 = vunpack.c.l.b16 %v4550
    %v4922 = vunpack.c.h.b16 %v4550
    %v4923 = vunpack.c.l.b16 %v4551
    %v4924 = vunpack.c.h.b16 %v4551
    %v4925 = vunpack.c.l.b16 %v4552
    %v4926 = vunpack.c.h.b16 %v4552
    %v4927 = vunpack.c.l.b16 %v4553
    %v4928 = vunpack.c.h.b16 %v4553
    %v4929 = vunpack.c.l.b16 %v4554
    %v4930 = vunpack.c.h.b16 %v4554
    %v4931 = vunpack.c.l.b16 %v4555
    %v4932 = vunpack.c.h.b16 %v4555
    %v4933 = vunpack.c.l.b16 %v4556
    %v4934 = vunpack.c.h.b16 %v4556
    %v4935 = vunpack.c.l.b16 %v4557
    %v4936 = vunpack.c.h.b16 %v4557
    %v4937 = vunpack.c.l.b16 %v4558
    %v4938 = vunpack.c.h.b16 %v4558
    %v4939 = vunpack.c.l.b16 %v4559
    %v4940 = vunpack.c.h.b16 %v4559
    %v4941 = vunpack.c.l.b16 %v4560
    %v4942 = vunpack.c.h.b16 %v4560
    %v4943 = vunpack.c.l.b16 %v4561
    %v4944 = vunpack.c.h.b16 %v4561
    %v4945 = vunpack.c.l.b16 %v4562
    %v4946 = vunpack.c.h.b16 %v4562
    %v4947 = vunpack.c.l.b16 %v4563
    %v4948 = vunpack.c.h.b16 %v4563
    %v4949 = vunpack.c.l.b16 %v4564
    %v4950 = vunpack.c.h.b16 %v4564
    %v4951 = vunpack.c.l.b16 %v4565
    %v4952 = vunpack.c.h.b16 %v4565
    %v4953 = vunpack.c.l.b16 %v4566
    %v4954 = vunpack.c.h.b16 %v4566
    %v4955 = vunpack.c.l.b16 %v4567
    %v4956 = vunpack.c.h.b16 %v4567
    %v4957 = vunpack.c.l.b16 %v4568
    %v4958 = vunpack.c.h.b16 %v4568
    %v4959 = vpack.c.b16 %v4705, %v4703
    %v4960 = vpack.c.b16 %v4706, %v4704
    %v4961 = vpack.c.b16 %v4709, %v4707
    %v4962 = vpack.c.b16 %v4710, %v4708
    %v4963 = vpack.c.b16 %v4713, %v4711
    %v4964 = vpack.c.b16 %v4714, %v4712
    %v4965 = vpack.c.b16 %v4717, %v4715
    %v4966 = vpack.c.b16 %v4718, %v4716
    %v4967 = vpack.c.b16 %v4721, %v4719
    %v4968 = vpack.c.b16 %v4722, %v4720
    %v4969 = vpack.c.b16 %v4725, %v4723
    %v4970 = vpack.c.b16 %v4726, %v4724
    %v4971 = vpack.c.b16 %v4729, %v4727
    %v4972 = vpack.c.b16 %v4730, %v4728
    %v4973 = vpack.c.b16 %v4733, %v4731
    %v4974 = vpack.c.b16 %v4734, %v4732
    %v4975 = vpack.c.b16 %v4737, %v4735
    %v4976 = vpack.c.b16 %v4738, %v4736
    %v4977 = vpack.c.b16 %v4741, %v4739
    %v4978 = vpack.c.b16 %v4742, %v4740
    %v4979 = vpack.c.b16 %v4745, %v4743
    %v4980 = vpack.c.b16 %v4746, %v4744
    %v4981 = vpack.c.b16 %v4749, %v4747
    %v4982 = vpack.c.b16 %v4750, %v4748
    %v4983 = vpack.c.b16 %v4753, %v4751
    %v4984 = vpack.c.b16 %v4754, %v4752
    %v4985 = vpack.c.b16 %v4757, %v4755
    %v4986 = vpack.c.b16 %v4758, %v4756
    %v4987 = vpack.c.b16 %v4761, %v4759
    %v4988 = vpack.c.b16 %v4762, %v4760
    %v4989 = vpack.c.b16 %v4765, %v4763
    %v4990 = vpack.c.b16 %v4766, %v4764
    %v4991 = vpack.c.b16 %v4769, %v4767
    %v4992 = vpack.c.b16 %v4770, %v4768
    %v4993 = vpack.c.b16 %v4773, %v4771
    %v4994 = vpack.c.b16 %v4774, %v4772
    %v4995 = vpack.c.b16 %v4777, %v4775
    %v4996 = vpack.c.b16 %v4778, %v4776
    %v4997 = vpack.c.b16 %v4781, %v4779
    %v4998 = vpack.c.b16 %v4782, %v4780
    %v4999 = vpack.c.b16 %v4785, %v4783
    %v5000 = vpack.c.b16 %v4786, %v4784
    %v5001 = vpack.c.b16 %v4789, %v4787
    %v5002 = vpack.c.b16 %v4790, %v4788
    %v5003 = vpack.c.b16 %v4793, %v4791
    %v5004 = vpack.c.b16 %v4794, %v4792
    %v5005 = vpack.c.b16 %v4797, %v4795
    %v5006 = vpack.c.b16 %v4798, %v4796
    %v5007 = vpack.c.b16 %v4801, %v4799
    %v5008 = vpack.c.b16 %v4802, %v4800
    %v5009 = vpack.c.b16 %v4805, %v4803
    %v5010 = vpack.c.b16 %v4806, %v4804
    %v5011 = vpack.c.b16 %v4809, %v4807
    %v5012 = vpack.c.b16 %v4810, %v4808
    %v5013 = vpack.c.b16 %v4813, %v4811
    %v5014 = vpack.c.b16 %v4814, %v4812
    %v5015 = vpack.c.b16 %v4817, %v4815
    %v5016 = vpack.c.b16 %v4818, %v4816
    %v5017 = vpack.c.b16 %v4821, %v4819
    %v5018 = vpack.c.b16 %v4822, %v4820
    %v5019 = vpack.c.b16 %v4825, %v4823
    %v5020 = vpack.c.b16 %v4826, %v4824
    %v5021 = vpack.c.b16 %v4829, %v4827
    %v5022 = vpack.c.b16 %v4830, %v4828
    %v5023 = vpack.c.b16 %v4833, %v4831
    %v5024 = vpack.c.b16 %v4834, %v4832
    %v5025 = vpack.c.b16 %v4837, %v4835
    %v5026 = vpack.c.b16 %v4838, %v4836
    %v5027 = vpack.c.b16 %v4841, %v4839
    %v5028 = vpack.c.b16 %v4842, %v4840
    %v5029 = vpack.c.b16 %v4845, %v4843
    %v5030 = vpack.c.b16 %v4846, %v4844
    %v5031 = vpack.c.b16 %v4849, %v4847
    %v5032 = vpack.c.b16 %v4850, %v4848
    %v5033 = vpack.c.b16 %v4853, %v4851
    %v5034 = vpack.c.b16 %v4854, %v4852
    %v5035 = vpack.c.b16 %v4857, %v4855
    %v5036 = vpack.c.b16 %v4858, %v4856
    %v5037 = vpack.c.b16 %v4861, %v4859
    %v5038 = vpack.c.b16 %v4862, %v4860
    %v5039 = vpack.c.b16 %v4865, %v4863
    %v5040 = vpack.c.b16 %v4866, %v4864
    %v5041 = vpack.c.b16 %v4869, %v4867
    %v5042 = vpack.c.b16 %v4870, %v4868
    %v5043 = vpack.c.b16 %v4873, %v4871
    %v5044 = vpack.c.b16 %v4874, %v4872
    %v5045 = vpack.c.b16 %v4877, %v4875
    %v5046 = vpack.c.b16 %v4878, %v4876
    %v5047 = vpack.c.b16 %v4881, %v4879
    %v5048 = vpack.c.b16 %v4882, %v4880
    %v5049 = vpack.c.b16 %v4885, %v4883
    %v5050 = vpack.c.b16 %v4886, %v4884
    %v5051 = vpack.c.b16 %v4889, %v4887
    %v5052 = vpack.c.b16 %v4890, %v4888
    %v5053 = vpack.c.b16 %v4893, %v4891
    %v5054 = vpack.c.b16 %v4894, %v4892
    %v5055 = vpack.c.b16 %v4897, %v4895
    %v5056 = vpack.c.b16 %v4898, %v4896
    %v5057 = vpack.c.b16 %v4901, %v4899
    %v5058 = vpack.c.b16 %v4902, %v4900
    %v5059 = vpack.c.b16 %v4905, %v4903
    %v5060 = vpack.c.b16 %v4906, %v4904
    %v5061 = vpack.c.b16 %v4909, %v4907
    %v5062 = vpack.c.b16 %v4910, %v4908
    %v5063 = vpack.c.b16 %v4913, %v4911
    %v5064 = vpack.c.b16 %v4914, %v4912
    %v5065 = vpack.c.b16 %v4917, %v4915
    %v5066 = vpack.c.b16 %v4918, %v4916
    %v5067 = vpack.c.b16 %v4921, %v4919
    %v5068 = vpack.c.b16 %v4922, %v4920
    %v5069 = vpack.c.b16 %v4925, %v4923
    %v5070 = vpack.c.b16 %v4926, %v4924
    %v5071 = vpack.c.b16 %v4929, %v4927
    %v5072 = vpack.c.b16 %v4930, %v4928
    %v5073 = vpack.c.b16 %v4933, %v4931
    %v5074 = vpack.c.b16 %v4934, %v4932
    %v5075 = vpack.c.b16 %v4937, %v4935
    %v5076 = vpack.c.b16 %v4938, %v4936
    %v5077 = vpack.c.b16 %v4941, %v4939
    %v5078 = vpack.c.b16 %v4942, %v4940
    %v5079 = vpack.c.b16 %v4945, %v4943
    %v5080 = vpack.c.b16 %v4946, %v4944
    %v5081 = vpack.c.b16 %v4949, %v4947
    %v5082 = vpack.c.b16 %v4950, %v4948
    %v5083 = vpack.c.b16 %v4953, %v4951
    %v5084 = vpack.c.b16 %v4954, %v4952
    %v5085 = vpack.c.b16 %v4957, %v4955
    %v5086 = vpack.c.b16 %v4958, %v4956
    %5215 = vmatpush.bf16.msra.mxu0 %v4973
    %5216 = vmatpush.bf16.msra.mxu0 %v4971
    %5217 = vmatpush.bf16.msra.mxu0 %v4969
    %5218 = vmatpush.bf16.msra.mxu0 %v4967
    %5219 = vmatpush.bf16.msra.mxu0 %v4965
    %5220 = vmatpush.bf16.msra.mxu0 %v4963
    %5221 = vmatpush.bf16.msra.mxu0 %v4961
    %5222 = vmatpush.bf16.msra.mxu0 %v4959
    %5223 = vmatmul.bf16.gmra.mxu0 %v4433
    %v5224 = vpop.f32.mrf.mxu0
    %v5225 = vadd.f32 %v4571, %v5224
    %v5226 = vpop.f32.mrf.mxu0
    %5227 = vdwg.mxu0
    %5228 = vmatpush.bf16.msra.mxu0 %v4989
    %5229 = vmatpush.bf16.msra.mxu0 %v4987
    %5230 = vmatpush.bf16.msra.mxu0 %v4985
    %5231 = vmatpush.bf16.msra.mxu0 %v4983
    %5232 = vmatpush.bf16.msra.mxu0 %v4981
    %5233 = vmatpush.bf16.msra.mxu0 %v4979
    %5234 = vmatpush.bf16.msra.mxu0 %v4977
    %5235 = vmatpush.bf16.msra.mxu0 %v4975
    %5236 = vmatmul.bf16.gmra.mxu0 %v4434
    %v5237 = vpop.f32.mrf.mxu0
    %v5238 = vadd.f32 %v5225, %v5237
    %v5239 = vpop.f32.mrf.mxu0
    %5240 = vdwg.mxu0
    %5241 = vmatpush.bf16.msra.mxu0 %v5005
    %5242 = vmatpush.bf16.msra.mxu0 %v5003
    %5243 = vmatpush.bf16.msra.mxu0 %v5001
    %5244 = vmatpush.bf16.msra.mxu0 %v4999
    %5245 = vmatpush.bf16.msra.mxu0 %v4997
    %5246 = vmatpush.bf16.msra.mxu0 %v4995
    %5247 = vmatpush.bf16.msra.mxu0 %v4993
    %5248 = vmatpush.bf16.msra.mxu0 %v4991
    %5249 = vmatmul.bf16.gmra.mxu0 %v4435
    %v5250 = vpop.f32.mrf.mxu0
    %v5251 = vadd.f32 %v5238, %v5250
    %v5252 = vpop.f32.mrf.mxu0
    %5253 = vdwg.mxu0
    %5254 = vmatpush.bf16.msra.mxu0 %v5021
    %5255 = vmatpush.bf16.msra.mxu0 %v5019
    %5256 = vmatpush.bf16.msra.mxu0 %v5017
    %5257 = vmatpush.bf16.msra.mxu0 %v5015
    %5258 = vmatpush.bf16.msra.mxu0 %v5013
    %5259 = vmatpush.bf16.msra.mxu0 %v5011
    %5260 = vmatpush.bf16.msra.mxu0 %v5009
    %5261 = vmatpush.bf16.msra.mxu0 %v5007
    %5262 = vmatmul.bf16.gmra.mxu0 %v4436
    %v5263 = vpop.f32.mrf.mxu0
    %v5264 = vadd.f32 %v5251, %v5263
    %v5265 = vpop.f32.mrf.mxu0
    %5266 = vdwg.mxu0
    %5267 = vmatpush.bf16.msra.mxu0 %v5037
    %5268 = vmatpush.bf16.msra.mxu0 %v5035
    %5269 = vmatpush.bf16.msra.mxu0 %v5033
    %5270 = vmatpush.bf16.msra.mxu0 %v5031
    %5271 = vmatpush.bf16.msra.mxu0 %v5029
    %5272 = vmatpush.bf16.msra.mxu0 %v5027
    %5273 = vmatpush.bf16.msra.mxu0 %v5025
    %5274 = vmatpush.bf16.msra.mxu0 %v5023
    %5275 = vmatmul.bf16.gmra.mxu0 %v4437
    %v5276 = vpop.f32.mrf.mxu0
    %v5277 = vadd.f32 %v5264, %v5276
    %v5278 = vpop.f32.mrf.mxu0
    %5279 = vdwg.mxu0
    %5280 = vmatpush.bf16.msra.mxu0 %v5053
    %5281 = vmatpush.bf16.msra.mxu0 %v5051
    %5282 = vmatpush.bf16.msra.mxu0 %v5049
    %5283 = vmatpush.bf16.msra.mxu0 %v5047
    %5284 = vmatpush.bf16.msra.mxu0 %v5045
    %5285 = vmatpush.bf16.msra.mxu0 %v5043
    %5286 = vmatpush.bf16.msra.mxu0 %v5041
    %5287 = vmatpush.bf16.msra.mxu0 %v5039
    %5288 = vmatmul.bf16.gmra.mxu0 %v4438
    %v5289 = vpop.f32.mrf.mxu0
    %v5290 = vadd.f32 %v5277, %v5289
    %v5291 = vpop.f32.mrf.mxu0
    %5292 = vdwg.mxu0
    %5293 = vmatpush.bf16.msra.mxu0 %v5069
    %5294 = vmatpush.bf16.msra.mxu0 %v5067
    %5295 = vmatpush.bf16.msra.mxu0 %v5065
    %5296 = vmatpush.bf16.msra.mxu0 %v5063
    %5297 = vmatpush.bf16.msra.mxu0 %v5061
    %5298 = vmatpush.bf16.msra.mxu0 %v5059
    %5299 = vmatpush.bf16.msra.mxu0 %v5057
    %5300 = vmatpush.bf16.msra.mxu0 %v5055
    %5301 = vmatmul.bf16.gmra.mxu0 %v4439
    %v5302 = vpop.f32.mrf.mxu0
    %v5303 = vadd.f32 %v5290, %v5302
    %v5304 = vpop.f32.mrf.mxu0
    %5305 = vdwg.mxu0
    %5306 = vmatpush.bf16.msra.mxu0 %v5085
    %5307 = vmatpush.bf16.msra.mxu0 %v5083
    %5308 = vmatpush.bf16.msra.mxu0 %v5081
    %5309 = vmatpush.bf16.msra.mxu0 %v5079
    %5310 = vmatpush.bf16.msra.mxu0 %v5077
    %5311 = vmatpush.bf16.msra.mxu0 %v5075
    %5312 = vmatpush.bf16.msra.mxu0 %v5073
    %5313 = vmatpush.bf16.msra.mxu0 %v5071
    %5314 = vmatmul.bf16.gmra.mxu0 %v4440
    %v5315 = vpop.f32.mrf.mxu0
    %v5316 = vadd.f32 %v5303, %v5315
    %v5317 = vpop.f32.mrf.mxu0
    %5318 = vdwg.mxu0
    %5319 = vmatpush.bf16.msra.mxu0 %v4974
    %5320 = vmatpush.bf16.msra.mxu0 %v4972
    %5321 = vmatpush.bf16.msra.mxu0 %v4970
    %5322 = vmatpush.bf16.msra.mxu0 %v4968
    %5323 = vmatpush.bf16.msra.mxu0 %v4966
    %5324 = vmatpush.bf16.msra.mxu0 %v4964
    %5325 = vmatpush.bf16.msra.mxu0 %v4962
    %5326 = vmatpush.bf16.msra.mxu0 %v4960
    %5327 = vmatmul.bf16.gmra.mxu0 %v4433
    %v5328 = vpop.f32.mrf.mxu0
    %v5329 = vadd.f32 %v4572, %v5328
    %v5330 = vpop.f32.mrf.mxu0
    %5331 = vdwg.mxu0
    %5332 = vmatpush.bf16.msra.mxu0 %v4990
    %5333 = vmatpush.bf16.msra.mxu0 %v4988
    %5334 = vmatpush.bf16.msra.mxu0 %v4986
    %5335 = vmatpush.bf16.msra.mxu0 %v4984
    %5336 = vmatpush.bf16.msra.mxu0 %v4982
    %5337 = vmatpush.bf16.msra.mxu0 %v4980
    %5338 = vmatpush.bf16.msra.mxu0 %v4978
    %5339 = vmatpush.bf16.msra.mxu0 %v4976
    %5340 = vmatmul.bf16.gmra.mxu0 %v4434
    %v5341 = vpop.f32.mrf.mxu0
    %v5342 = vadd.f32 %v5329, %v5341
    %v5343 = vpop.f32.mrf.mxu0
    %5344 = vdwg.mxu0
    %5345 = vmatpush.bf16.msra.mxu0 %v5006
    %5346 = vmatpush.bf16.msra.mxu0 %v5004
    %5347 = vmatpush.bf16.msra.mxu0 %v5002
    %5348 = vmatpush.bf16.msra.mxu0 %v5000
    %5349 = vmatpush.bf16.msra.mxu0 %v4998
    %5350 = vmatpush.bf16.msra.mxu0 %v4996
    %5351 = vmatpush.bf16.msra.mxu0 %v4994
    %5352 = vmatpush.bf16.msra.mxu0 %v4992
    %5353 = vmatmul.bf16.gmra.mxu0 %v4435
    %v5354 = vpop.f32.mrf.mxu0
    %v5355 = vadd.f32 %v5342, %v5354
    %v5356 = vpop.f32.mrf.mxu0
    %5357 = vdwg.mxu0
    %5358 = vmatpush.bf16.msra.mxu0 %v5022
    %5359 = vmatpush.bf16.msra.mxu0 %v5020
    %5360 = vmatpush.bf16.msra.mxu0 %v5018
    %5361 = vmatpush.bf16.msra.mxu0 %v5016
    %5362 = vmatpush.bf16.msra.mxu0 %v5014
    %5363 = vmatpush.bf16.msra.mxu0 %v5012
    %5364 = vmatpush.bf16.msra.mxu0 %v5010
    %5365 = vmatpush.bf16.msra.mxu0 %v5008
    %5366 = vmatmul.bf16.gmra.mxu0 %v4436
    %v5367 = vpop.f32.mrf.mxu0
    %v5368 = vadd.f32 %v5355, %v5367
    %v5369 = vpop.f32.mrf.mxu0
    %5370 = vdwg.mxu0
    %5371 = vmatpush.bf16.msra.mxu0 %v5038
    %5372 = vmatpush.bf16.msra.mxu0 %v5036
    %5373 = vmatpush.bf16.msra.mxu0 %v5034
    %5374 = vmatpush.bf16.msra.mxu0 %v5032
    %5375 = vmatpush.bf16.msra.mxu0 %v5030
    %5376 = vmatpush.bf16.msra.mxu0 %v5028
    %5377 = vmatpush.bf16.msra.mxu0 %v5026
    %5378 = vmatpush.bf16.msra.mxu0 %v5024
    %5379 = vmatmul.bf16.gmra.mxu0 %v4437
    %v5380 = vpop.f32.mrf.mxu0
    %v5381 = vadd.f32 %v5368, %v5380
    %v5382 = vpop.f32.mrf.mxu0
    %5383 = vdwg.mxu0
    %5384 = vmatpush.bf16.msra.mxu0 %v5054
    %5385 = vmatpush.bf16.msra.mxu0 %v5052
    %5386 = vmatpush.bf16.msra.mxu0 %v5050
    %5387 = vmatpush.bf16.msra.mxu0 %v5048
    %5388 = vmatpush.bf16.msra.mxu0 %v5046
    %5389 = vmatpush.bf16.msra.mxu0 %v5044
    %5390 = vmatpush.bf16.msra.mxu0 %v5042
    %5391 = vmatpush.bf16.msra.mxu0 %v5040
    %5392 = vmatmul.bf16.gmra.mxu0 %v4438
    %v5393 = vpop.f32.mrf.mxu0
    %v5394 = vadd.f32 %v5381, %v5393
    %v5395 = vpop.f32.mrf.mxu0
    %5396 = vdwg.mxu0
    %5397 = vmatpush.bf16.msra.mxu0 %v5070
    %5398 = vmatpush.bf16.msra.mxu0 %v5068
    %5399 = vmatpush.bf16.msra.mxu0 %v5066
    %5400 = vmatpush.bf16.msra.mxu0 %v5064
    %5401 = vmatpush.bf16.msra.mxu0 %v5062
    %5402 = vmatpush.bf16.msra.mxu0 %v5060
    %5403 = vmatpush.bf16.msra.mxu0 %v5058
    %5404 = vmatpush.bf16.msra.mxu0 %v5056
    %5405 = vmatmul.bf16.gmra.mxu0 %v4439
    %v5406 = vpop.f32.mrf.mxu0
    %v5407 = vadd.f32 %v5394, %v5406
    %v5408 = vpop.f32.mrf.mxu0
    %5409 = vdwg.mxu0
    %5410 = vmatpush.bf16.msra.mxu0 %v5086
    %5411 = vmatpush.bf16.msra.mxu0 %v5084
    %5412 = vmatpush.bf16.msra.mxu0 %v5082
    %5413 = vmatpush.bf16.msra.mxu0 %v5080
    %5414 = vmatpush.bf16.msra.mxu0 %v5078
    %5415 = vmatpush.bf16.msra.mxu0 %v5076
    %5416 = vmatpush.bf16.msra.mxu0 %v5074
    %5417 = vmatpush.bf16.msra.mxu0 %v5072
    %5418 = vmatmul.bf16.gmra.mxu0 %v4440
    %v5419 = vpop.f32.mrf.mxu0
    %v5420 = vadd.f32 %v5407, %v5419
    %v5421 = vpop.f32.mrf.mxu0
    %5422 = vdwg.mxu0
    %v5423 = vmax.f32 %v5420, 0.0
    %vm5424 = vcmp.ne.f32.partialorder %v5420, %v5420
    %v5425 = vadd.f32 %v5420, 0.0
    %v5426 = vand.u32 2147483647, %v5420
    %v5427 = vsub.f32 0.0, %v5426
    %v5428 = vmul.f32 %v5427, 1.442695
    %v5429 = vpow.pop %v5428
    %v5430 = vadd.f32 %v5429, 1.0
    %v5431 = vlog2.pop %v5430
    %v5432 = vmul.f32 %v5431, 0.6931472
    %v5433 = vmul.f32 -0.5, %v5429
    %v5434 = vadd.f32 %v5433, 1.0
    %v5435 = vmul.f32 %v5434, %v5429
    %v5436 = vand.u32 2147483647, %v5429
    %vm5437 = vcmp.lt.f32.partialorder %v5436, 0.0004427343
    %v5438 = vsel %vm5437, %v5435, %v5432
    %v5439 = vadd.f32 %v5423, %v5438
    %v5440 = vsel %vm5424, %v5425, %v5439
    %v5441 = vld [vmem:[#allocation16] sm:$0xff]
    %v5442 = vld [vmem:[#allocation16 + $0x8] sm:$0xff]
    %v5443 = vld [vmem:[#allocation16 + $0x10] sm:$0xff]
    %v5444 = vld [vmem:[#allocation16 + $0x18] sm:$0xff]
    %v5445 = vadd.f32 %v5441, %v5442
    %v5446 = vadd.f32 %v5445, %v5443
    %v5447 = vadd.f32 %v5446, %v5444
    %v5448 = vrcp.pop 4.0
    %v5449 = vmul.f32 4.0, %v5448
    %v5450 = vsub.f32 1.0, %v5449
    %v5451 = vmul.f32 %v5448, %v5450
    %v5452 = vadd.f32 %v5448, %v5451
    %vm5453 = vweird.f32 %v5448
    %v5454 = vsel %vm5453, %v5448, %v5452
    %v5455 = vmul.f32 %v5447, %v5454
    %v5456 = vmul.f32 %v5440, %v5455
    %v5457 = vadd.f32 %v5316, %v5456
    %v5458 = vld [vmem:[%s7] sm:$0xff]
    %v5459 = vld [vmem:[%s7 + $0x8] sm:$0xff]
    %v5460 = vld [vmem:[%s7 + $0x10] sm:$0xff]
    %v5461 = vld [vmem:[%s7 + $0x18] sm:$0xff]
    %v5462 = vld [vmem:[%s7 + $0x20] sm:$0xff]
    %v5463 = vld [vmem:[%s7 + $0x28] sm:$0xff]
    %v5464 = vld [vmem:[%s7 + $0x30] sm:$0xff]
    %v5465 = vld [vmem:[%s7 + $0x38] sm:$0xff]
    %v5466 = vld [vmem:[%s7 + $0x40] sm:$0xff]
    %v5467 = vld [vmem:[%s7 + $0x48] sm:$0xff]
    %v5468 = vld [vmem:[%s7 + $0x50] sm:$0xff]
    %v5469 = vld [vmem:[%s7 + $0x58] sm:$0xff]
    %v5470 = vld [vmem:[%s7 + $0x60] sm:$0xff]
    %v5471 = vld [vmem:[%s7 + $0x68] sm:$0xff]
    %v5472 = vld [vmem:[%s7 + $0x70] sm:$0xff]
    %v5473 = vld [vmem:[%s7 + $0x78] sm:$0xff]
    %v5474 = vld [vmem:[#allocation14] sm:$0x1]
    %v5476 = vperm.slane %v5474, 0
    %5478 = vmatpush.msra.mxu0 %v5473
    %5479 = vmatpush.msra.mxu0 %v5472
    %5480 = vmatpush.msra.mxu0 %v5471
    %5481 = vmatpush.msra.mxu0 %v5470
    %5482 = vmatpush.msra.mxu0 %v5469
    %5483 = vmatpush.msra.mxu0 %v5468
    %5484 = vmatpush.msra.mxu0 %v5467
    %5485 = vmatpush.msra.mxu0 %v5466
    %5486 = vmatpush.msra.mxu0 %v5465
    %5487 = vmatpush.msra.mxu0 %v5464
    %5488 = vmatpush.msra.mxu0 %v5463
    %5489 = vmatpush.msra.mxu0 %v5462
    %5490 = vmatpush.msra.mxu0 %v5461
    %5491 = vmatpush.msra.mxu0 %v5460
    %5492 = vmatpush.msra.mxu0 %v5459
    %5493 = vmatpush.msra.mxu0 %v5458
    %5494 = vmatmul.f32.gmra.mxu0 %v5457
    %v5495 = vpop.f32.mrf.mxu0
    %v5496 = vadd.f32 %v5476, %v5495
    %5497 = vdwg.mxu0
    %vm5498 = vcmask 80896
    %5499 = vst.msk [vmem:[#allocation17] sm:$0xff] %vm5498, %v5496
    // Predicated region
    $region78: #{tpu_custom_call.1} parent=1 // pred_check
      _
    $region79: #{tpu_custom_call.1} parent=1 // pred_check_branch
      %5501 = sbr.rel (0) target = $region81
    $region80: #{tpu_custom_call.1} parent=1 // pred_region
      %5503 = vsyncadd [#allocation4], 0
      %s5505 = sshll.u32 [#allocation17], 4
      %s5506 = int_to_ptr.vmem [resolvable:$true] %s5505
      %s5507 = sshll.u32 %s10, 4
      %s5508 = int_to_ptr.hbm [resolvable:$true] %s5507
      %5510 = dma.vmem_to_hbm [thread:$0]  %s5506, 128, %s5508, [#allocation4]
    $region81: #{tpu_custom_call.1} parent=1 // pred_fallthru
      _
    // Predicated region
    $region82: #{tpu_custom_call.1} parent=1 // pred_check
      _
    $region83: #{tpu_custom_call.1} parent=1 // pred_check_branch
      %5512 = sbr.rel (0) target = $region85
    $region84: #{tpu_custom_call.1} parent=1 // pred_region
      %5514 = dma.done [#allocation4], 128
    $region85: #{tpu_custom_call.1} parent=1 // pred_fallthru
      _
    %5515 = vsyncpa [#allocation3], 1
    %5516 = vsyncpa [#allocation6], 1
    %5517 = vsyncpa [#allocation9], 1
    %5518 = vsyncpa [#allocation12], 1
    %5519 = vsyncpa [#allocation15], 1
    %5520 = vsyncpa [#allocation4], 1

</llo_original>
